<compile_context>
chip_gen: v7x
topology: tpu7x:2x2x1
jax: 0.10.0
libtpu: 0.0.40
codegen_flags: <defaults>
</compile_context>

<pallas_src>
import functools

import numpy as np
import jax
import jax.numpy as jnp
from jax import lax
from jax.experimental import pallas as pl
from jax.experimental.pallas import tpu as pltpu


# ----------------------------------------------------------------------------
# Layer configuration (name, Cin, Cout, stride, padding) — from the PyTorch module
# ----------------------------------------------------------------------------
_CONV_CFG = [
    ("conv1", 32, 64, 1, 1),
    ("conv2", 64, 64, 2, 0),
    ("conv3", 64, 128, 1, 1),
    ("conv4", 128, 128, 2, 1),
    ("conv5", 128, 256, 1, 1),
]


def _conv_out_len(l, s, p):
    return (l + 2 * p - 3) // s + 1


def _layer_lengths(L):
    lens = [L]
    for _, _, _, s, p in _CONV_CFG:
        lens.append(_conv_out_len(lens[-1], s, p))
    return lens  # [L0, L1, ..., L5]


# ----------------------------------------------------------------------------
# Fused kernel: 5 x (Conv1d k=3 + bias + SiLU) on one halo'd window per grid step
# ----------------------------------------------------------------------------
def _fused_melody_kernel(x0_hbm, w1, b1, w2, b2, w3, b3, w4, b4, w5, b5,
                         o_ref,
                         x0buf, p1_0, p1_1, p1_2, p1_3, b2e, b2o, b3e, b3o, b4f,
                         sem,
                         *, T5, lens, n_tiles, j_tail, transpose_out):
    # x0_hbm : (B, LpQ, 128) f32 HBM (pl.ANY): embedded input, zero-padded and
    #          quad-folded (each row = 4 consecutive positions x 32 channels).
    # w*     : (3*Cin, Cout) tap-fused weights (bf16 or f32), b*: (1, Cout) f32.
    # o_ref  : (1, 256, T5) when transpose_out else (1, T5, 256).
    b = pl.program_id(0)
    j = pl.program_id(1)
    a5 = j * T5                      # global start row of this output tile
    WQ = T5 + 5                      # quad-folded input-window rows
    slot = j % 2

    def window_copy(tile_j, s):
        start = tile_j * T5
        if T5 % 8 == 0:
            start = pl.multiple_of(start, 8)
        return pltpu.make_async_copy(
            x0_hbm.at[b, pl.ds(start, WQ), :], x0buf.at[s], sem.at[s])

    @pl.when(j == 0)                 # prime the per-batch-row window pipeline
    def _():
        window_copy(j, slot).start()

    window_copy(j, slot).wait()

    @pl.when(j + 1 < n_tiles)        # overlap next tile's window DMA with compute
    def _():
        window_copy(j + 1, 1 - slot).start()

    # Only the first tile (head pad) and tiles past j_tail (tail pad / ragged
    # end) can clip a layer window; interior tiles skip the masking entirely.
    needs_mask = (j == 0) | (j >= j_tail)

    def conv(taps, w_ref, bias_ref):
        x3 = taps[0] if len(taps) == 1 else jnp.concatenate(taps, axis=-1)
        w = w_ref[...]
        if w.dtype == jnp.bfloat16:              # bf16 MXU path, f32 accumulate
            x3 = x3.astype(jnp.bfloat16)
        acc = jnp.dot(x3, w, preferred_element_type=jnp.float32) + bias_ref[...]
        return acc * jax.nn.sigmoid(acc)         # SiLU in f32

    def mask_rows(ref, g_start, g_stride, valid_len):
        # Zero rows whose global index falls outside [0, valid_len); this
        # reproduces the zero padding seen by the next layer.
        n = ref.shape[0]
        rows = lax.broadcasted_iota(jnp.int32, (n, 1), 0) * g_stride + g_start
        ok = (rows >= 0) & (rows < valid_len)
        ref[...] = jnp.where(ok, ref[...], 0.0).astype(ref.dtype)

    # ---- conv1 (k=3, p=1, s=1): computed per output-row phase (row mod 4) so
    #      the stride-2 consumers below read contiguous rows, never strided.
    x0 = x0buf.at[slot]              # (WQ, 128): 4 positions x 32 ch per row
    P1 = T5 + 4
    p1_0[...] = conv([x0[pl.ds(0, P1), 0:96]], w1, b1).astype(p1_0.dtype)
    p1_1[...] = conv([x0[pl.ds(0, P1), 32:128]], w1, b1).astype(p1_1.dtype)
    p1_2[...] = conv([x0[pl.ds(0, P1), 64:128], x0[pl.ds(1, P1), 0:32]],
                     w1, b1).astype(p1_2.dtype)
    p1_3[...] = conv([x0[pl.ds(0, P1), 96:128], x0[pl.ds(1, P1), 0:64]],
                     w1, b1).astype(p1_3.dtype)
    # conv1 needs no boundary masking: out-of-range conv1 rows only feed conv2
    # rows that are themselves masked below.

    # ---- conv2 (k=3, p=0, s=2): even / odd output rows
    R2e, R2o = T5 + 4, T5 + 3
    b2e[...] = conv([p1_0[pl.ds(0, R2e), :], p1_1[pl.ds(0, R2e), :],
                     p1_2[pl.ds(0, R2e), :]], w2, b2).astype(b2e.dtype)
    b2o[...] = conv([p1_2[pl.ds(0, R2o), :], p1_3[pl.ds(0, R2o), :],
                     p1_0[pl.ds(1, R2o), :]], w2, b2).astype(b2o.dtype)

    @pl.when(needs_mask)
    def _():
        mask_rows(b2e, 2 * a5 - 4, 2, lens[2])
        mask_rows(b2o, 2 * a5 - 3, 2, lens[2])

    # ---- conv3 (k=3, p=1, s=1): even / odd output rows
    R3e, R3o = T5 + 3, T5 + 2
    b3e[...] = conv([b2e[pl.ds(0, R3e), :], b2o[pl.ds(0, R3e), :],
                     b2e[pl.ds(1, R3e), :]], w3, b3).astype(b3e.dtype)
    b3o[...] = conv([b2o[pl.ds(0, R3o), :], b2e[pl.ds(1, R3o), :],
                     b2o[pl.ds(1, R3o), :]], w3, b3).astype(b3o.dtype)

    @pl.when(needs_mask)
    def _():
        mask_rows(b3e, 2 * a5 - 3, 2, lens[3])
        mask_rows(b3o, 2 * a5 - 2, 2, lens[3])

    # ---- conv4 (k=3, p=1, s=2)
    R4 = T5 + 2
    b4f[...] = conv([b3e[pl.ds(0, R4), :], b3o[pl.ds(0, R4), :],
                     b3e[pl.ds(1, R4), :]], w4, b4).astype(b4f.dtype)

    @pl.when(needs_mask)
    def _():
        mask_rows(b4f, a5 - 1, 1, lens[4])

    # ---- conv5 (k=3, p=1, s=1) -> final output tile (no masking needed:
    #      rows past L5 land in the padded output region and are sliced off).
    y5 = conv([b4f[pl.ds(0, T5), :], b4f[pl.ds(1, T5), :], b4f[pl.ds(2, T5), :]],
              w5, b5)                                          # (T5, 256) f32
    if transpose_out:
        o_ref[0, :, :] = y5.T.astype(o_ref.dtype)              # NCW store in-kernel
    else:
        o_ref[0, :, :] = y5.astype(o_ref.dtype)


# ----------------------------------------------------------------------------
# Host-side glue + pallas_call wrapper
# ----------------------------------------------------------------------------
def _embed_channels_last(melody_idxs, table):
    # (B, 8, L) -> (B, L, 32); channel = e*4 + d, matching the PyTorch
    # permute(0,1,3,2).reshape(B, 32, L) ordering (but channels-last).
    B, eight, L = melody_idxs.shape
    emb = table[melody_idxs]                               # (B, 8, L, 4)
    return jnp.transpose(emb, (0, 2, 1, 3)).reshape(B, L, eight * 4)


@functools.partial(jax.jit, static_argnames=("tile_out", "use_bf16"))
def melody_extractor_stereo_forward(melody_idxs, params, *, tile_out=512,
                                    use_bf16=True):
    table = params["embed"]
    B, eight, L = melody_idxs.shape
    assert eight == 8
    lens = _layer_lengths(L)
    L5 = lens[5]
    assert L5 >= 1, "sequence too short for the conv stack"

    if L5 <= tile_out:
        T5, nL = L5, 1
    else:
        T5 = max(128, (tile_out // 128) * 128)     # lane-aligned for the NCW store
        nL = -(-L5 // T5)
    L5p = nL * T5
    transpose_out = (T5 % 128 == 0)                # in-kernel NCW transpose if aligned

    # First tile index whose layer windows can clip past the end of the data.
    j_tail = nL
    for jt in range(nL):
        a5 = jt * T5
        if ((2 * a5 + 2 * T5 + 2) >= lens[2] or (2 * a5 + 2 * T5 + 1) >= lens[3]
                or (a5 + T5) >= lens[4]):
            j_tail = jt
            break

    # Embedding gather stays as tiny XLA glue; the kernel consumes the embedded,
    # zero-padded input quad-folded to (B, Lp/4, 128) (a pure reshape: lane-dense
    # DMA windows, and 4-position folding for the phase-split conv1).
    # TODO(synk): an in-kernel gather of the 129x4 table is possible but not
    # worth the lowering risk for a 2 KB table.
    x0 = _embed_channels_last(melody_idxs, table)              # (B, L, 32) f32
    Lp = 4 * L5p + 20
    x0p = jnp.pad(x0, ((0, 0), (9, Lp - L - 9), (0, 0)))       # halo + tail zero pad
    x0q = x0p.reshape(B, Lp // 4, 128)

    wdt = jnp.bfloat16 if use_bf16 else jnp.float32
    flat_inputs = [x0q]
    in_specs = [pl.BlockSpec(memory_space=pl.ANY)]             # raw HBM, manual DMA
    for name, cin, cout, _, _ in _CONV_CFG:
        w, bias = params[name]
        flat_inputs += [w.reshape(3 * cin, cout).astype(wdt),
                        bias.reshape(1, cout).astype(jnp.float32)]
        in_specs += [pl.BlockSpec((3 * cin, cout), lambda bb, jj: (0, 0)),
                     pl.BlockSpec((1, cout), lambda bb, jj: (0, 0))]

    act_dt = jnp.float32
    scratch_shapes = [
        pltpu.VMEM((2, T5 + 5, 128), jnp.float32),   # double-buffered input window
        pltpu.VMEM((T5 + 4, 64), act_dt),            # conv1 phase 0 (rows 4q+0)
        pltpu.VMEM((T5 + 4, 64), act_dt),            # conv1 phase 1
        pltpu.VMEM((T5 + 4, 64), act_dt),            # conv1 phase 2
        pltpu.VMEM((T5 + 4, 64), act_dt),            # conv1 phase 3
        pltpu.VMEM((T5 + 4, 64), act_dt),            # conv2 even rows
        pltpu.VMEM((T5 + 3, 64), act_dt),            # conv2 odd rows
        pltpu.VMEM((T5 + 3, 128), act_dt),           # conv3 even rows
        pltpu.VMEM((T5 + 2, 128), act_dt),           # conv3 odd rows
        pltpu.VMEM((T5 + 2, 128), act_dt),           # conv4 window
        pltpu.SemaphoreType.DMA((2,)),
    ]

    if transpose_out:
        out_shape = jax.ShapeDtypeStruct((B, 256, L5p), jnp.float32)
        out_spec = pl.BlockSpec((1, 256, T5), lambda bb, jj: (bb, 0, jj))
    else:
        out_shape = jax.ShapeDtypeStruct((B, L5p, 256), jnp.float32)
        out_spec = pl.BlockSpec((1, T5, 256), lambda bb, jj: (bb, jj, 0))

    kernel = functools.partial(_fused_melody_kernel, T5=T5, lens=tuple(lens),
                               n_tiles=nL, j_tail=j_tail,
                               transpose_out=transpose_out)
    out = pl.pallas_call(
        kernel,
        out_shape=out_shape,
        grid=(B, nL),
        in_specs=in_specs,
        out_specs=out_spec,
        scratch_shapes=scratch_shapes,
        compiler_params=pltpu.CompilerParams(
            dimension_semantics=("parallel", "arbitrary")),
    )(*flat_inputs)

    if transpose_out:
        return out[:, :, :L5] if L5p != L5 else out
    out = out[:, :L5, :] if L5p != L5 else out
    return jnp.transpose(out, (0, 2, 1))


# ----------------------------------------------------------------------------
# Deterministic synthetic parameters (shapes from the module __init__)
# ----------------------------------------------------------------------------
def init_params(key):
    keys = jax.random.split(key, 11)
    params = {"embed": jax.random.normal(keys[0], (129, 4), jnp.float32)}
    for i, (name, cin, cout, _, _) in enumerate(_CONV_CFG):
        bound = 1.0 / np.sqrt(cin * 3)
        w = jax.random.uniform(keys[1 + 2 * i], (3, cin, cout), jnp.float32,
                               -bound, bound)
        b = jax.random.uniform(keys[2 + 2 * i], (cout,), jnp.float32,
                               -bound, bound)
        params[name] = (w, b)
    return params


# ----------------------------------------------------------------------------
# Pure-JAX reference (same semantics as the PyTorch forward) for validation
# ----------------------------------------------------------------------------
def reference_forward(melody_idxs, params):
    table = params["embed"]
    B, eight, L = melody_idxs.shape
    emb = table[melody_idxs]                               # (B, 8, L, 4)
    x = jnp.transpose(emb, (0, 1, 3, 2)).reshape(B, eight * 4, L)
    for name, cin, cout, stride, pad in _CONV_CFG:
        w, b = params[name]
        wt = jnp.transpose(w, (2, 1, 0))                   # (Cout, Cin, K)
        x = jax.lax.conv_general_dilated(
            x, wt, window_strides=(stride,), padding=[(pad, pad)],
            dimension_numbers=("NCH", "OIH", "NCH"),
            precision=lax.Precision.HIGHEST)
        x = x + b[None, :, None]
        x = jax.nn.silu(x)
    return x


if __name__ == "__main__":
    key = jax.random.PRNGKey(0)
    pkey, ikey1, ikey2 = jax.random.split(key, 3)
    params = init_params(pkey)

    # Small shape from the module spec: (B=2, 8, L=16), token ids in [0, 129).
    idx_small = jax.random.randint(ikey1, (2, 8, 16), 0, 129, dtype=jnp.int32)
    ref = jax.block_until_ready(reference_forward(idx_small, params))

    out_f32 = jax.block_until_ready(
        melody_extractor_stereo_forward(idx_small, params, use_bf16=False))
    assert out_f32.shape == ref.shape, (out_f32.shape, ref.shape)
    assert np.allclose(np.asarray(out_f32), np.asarray(ref), atol=1e-3, rtol=1e-3)

    out_bf16 = jax.block_until_ready(
        melody_extractor_stereo_forward(idx_small, params))       # bf16 default
    assert out_bf16.shape == ref.shape
    assert np.allclose(np.asarray(out_bf16), np.asarray(ref), atol=3e-2, rtol=3e-2)

    # Longer odd length with tile_out=128 to exercise the multi-tile path:
    # double-buffered window prefetch, boundary masking, ragged last tile and
    # the in-kernel NCW transpose.
    idx_big = jax.random.randint(ikey2, (2, 8, 530), 0, 129, dtype=jnp.int32)
    ref2 = jax.block_until_ready(reference_forward(idx_big, params))

    out2_f32 = jax.block_until_ready(
        melody_extractor_stereo_forward(idx_big, params, tile_out=128,
                                        use_bf16=False))
    assert out2_f32.shape == ref2.shape, (out2_f32.shape, ref2.shape)
    assert np.allclose(np.asarray(out2_f32), np.asarray(ref2), atol=1e-3, rtol=1e-3)

    out2_bf16 = jax.block_until_ready(
        melody_extractor_stereo_forward(idx_big, params, tile_out=128))
    assert out2_bf16.shape == ref2.shape
    assert np.allclose(np.asarray(out2_bf16), np.asarray(ref2), atol=3e-2, rtol=3e-2)

    print("KERNEL_OK")
</pallas_src>

<mosaic_0001>
module attributes {stable_mosaic.version = 11 : i64} {
  func.func @_fused_melody_kernel(%arg0: i32, %arg1: i32, %arg2: memref<2x9x128xf32, #tpu.memory_space<any>>, %arg3: memref<96x64xf32, #tpu.memory_space<vmem>>, %arg4: memref<1x64xf32, #tpu.memory_space<vmem>>, %arg5: memref<192x64xf32, #tpu.memory_space<vmem>>, %arg6: memref<1x64xf32, #tpu.memory_space<vmem>>, %arg7: memref<192x128xf32, #tpu.memory_space<vmem>>, %arg8: memref<1x128xf32, #tpu.memory_space<vmem>>, %arg9: memref<384x128xf32, #tpu.memory_space<vmem>>, %arg10: memref<1x128xf32, #tpu.memory_space<vmem>>, %arg11: memref<384x256xf32, #tpu.memory_space<vmem>>, %arg12: memref<1x256xf32, #tpu.memory_space<vmem>>, %arg13: memref<1x4x256xf32, #tpu.memory_space<vmem>>, %arg14: memref<2x9x128xf32, #tpu.memory_space<vmem>>, %arg15: memref<8x64xf32, #tpu.memory_space<vmem>>, %arg16: memref<8x64xf32, #tpu.memory_space<vmem>>, %arg17: memref<8x64xf32, #tpu.memory_space<vmem>>, %arg18: memref<8x64xf32, #tpu.memory_space<vmem>>, %arg19: memref<8x64xf32, #tpu.memory_space<vmem>>, %arg20: memref<7x64xf32, #tpu.memory_space<vmem>>, %arg21: memref<7x128xf32, #tpu.memory_space<vmem>>, %arg22: memref<6x128xf32, #tpu.memory_space<vmem>>, %arg23: memref<6x128xf32, #tpu.memory_space<vmem>>, %arg24: memref<2x!tpu.dma_semaphore, #tpu.memory_space<semaphore_mem>>) attributes {dimension_semantics = [#tpu.dimension_semantics<parallel>, #tpu.dimension_semantics<arbitrary>], iteration_bounds = array<i64: 2, 1>, scalar_prefetch = 0 : i64, scratch_operands = 11 : i64, tpu.core_type = #tpu.core_type<tc>, window_params = [{}, {pipeline_mode = #tpu.pipeline_mode<synchronous>, transform_indices = @transform_1, window_bounds = array<i64: 96, 64>}, {pipeline_mode = #tpu.pipeline_mode<synchronous>, transform_indices = @transform_2, window_bounds = array<i64: 1, 64>}, {pipeline_mode = #tpu.pipeline_mode<synchronous>, transform_indices = @transform_3, window_bounds = array<i64: 192, 64>}, {pipeline_mode = #tpu.pipeline_mode<synchronous>, transform_indices = @transform_4, window_bounds = array<i64: 1, 64>}, {pipeline_mode = #tpu.pipeline_mode<synchronous>, transform_indices = @transform_5, window_bounds = array<i64: 192, 128>}, {pipeline_mode = #tpu.pipeline_mode<synchronous>, transform_indices = @transform_6, window_bounds = array<i64: 1, 128>}, {pipeline_mode = #tpu.pipeline_mode<synchronous>, transform_indices = @transform_7, window_bounds = array<i64: 384, 128>}, {pipeline_mode = #tpu.pipeline_mode<synchronous>, transform_indices = @transform_8, window_bounds = array<i64: 1, 128>}, {pipeline_mode = #tpu.pipeline_mode<synchronous>, transform_indices = @transform_9, window_bounds = array<i64: 384, 256>}, {pipeline_mode = #tpu.pipeline_mode<synchronous>, transform_indices = @transform_10, window_bounds = array<i64: 1, 256>}, {transform_indices = @transform_11, window_bounds = array<i64: 1, 4, 256>}]} {
    %c4_i32 = arith.constant 4 : i32
    %0 = arith.muli %arg1, %c4_i32 : i32
    %c2_i32 = arith.constant 2 : i32
    %c0_i32 = arith.constant 0 : i32
    %1 = arith.cmpi eq, %c2_i32, %c0_i32 : i32
    %c1_i32 = arith.constant 1 : i32
    %2 = arith.select %1, %c1_i32, %c2_i32 : i32
    %3 = arith.remsi %arg1, %2 : i32
    %c0_i32_0 = arith.constant 0 : i32
    %4 = arith.cmpi ne, %3, %c0_i32_0 : i32
    %c0_i32_1 = arith.constant 0 : i32
    %5 = arith.cmpi slt, %3, %c0_i32_1 : i32
    %c0_i32_2 = arith.constant 0 : i32
    %6 = arith.cmpi slt, %2, %c0_i32_2 : i32
    %7 = arith.xori %5, %6 : i1
    %8 = arith.andi %7, %4 : i1
    %9 = arith.addi %3, %2 : i32
    %10 = arith.select %8, %9, %3 : i32
    %c0_i32_3 = arith.constant 0 : i32
    %11 = arith.cmpi eq, %arg1, %c0_i32_3 : i32
    %12 = arith.extui %11 : i1 to i32
    %c0_i32_4 = arith.constant 0 : i32
    %13 = arith.cmpi ne, %12, %c0_i32_4 : i32
    scf.if %13 {
      %c4_i32_151 = arith.constant 4 : i32
      %200 = arith.muli %arg1, %c4_i32_151 : i32
      %c0_i32_152 = arith.constant 0 : i32
      %201 = tpu.memref_slice %arg2[%arg0, %200, %c0_i32_152] : memref<2x9x128xf32, #tpu.memory_space<any>> -> memref<1x9x128xf32, #tpu.memory_space<any>>
      %202 = tpu.memref_squeeze %201 : memref<1x9x128xf32, #tpu.memory_space<any>> -> memref<9x128xf32, #tpu.memory_space<any>>
      %c0_i32_153 = arith.constant 0 : i32
      %c0_i32_154 = arith.constant 0 : i32
      %203 = tpu.memref_slice %arg14[%10, %c0_i32_153, %c0_i32_154] : memref<2x9x128xf32, #tpu.memory_space<vmem>> -> memref<1x9x128xf32, #tpu.memory_space<vmem>>
      %204 = tpu.memref_squeeze %203 : memref<1x9x128xf32, #tpu.memory_space<vmem>> -> memref<9x128xf32, #tpu.memory_space<vmem>>
      %205 = tpu.memref_slice %arg24[%10] : memref<2x!tpu.dma_semaphore, #tpu.memory_space<semaphore_mem>> -> memref<1x!tpu.dma_semaphore, #tpu.memory_space<semaphore_mem>>
      %206 = tpu.memref_squeeze %205 : memref<1x!tpu.dma_semaphore, #tpu.memory_space<semaphore_mem>> -> memref<!tpu.dma_semaphore, #tpu.memory_space<semaphore_mem>>
      tpu.enqueue_dma source(%202 : memref<9x128xf32, #tpu.memory_space<any>>) target(%204 : memref<9x128xf32, #tpu.memory_space<vmem>>) target_semaphore(%206 : memref<!tpu.dma_semaphore, #tpu.memory_space<semaphore_mem>>)
    } else {
    }
    %c4_i32_5 = arith.constant 4 : i32
    %14 = arith.muli %arg1, %c4_i32_5 : i32
    %c0_i32_6 = arith.constant 0 : i32
    %15 = tpu.memref_slice %arg2[%arg0, %14, %c0_i32_6] : memref<2x9x128xf32, #tpu.memory_space<any>> -> memref<1x9x128xf32, #tpu.memory_space<any>>
    %16 = tpu.memref_squeeze %15 : memref<1x9x128xf32, #tpu.memory_space<any>> -> memref<9x128xf32, #tpu.memory_space<any>>
    %c0_i32_7 = arith.constant 0 : i32
    %c0_i32_8 = arith.constant 0 : i32
    %17 = tpu.memref_slice %arg14[%10, %c0_i32_7, %c0_i32_8] : memref<2x9x128xf32, #tpu.memory_space<vmem>> -> memref<1x9x128xf32, #tpu.memory_space<vmem>>
    %18 = tpu.memref_squeeze %17 : memref<1x9x128xf32, #tpu.memory_space<vmem>> -> memref<9x128xf32, #tpu.memory_space<vmem>>
    %19 = tpu.memref_slice %arg24[%10] : memref<2x!tpu.dma_semaphore, #tpu.memory_space<semaphore_mem>> -> memref<1x!tpu.dma_semaphore, #tpu.memory_space<semaphore_mem>>
    %20 = tpu.memref_squeeze %19 : memref<1x!tpu.dma_semaphore, #tpu.memory_space<semaphore_mem>> -> memref<!tpu.dma_semaphore, #tpu.memory_space<semaphore_mem>>
    tpu.wait_dma2 semaphore(%20 : memref<!tpu.dma_semaphore, #tpu.memory_space<semaphore_mem>>) src(%16 : memref<9x128xf32, #tpu.memory_space<any>>) dst(%18 : memref<9x128xf32, #tpu.memory_space<vmem>>)
    %c1_i32_9 = arith.constant 1 : i32
    %21 = arith.addi %arg1, %c1_i32_9 : i32
    %c1_i32_10 = arith.constant 1 : i32
    %22 = arith.cmpi slt, %21, %c1_i32_10 : i32
    %23 = arith.extui %22 : i1 to i32
    %c0_i32_11 = arith.constant 0 : i32
    %24 = arith.cmpi ne, %23, %c0_i32_11 : i32
    scf.if %24 {
      %c1_i32_151 = arith.constant 1 : i32
      %200 = arith.addi %arg1, %c1_i32_151 : i32
      %c1_i32_152 = arith.constant 1 : i32
      %201 = arith.subi %c1_i32_152, %10 : i32
      %c4_i32_153 = arith.constant 4 : i32
      %202 = arith.muli %200, %c4_i32_153 : i32
      %c0_i32_154 = arith.constant 0 : i32
      %203 = tpu.memref_slice %arg2[%arg0, %202, %c0_i32_154] : memref<2x9x128xf32, #tpu.memory_space<any>> -> memref<1x9x128xf32, #tpu.memory_space<any>>
      %204 = tpu.memref_squeeze %203 : memref<1x9x128xf32, #tpu.memory_space<any>> -> memref<9x128xf32, #tpu.memory_space<any>>
      %c0_i32_155 = arith.constant 0 : i32
      %c0_i32_156 = arith.constant 0 : i32
      %205 = tpu.memref_slice %arg14[%201, %c0_i32_155, %c0_i32_156] : memref<2x9x128xf32, #tpu.memory_space<vmem>> -> memref<1x9x128xf32, #tpu.memory_space<vmem>>
      %206 = tpu.memref_squeeze %205 : memref<1x9x128xf32, #tpu.memory_space<vmem>> -> memref<9x128xf32, #tpu.memory_space<vmem>>
      %207 = tpu.memref_slice %arg24[%201] : memref<2x!tpu.dma_semaphore, #tpu.memory_space<semaphore_mem>> -> memref<1x!tpu.dma_semaphore, #tpu.memory_space<semaphore_mem>>
      %208 = tpu.memref_squeeze %207 : memref<1x!tpu.dma_semaphore, #tpu.memory_space<semaphore_mem>> -> memref<!tpu.dma_semaphore, #tpu.memory_space<semaphore_mem>>
      tpu.enqueue_dma source(%204 : memref<9x128xf32, #tpu.memory_space<any>>) target(%206 : memref<9x128xf32, #tpu.memory_space<vmem>>) target_semaphore(%208 : memref<!tpu.dma_semaphore, #tpu.memory_space<semaphore_mem>>)
    } else {
    }
    %c0_i32_12 = arith.constant 0 : i32
    %25 = arith.cmpi eq, %arg1, %c0_i32_12 : i32
    %c0_i32_13 = arith.constant 0 : i32
    %26 = arith.cmpi sge, %arg1, %c0_i32_13 : i32
    %27 = arith.ori %25, %26 : i1
    %c0_i32_14 = arith.constant 0 : i32
    %c0_i32_15 = arith.constant 0 : i32
    %28 = tpu.memref_slice %arg14[%10, %c0_i32_14, %c0_i32_15] : memref<2x9x128xf32, #tpu.memory_space<vmem>> -> memref<1x9x128xf32, #tpu.memory_space<vmem>>
    %29 = tpu.memref_squeeze %28 : memref<1x9x128xf32, #tpu.memory_space<vmem>> -> memref<9x128xf32, #tpu.memory_space<vmem>>
    %c0 = arith.constant 0 : index
    %c0_16 = arith.constant 0 : index
    %30 = vector.load %29[%c0, %c0_16] : memref<9x128xf32, #tpu.memory_space<vmem>>, vector<8x96xf32>
    %c0_17 = arith.constant 0 : index
    %c0_18 = arith.constant 0 : index
    %31 = vector.load %arg3[%c0_17, %c0_18] : memref<96x64xf32, #tpu.memory_space<vmem>>, vector<96x64xf32>
    %cst = arith.constant dense<0.000000e+00> : vector<8x64xf32>
    %32 = tpu.matmul %30, %31, %cst {dimension_numbers = #tpu.dot_dimension_numbers<[1], [0], [0], [1], [0, 0, 1, 1], [], []>} : vector<8x96xf32>, vector<96x64xf32>, vector<8x64xf32> -> vector<8x64xf32>
    %c0_19 = arith.constant 0 : index
    %c0_20 = arith.constant 0 : index
    %33 = vector.load %arg4[%c0_19, %c0_20] : memref<1x64xf32, #tpu.memory_space<vmem>>, vector<1x64xf32>
    %34 = vector.broadcast %33 : vector<1x64xf32> to vector<8x64xf32>
    %35 = arith.addf %32, %34 : vector<8x64xf32>
    %36 = arith.negf %35 : vector<8x64xf32>
    %37 = math.exp %36 : vector<8x64xf32>
    %cst_21 = arith.constant 1.000000e+00 : f32
    %38 = vector.broadcast %cst_21 : f32 to vector<8x64xf32>
    %39 = arith.addf %38, %37 : vector<8x64xf32>
    %40 = arith.divf %38, %39 : vector<8x64xf32>
    %41 = arith.mulf %35, %40 : vector<8x64xf32>
    %c0_22 = arith.constant 0 : index
    %c0_23 = arith.constant 0 : index
    %42 = vector.load %arg15[%c0_22, %c0_23] : memref<8x64xf32, #tpu.memory_space<vmem>>, vector<8x64xf32>
    tpu.vector_store %arg15[%c0_22, %c0_23], %41 {strides = array<i32>} : memref<8x64xf32, #tpu.memory_space<vmem>>, vector<8x64xf32>,
    %c0_i32_24 = arith.constant 0 : i32
    %c0_i32_25 = arith.constant 0 : i32
    %43 = tpu.memref_slice %arg14[%10, %c0_i32_24, %c0_i32_25] : memref<2x9x128xf32, #tpu.memory_space<vmem>> -> memref<1x9x128xf32, #tpu.memory_space<vmem>>
    %44 = tpu.memref_squeeze %43 : memref<1x9x128xf32, #tpu.memory_space<vmem>> -> memref<9x128xf32, #tpu.memory_space<vmem>>
    %c0_26 = arith.constant 0 : index
    %c32 = arith.constant 32 : index
    %45 = vector.load %44[%c0_26, %c32] : memref<9x128xf32, #tpu.memory_space<vmem>>, vector<8x96xf32>
    %c0_27 = arith.constant 0 : index
    %c0_28 = arith.constant 0 : index
    %46 = vector.load %arg3[%c0_27, %c0_28] : memref<96x64xf32, #tpu.memory_space<vmem>>, vector<96x64xf32>
    %cst_29 = arith.constant dense<0.000000e+00> : vector<8x64xf32>
    %47 = tpu.matmul %45, %46, %cst_29 {dimension_numbers = #tpu.dot_dimension_numbers<[1], [0], [0], [1], [0, 0, 1, 1], [], []>} : vector<8x96xf32>, vector<96x64xf32>, vector<8x64xf32> -> vector<8x64xf32>
    %c0_30 = arith.constant 0 : index
    %c0_31 = arith.constant 0 : index
    %48 = vector.load %arg4[%c0_30, %c0_31] : memref<1x64xf32, #tpu.memory_space<vmem>>, vector<1x64xf32>
    %49 = vector.broadcast %48 : vector<1x64xf32> to vector<8x64xf32>
    %50 = arith.addf %47, %49 : vector<8x64xf32>
    %51 = arith.negf %50 : vector<8x64xf32>
    %52 = math.exp %51 : vector<8x64xf32>
    %cst_32 = arith.constant 1.000000e+00 : f32
    %53 = vector.broadcast %cst_32 : f32 to vector<8x64xf32>
    %54 = arith.addf %53, %52 : vector<8x64xf32>
    %55 = arith.divf %53, %54 : vector<8x64xf32>
    %56 = arith.mulf %50, %55 : vector<8x64xf32>
    %c0_33 = arith.constant 0 : index
    %c0_34 = arith.constant 0 : index
    %57 = vector.load %arg16[%c0_33, %c0_34] : memref<8x64xf32, #tpu.memory_space<vmem>>, vector<8x64xf32>
    tpu.vector_store %arg16[%c0_33, %c0_34], %56 {strides = array<i32>} : memref<8x64xf32, #tpu.memory_space<vmem>>, vector<8x64xf32>,
    %c0_i32_35 = arith.constant 0 : i32
    %c0_i32_36 = arith.constant 0 : i32
    %58 = tpu.memref_slice %arg14[%10, %c0_i32_35, %c0_i32_36] : memref<2x9x128xf32, #tpu.memory_space<vmem>> -> memref<1x9x128xf32, #tpu.memory_space<vmem>>
    %59 = tpu.memref_squeeze %58 : memref<1x9x128xf32, #tpu.memory_space<vmem>> -> memref<9x128xf32, #tpu.memory_space<vmem>>
    %c0_37 = arith.constant 0 : index
    %c64 = arith.constant 64 : index
    %60 = vector.load %59[%c0_37, %c64] : memref<9x128xf32, #tpu.memory_space<vmem>>, vector<8x64xf32>
    %c0_i32_38 = arith.constant 0 : i32
    %c0_i32_39 = arith.constant 0 : i32
    %61 = tpu.memref_slice %arg14[%10, %c0_i32_38, %c0_i32_39] : memref<2x9x128xf32, #tpu.memory_space<vmem>> -> memref<1x9x128xf32, #tpu.memory_space<vmem>>
    %62 = tpu.memref_squeeze %61 : memref<1x9x128xf32, #tpu.memory_space<vmem>> -> memref<9x128xf32, #tpu.memory_space<vmem>>
    %c1 = arith.constant 1 : index
    %c0_40 = arith.constant 0 : index
    %63 = vector.load %62[%c1, %c0_40] : memref<9x128xf32, #tpu.memory_space<vmem>>, vector<8x32xf32>
    %64 = tpu.concatenate %60, %63 in 1 : vector<8x64xf32>, vector<8x32xf32> -> vector<8x96xf32>
    %c0_41 = arith.constant 0 : index
    %c0_42 = arith.constant 0 : index
    %65 = vector.load %arg3[%c0_41, %c0_42] : memref<96x64xf32, #tpu.memory_space<vmem>>, vector<96x64xf32>
    %cst_43 = arith.constant dense<0.000000e+00> : vector<8x64xf32>
    %66 = tpu.matmul %64, %65, %cst_43 {dimension_numbers = #tpu.dot_dimension_numbers<[1], [0], [0], [1], [0, 0, 1, 1], [], []>} : vector<8x96xf32>, vector<96x64xf32>, vector<8x64xf32> -> vector<8x64xf32>
    %c0_44 = arith.constant 0 : index
    %c0_45 = arith.constant 0 : index
    %67 = vector.load %arg4[%c0_44, %c0_45] : memref<1x64xf32, #tpu.memory_space<vmem>>, vector<1x64xf32>
    %68 = vector.broadcast %67 : vector<1x64xf32> to vector<8x64xf32>
    %69 = arith.addf %66, %68 : vector<8x64xf32>
    %70 = arith.negf %69 : vector<8x64xf32>
    %71 = math.exp %70 : vector<8x64xf32>
    %cst_46 = arith.constant 1.000000e+00 : f32
    %72 = vector.broadcast %cst_46 : f32 to vector<8x64xf32>
    %73 = arith.addf %72, %71 : vector<8x64xf32>
    %74 = arith.divf %72, %73 : vector<8x64xf32>
    %75 = arith.mulf %69, %74 : vector<8x64xf32>
    %c0_47 = arith.constant 0 : index
    %c0_48 = arith.constant 0 : index
    %76 = vector.load %arg17[%c0_47, %c0_48] : memref<8x64xf32, #tpu.memory_space<vmem>>, vector<8x64xf32>
    tpu.vector_store %arg17[%c0_47, %c0_48], %75 {strides = array<i32>} : memref<8x64xf32, #tpu.memory_space<vmem>>, vector<8x64xf32>,
    %c0_i32_49 = arith.constant 0 : i32
    %c0_i32_50 = arith.constant 0 : i32
    %77 = tpu.memref_slice %arg14[%10, %c0_i32_49, %c0_i32_50] : memref<2x9x128xf32, #tpu.memory_space<vmem>> -> memref<1x9x128xf32, #tpu.memory_space<vmem>>
    %78 = tpu.memref_squeeze %77 : memref<1x9x128xf32, #tpu.memory_space<vmem>> -> memref<9x128xf32, #tpu.memory_space<vmem>>
    %c0_51 = arith.constant 0 : index
    %c96 = arith.constant 96 : index
    %79 = vector.load %78[%c0_51, %c96] : memref<9x128xf32, #tpu.memory_space<vmem>>, vector<8x32xf32>
    %c0_i32_52 = arith.constant 0 : i32
    %c0_i32_53 = arith.constant 0 : i32
    %80 = tpu.memref_slice %arg14[%10, %c0_i32_52, %c0_i32_53] : memref<2x9x128xf32, #tpu.memory_space<vmem>> -> memref<1x9x128xf32, #tpu.memory_space<vmem>>
    %81 = tpu.memref_squeeze %80 : memref<1x9x128xf32, #tpu.memory_space<vmem>> -> memref<9x128xf32, #tpu.memory_space<vmem>>
    %c1_54 = arith.constant 1 : index
    %c0_55 = arith.constant 0 : index
    %82 = vector.load %81[%c1_54, %c0_55] : memref<9x128xf32, #tpu.memory_space<vmem>>, vector<8x64xf32>
    %83 = tpu.concatenate %79, %82 in 1 : vector<8x32xf32>, vector<8x64xf32> -> vector<8x96xf32>
    %c0_56 = arith.constant 0 : index
    %c0_57 = arith.constant 0 : index
    %84 = vector.load %arg3[%c0_56, %c0_57] : memref<96x64xf32, #tpu.memory_space<vmem>>, vector<96x64xf32>
    %cst_58 = arith.constant dense<0.000000e+00> : vector<8x64xf32>
    %85 = tpu.matmul %83, %84, %cst_58 {dimension_numbers = #tpu.dot_dimension_numbers<[1], [0], [0], [1], [0, 0, 1, 1], [], []>} : vector<8x96xf32>, vector<96x64xf32>, vector<8x64xf32> -> vector<8x64xf32>
    %c0_59 = arith.constant 0 : index
    %c0_60 = arith.constant 0 : index
    %86 = vector.load %arg4[%c0_59, %c0_60] : memref<1x64xf32, #tpu.memory_space<vmem>>, vector<1x64xf32>
    %87 = vector.broadcast %86 : vector<1x64xf32> to vector<8x64xf32>
    %88 = arith.addf %85, %87 : vector<8x64xf32>
    %89 = arith.negf %88 : vector<8x64xf32>
    %90 = math.exp %89 : vector<8x64xf32>
    %cst_61 = arith.constant 1.000000e+00 : f32
    %91 = vector.broadcast %cst_61 : f32 to vector<8x64xf32>
    %92 = arith.addf %91, %90 : vector<8x64xf32>
    %93 = arith.divf %91, %92 : vector<8x64xf32>
    %94 = arith.mulf %88, %93 : vector<8x64xf32>
    %c0_62 = arith.constant 0 : index
    %c0_63 = arith.constant 0 : index
    %95 = vector.load %arg18[%c0_62, %c0_63] : memref<8x64xf32, #tpu.memory_space<vmem>>, vector<8x64xf32>
    tpu.vector_store %arg18[%c0_62, %c0_63], %94 {strides = array<i32>} : memref<8x64xf32, #tpu.memory_space<vmem>>, vector<8x64xf32>,
    %c0_64 = arith.constant 0 : index
    %c0_65 = arith.constant 0 : index
    %96 = vector.load %arg15[%c0_64, %c0_65] : memref<8x64xf32, #tpu.memory_space<vmem>>, vector<8x64xf32>
    %c0_66 = arith.constant 0 : index
    %c0_67 = arith.constant 0 : index
    %97 = vector.load %arg16[%c0_66, %c0_67] : memref<8x64xf32, #tpu.memory_space<vmem>>, vector<8x64xf32>
    %c0_68 = arith.constant 0 : index
    %c0_69 = arith.constant 0 : index
    %98 = vector.load %arg17[%c0_68, %c0_69] : memref<8x64xf32, #tpu.memory_space<vmem>>, vector<8x64xf32>
    %99 = tpu.concatenate %96, %97, %98 in 1 : vector<8x64xf32>, vector<8x64xf32>, vector<8x64xf32> -> vector<8x192xf32>
    %c0_70 = arith.constant 0 : index
    %c0_71 = arith.constant 0 : index
    %100 = vector.load %arg5[%c0_70, %c0_71] : memref<192x64xf32, #tpu.memory_space<vmem>>, vector<192x64xf32>
    %cst_72 = arith.constant dense<0.000000e+00> : vector<8x64xf32>
    %101 = tpu.matmul %99, %100, %cst_72 {dimension_numbers = #tpu.dot_dimension_numbers<[1], [0], [0], [1], [0, 0, 1, 1], [], []>} : vector<8x192xf32>, vector<192x64xf32>, vector<8x64xf32> -> vector<8x64xf32>
    %c0_73 = arith.constant 0 : index
    %c0_74 = arith.constant 0 : index
    %102 = vector.load %arg6[%c0_73, %c0_74] : memref<1x64xf32, #tpu.memory_space<vmem>>, vector<1x64xf32>
    %103 = vector.broadcast %102 : vector<1x64xf32> to vector<8x64xf32>
    %104 = arith.addf %101, %103 : vector<8x64xf32>
    %105 = arith.negf %104 : vector<8x64xf32>
    %106 = math.exp %105 : vector<8x64xf32>
    %cst_75 = arith.constant 1.000000e+00 : f32
    %107 = vector.broadcast %cst_75 : f32 to vector<8x64xf32>
    %108 = arith.addf %107, %106 : vector<8x64xf32>
    %109 = arith.divf %107, %108 : vector<8x64xf32>
    %110 = arith.mulf %104, %109 : vector<8x64xf32>
    %c0_76 = arith.constant 0 : index
    %c0_77 = arith.constant 0 : index
    %111 = vector.load %arg19[%c0_76, %c0_77] : memref<8x64xf32, #tpu.memory_space<vmem>>, vector<8x64xf32>
    tpu.vector_store %arg19[%c0_76, %c0_77], %110 {strides = array<i32>} : memref<8x64xf32, #tpu.memory_space<vmem>>, vector<8x64xf32>,
    %c0_78 = arith.constant 0 : index
    %c0_79 = arith.constant 0 : index
    %112 = vector.load %arg17[%c0_78, %c0_79] : memref<8x64xf32, #tpu.memory_space<vmem>>, vector<7x64xf32>
    %c0_80 = arith.constant 0 : index
    %c0_81 = arith.constant 0 : index
    %113 = vector.load %arg18[%c0_80, %c0_81] : memref<8x64xf32, #tpu.memory_space<vmem>>, vector<7x64xf32>
    %c1_82 = arith.constant 1 : index
    %c0_83 = arith.constant 0 : index
    %114 = vector.load %arg15[%c1_82, %c0_83] : memref<8x64xf32, #tpu.memory_space<vmem>>, vector<7x64xf32>
    %115 = tpu.concatenate %112, %113, %114 in 1 : vector<7x64xf32>, vector<7x64xf32>, vector<7x64xf32> -> vector<7x192xf32>
    %c0_84 = arith.constant 0 : index
    %c0_85 = arith.constant 0 : index
    %116 = vector.load %arg5[%c0_84, %c0_85] : memref<192x64xf32, #tpu.memory_space<vmem>>, vector<192x64xf32>
    %cst_86 = arith.constant dense<0.000000e+00> : vector<7x64xf32>
    %117 = tpu.matmul %115, %116, %cst_86 {dimension_numbers = #tpu.dot_dimension_numbers<[1], [0], [0], [1], [0, 0, 1, 1], [], []>} : vector<7x192xf32>, vector<192x64xf32>, vector<7x64xf32> -> vector<7x64xf32>
    %c0_87 = arith.constant 0 : index
    %c0_88 = arith.constant 0 : index
    %118 = vector.load %arg6[%c0_87, %c0_88] : memref<1x64xf32, #tpu.memory_space<vmem>>, vector<1x64xf32>
    %119 = vector.broadcast %118 : vector<1x64xf32> to vector<7x64xf32>
    %120 = arith.addf %117, %119 : vector<7x64xf32>
    %121 = arith.negf %120 : vector<7x64xf32>
    %122 = math.exp %121 : vector<7x64xf32>
    %cst_89 = arith.constant 1.000000e+00 : f32
    %123 = vector.broadcast %cst_89 : f32 to vector<7x64xf32>
    %124 = arith.addf %123, %122 : vector<7x64xf32>
    %125 = arith.divf %123, %124 : vector<7x64xf32>
    %126 = arith.mulf %120, %125 : vector<7x64xf32>
    %c0_90 = arith.constant 0 : index
    %c0_91 = arith.constant 0 : index
    %127 = vector.load %arg20[%c0_90, %c0_91] : memref<7x64xf32, #tpu.memory_space<vmem>>, vector<7x64xf32>
    tpu.vector_store %arg20[%c0_90, %c0_91], %126 {strides = array<i32>} : memref<7x64xf32, #tpu.memory_space<vmem>>, vector<7x64xf32>,
    %128 = arith.extui %27 : i1 to i32
    %c0_i32_92 = arith.constant 0 : i32
    %129 = arith.cmpi ne, %128, %c0_i32_92 : i32
    scf.if %129 {
      %c2_i32_151 = arith.constant 2 : i32
      %200 = arith.muli %c2_i32_151, %0 : i32
      %c4_i32_152 = arith.constant 4 : i32
      %201 = arith.subi %200, %c4_i32_152 : i32
      %202 = tpu.iota {dimensions = array<i32: 0>} : vector<8x1xi32>
      %c2_i32_153 = arith.constant 2 : i32
      %203 = vector.broadcast %c2_i32_153 : i32 to vector<8x1xi32>
      %204 = arith.muli %202, %203 : vector<8x1xi32>
      %205 = vector.broadcast %201 : i32 to vector<8x1xi32>
      %206 = arith.addi %204, %205 : vector<8x1xi32>
      %c0_i32_154 = arith.constant 0 : i32
      %207 = vector.broadcast %c0_i32_154 : i32 to vector<8x1xi32>
      %208 = arith.cmpi sge, %206, %207 : vector<8x1xi32>
      %c7_i32 = arith.constant 7 : i32
      %209 = vector.broadcast %c7_i32 : i32 to vector<8x1xi32>
      %210 = arith.cmpi slt, %206, %209 : vector<8x1xi32>
      %211 = arith.andi %208, %210 : vector<8x1xi1>
      %c0_155 = arith.constant 0 : index
      %c0_156 = arith.constant 0 : index
      %212 = vector.load %arg19[%c0_155, %c0_156] : memref<8x64xf32, #tpu.memory_space<vmem>>, vector<8x64xf32>
      %cst_157 = arith.constant 0.000000e+00 : f32
      %213 = vector.shape_cast %211 : vector<8x1xi1> to vector<8x1xi1>
      %214 = vector.broadcast %213 : vector<8x1xi1> to vector<8x64xi1>
      %215 = vector.broadcast %cst_157 : f32 to vector<8x64xf32>
      %216 = arith.select %214, %212, %215 : vector<8x64xi1>, vector<8x64xf32>
      %c0_158 = arith.constant 0 : index
      %c0_159 = arith.constant 0 : index
      %217 = vector.load %arg19[%c0_158, %c0_159] : memref<8x64xf32, #tpu.memory_space<vmem>>, vector<8x64xf32>
      tpu.vector_store %arg19[%c0_158, %c0_159], %216 {strides = array<i32>} : memref<8x64xf32, #tpu.memory_space<vmem>>, vector<8x64xf32>,
      %c2_i32_160 = arith.constant 2 : i32
      %218 = arith.muli %c2_i32_160, %0 : i32
      %c3_i32 = arith.constant 3 : i32
      %219 = arith.subi %218, %c3_i32 : i32
      %220 = tpu.iota {dimensions = array<i32: 0>} : vector<7x1xi32>
      %c2_i32_161 = arith.constant 2 : i32
      %221 = vector.broadcast %c2_i32_161 : i32 to vector<7x1xi32>
      %222 = arith.muli %220, %221 : vector<7x1xi32>
      %223 = vector.broadcast %219 : i32 to vector<7x1xi32>
      %224 = arith.addi %222, %223 : vector<7x1xi32>
      %c0_i32_162 = arith.constant 0 : i32
      %225 = vector.broadcast %c0_i32_162 : i32 to vector<7x1xi32>
      %226 = arith.cmpi sge, %224, %225 : vector<7x1xi32>
      %c7_i32_163 = arith.constant 7 : i32
      %227 = vector.broadcast %c7_i32_163 : i32 to vector<7x1xi32>
      %228 = arith.cmpi slt, %224, %227 : vector<7x1xi32>
      %229 = arith.andi %226, %228 : vector<7x1xi1>
      %c0_164 = arith.constant 0 : index
      %c0_165 = arith.constant 0 : index
      %230 = vector.load %arg20[%c0_164, %c0_165] : memref<7x64xf32, #tpu.memory_space<vmem>>, vector<7x64xf32>
      %cst_166 = arith.constant 0.000000e+00 : f32
      %231 = vector.shape_cast %229 : vector<7x1xi1> to vector<7x1xi1>
      %232 = vector.broadcast %231 : vector<7x1xi1> to vector<7x64xi1>
      %233 = vector.broadcast %cst_166 : f32 to vector<7x64xf32>
      %234 = arith.select %232, %230, %233 : vector<7x64xi1>, vector<7x64xf32>
      %c0_167 = arith.constant 0 : index
      %c0_168 = arith.constant 0 : index
      %235 = vector.load %arg20[%c0_167, %c0_168] : memref<7x64xf32, #tpu.memory_space<vmem>>, vector<7x64xf32>
      tpu.vector_store %arg20[%c0_167, %c0_168], %234 {strides = array<i32>} : memref<7x64xf32, #tpu.memory_space<vmem>>, vector<7x64xf32>,
    } else {
    }
    %c0_93 = arith.constant 0 : index
    %c0_94 = arith.constant 0 : index
    %130 = vector.load %arg19[%c0_93, %c0_94] : memref<8x64xf32, #tpu.memory_space<vmem>>, vector<7x64xf32>
    %c0_95 = arith.constant 0 : index
    %c0_96 = arith.constant 0 : index
    %131 = vector.load %arg20[%c0_95, %c0_96] : memref<7x64xf32, #tpu.memory_space<vmem>>, vector<7x64xf32>
    %c1_97 = arith.constant 1 : index
    %c0_98 = arith.constant 0 : index
    %132 = vector.load %arg19[%c1_97, %c0_98] : memref<8x64xf32, #tpu.memory_space<vmem>>, vector<7x64xf32>
    %133 = tpu.concatenate %130, %131, %132 in 1 : vector<7x64xf32>, vector<7x64xf32>, vector<7x64xf32> -> vector<7x192xf32>
    %c0_99 = arith.constant 0 : index
    %c0_100 = arith.constant 0 : index
    %134 = vector.load %arg7[%c0_99, %c0_100] : memref<192x128xf32, #tpu.memory_space<vmem>>, vector<192x128xf32>
    %cst_101 = arith.constant dense<0.000000e+00> : vector<7x128xf32>
    %135 = tpu.matmul %133, %134, %cst_101 {dimension_numbers = #tpu.dot_dimension_numbers<[1], [0], [0], [1], [0, 0, 1, 1], [], []>} : vector<7x192xf32>, vector<192x128xf32>, vector<7x128xf32> -> vector<7x128xf32>
    %c0_102 = arith.constant 0 : index
    %c0_103 = arith.constant 0 : index
    %136 = vector.load %arg8[%c0_102, %c0_103] : memref<1x128xf32, #tpu.memory_space<vmem>>, vector<1x128xf32>
    %137 = vector.broadcast %136 : vector<1x128xf32> to vector<7x128xf32>
    %138 = arith.addf %135, %137 : vector<7x128xf32>
    %139 = arith.negf %138 : vector<7x128xf32>
    %140 = math.exp %139 : vector<7x128xf32>
    %cst_104 = arith.constant 1.000000e+00 : f32
    %141 = vector.broadcast %cst_104 : f32 to vector<7x128xf32>
    %142 = arith.addf %141, %140 : vector<7x128xf32>
    %143 = arith.divf %141, %142 : vector<7x128xf32>
    %144 = arith.mulf %138, %143 : vector<7x128xf32>
    %c0_105 = arith.constant 0 : index
    %c0_106 = arith.constant 0 : index
    %145 = vector.load %arg21[%c0_105, %c0_106] : memref<7x128xf32, #tpu.memory_space<vmem>>, vector<7x128xf32>
    tpu.vector_store %arg21[%c0_105, %c0_106], %144 {strides = array<i32>} : memref<7x128xf32, #tpu.memory_space<vmem>>, vector<7x128xf32>,
    %c0_107 = arith.constant 0 : index
    %c0_108 = arith.constant 0 : index
    %146 = vector.load %arg20[%c0_107, %c0_108] : memref<7x64xf32, #tpu.memory_space<vmem>>, vector<6x64xf32>
    %c1_109 = arith.constant 1 : index
    %c0_110 = arith.constant 0 : index
    %147 = vector.load %arg19[%c1_109, %c0_110] : memref<8x64xf32, #tpu.memory_space<vmem>>, vector<6x64xf32>
    %c1_111 = arith.constant 1 : index
    %c0_112 = arith.constant 0 : index
    %148 = vector.load %arg20[%c1_111, %c0_112] : memref<7x64xf32, #tpu.memory_space<vmem>>, vector<6x64xf32>
    %149 = tpu.concatenate %146, %147, %148 in 1 : vector<6x64xf32>, vector<6x64xf32>, vector<6x64xf32> -> vector<6x192xf32>
    %c0_113 = arith.constant 0 : index
    %c0_114 = arith.constant 0 : index
    %150 = vector.load %arg7[%c0_113, %c0_114] : memref<192x128xf32, #tpu.memory_space<vmem>>, vector<192x128xf32>
    %cst_115 = arith.constant dense<0.000000e+00> : vector<6x128xf32>
    %151 = tpu.matmul %149, %150, %cst_115 {dimension_numbers = #tpu.dot_dimension_numbers<[1], [0], [0], [1], [0, 0, 1, 1], [], []>} : vector<6x192xf32>, vector<192x128xf32>, vector<6x128xf32> -> vector<6x128xf32>
    %c0_116 = arith.constant 0 : index
    %c0_117 = arith.constant 0 : index
    %152 = vector.load %arg8[%c0_116, %c0_117] : memref<1x128xf32, #tpu.memory_space<vmem>>, vector<1x128xf32>
    %153 = vector.broadcast %152 : vector<1x128xf32> to vector<6x128xf32>
    %154 = arith.addf %151, %153 : vector<6x128xf32>
    %155 = arith.negf %154 : vector<6x128xf32>
    %156 = math.exp %155 : vector<6x128xf32>
    %cst_118 = arith.constant 1.000000e+00 : f32
    %157 = vector.broadcast %cst_118 : f32 to vector<6x128xf32>
    %158 = arith.addf %157, %156 : vector<6x128xf32>
    %159 = arith.divf %157, %158 : vector<6x128xf32>
    %160 = arith.mulf %154, %159 : vector<6x128xf32>
    %c0_119 = arith.constant 0 : index
    %c0_120 = arith.constant 0 : index
    %161 = vector.load %arg22[%c0_119, %c0_120] : memref<6x128xf32, #tpu.memory_space<vmem>>, vector<6x128xf32>
    tpu.vector_store %arg22[%c0_119, %c0_120], %160 {strides = array<i32>} : memref<6x128xf32, #tpu.memory_space<vmem>>, vector<6x128xf32>,
    %162 = arith.extui %27 : i1 to i32
    %c0_i32_121 = arith.constant 0 : i32
    %163 = arith.cmpi ne, %162, %c0_i32_121 : i32
    scf.if %163 {
      %c2_i32_151 = arith.constant 2 : i32
      %200 = arith.muli %c2_i32_151, %0 : i32
      %c3_i32 = arith.constant 3 : i32
      %201 = arith.subi %200, %c3_i32 : i32
      %202 = tpu.iota {dimensions = array<i32: 0>} : vector<7x1xi32>
      %c2_i32_152 = arith.constant 2 : i32
      %203 = vector.broadcast %c2_i32_152 : i32 to vector<7x1xi32>
      %204 = arith.muli %202, %203 : vector<7x1xi32>
      %205 = vector.broadcast %201 : i32 to vector<7x1xi32>
      %206 = arith.addi %204, %205 : vector<7x1xi32>
      %c0_i32_153 = arith.constant 0 : i32
      %207 = vector.broadcast %c0_i32_153 : i32 to vector<7x1xi32>
      %208 = arith.cmpi sge, %206, %207 : vector<7x1xi32>
      %c7_i32 = arith.constant 7 : i32
      %209 = vector.broadcast %c7_i32 : i32 to vector<7x1xi32>
      %210 = arith.cmpi slt, %206, %209 : vector<7x1xi32>
      %211 = arith.andi %208, %210 : vector<7x1xi1>
      %c0_154 = arith.constant 0 : index
      %c0_155 = arith.constant 0 : index
      %212 = vector.load %arg21[%c0_154, %c0_155] : memref<7x128xf32, #tpu.memory_space<vmem>>, vector<7x128xf32>
      %cst_156 = arith.constant 0.000000e+00 : f32
      %213 = vector.shape_cast %211 : vector<7x1xi1> to vector<7x1xi1>
      %214 = vector.broadcast %213 : vector<7x1xi1> to vector<7x128xi1>
      %215 = vector.broadcast %cst_156 : f32 to vector<7x128xf32>
      %216 = arith.select %214, %212, %215 : vector<7x128xi1>, vector<7x128xf32>
      %c0_157 = arith.constant 0 : index
      %c0_158 = arith.constant 0 : index
      %217 = vector.load %arg21[%c0_157, %c0_158] : memref<7x128xf32, #tpu.memory_space<vmem>>, vector<7x128xf32>
      tpu.vector_store %arg21[%c0_157, %c0_158], %216 {strides = array<i32>} : memref<7x128xf32, #tpu.memory_space<vmem>>, vector<7x128xf32>,
      %c2_i32_159 = arith.constant 2 : i32
      %218 = arith.muli %c2_i32_159, %0 : i32
      %c2_i32_160 = arith.constant 2 : i32
      %219 = arith.subi %218, %c2_i32_160 : i32
      %220 = tpu.iota {dimensions = array<i32: 0>} : vector<6x1xi32>
      %c2_i32_161 = arith.constant 2 : i32
      %221 = vector.broadcast %c2_i32_161 : i32 to vector<6x1xi32>
      %222 = arith.muli %220, %221 : vector<6x1xi32>
      %223 = vector.broadcast %219 : i32 to vector<6x1xi32>
      %224 = arith.addi %222, %223 : vector<6x1xi32>
      %c0_i32_162 = arith.constant 0 : i32
      %225 = vector.broadcast %c0_i32_162 : i32 to vector<6x1xi32>
      %226 = arith.cmpi sge, %224, %225 : vector<6x1xi32>
      %c7_i32_163 = arith.constant 7 : i32
      %227 = vector.broadcast %c7_i32_163 : i32 to vector<6x1xi32>
      %228 = arith.cmpi slt, %224, %227 : vector<6x1xi32>
      %229 = arith.andi %226, %228 : vector<6x1xi1>
      %c0_164 = arith.constant 0 : index
      %c0_165 = arith.constant 0 : index
      %230 = vector.load %arg22[%c0_164, %c0_165] : memref<6x128xf32, #tpu.memory_space<vmem>>, vector<6x128xf32>
      %cst_166 = arith.constant 0.000000e+00 : f32
      %231 = vector.shape_cast %229 : vector<6x1xi1> to vector<6x1xi1>
      %232 = vector.broadcast %231 : vector<6x1xi1> to vector<6x128xi1>
      %233 = vector.broadcast %cst_166 : f32 to vector<6x128xf32>
      %234 = arith.select %232, %230, %233 : vector<6x128xi1>, vector<6x128xf32>
      %c0_167 = arith.constant 0 : index
      %c0_168 = arith.constant 0 : index
      %235 = vector.load %arg22[%c0_167, %c0_168] : memref<6x128xf32, #tpu.memory_space<vmem>>, vector<6x128xf32>
      tpu.vector_store %arg22[%c0_167, %c0_168], %234 {strides = array<i32>} : memref<6x128xf32, #tpu.memory_space<vmem>>, vector<6x128xf32>,
    } else {
    }
    %c0_122 = arith.constant 0 : index
    %c0_123 = arith.constant 0 : index
    %164 = vector.load %arg21[%c0_122, %c0_123] : memref<7x128xf32, #tpu.memory_space<vmem>>, vector<6x128xf32>
    %c0_124 = arith.constant 0 : index
    %c0_125 = arith.constant 0 : index
    %165 = vector.load %arg22[%c0_124, %c0_125] : memref<6x128xf32, #tpu.memory_space<vmem>>, vector<6x128xf32>
    %c1_126 = arith.constant 1 : index
    %c0_127 = arith.constant 0 : index
    %166 = vector.load %arg21[%c1_126, %c0_127] : memref<7x128xf32, #tpu.memory_space<vmem>>, vector<6x128xf32>
    %167 = tpu.concatenate %164, %165, %166 in 1 : vector<6x128xf32>, vector<6x128xf32>, vector<6x128xf32> -> vector<6x384xf32>
    %c0_128 = arith.constant 0 : index
    %c0_129 = arith.constant 0 : index
    %168 = vector.load %arg9[%c0_128, %c0_129] : memref<384x128xf32, #tpu.memory_space<vmem>>, vector<384x128xf32>
    %cst_130 = arith.constant dense<0.000000e+00> : vector<6x128xf32>
    %169 = tpu.matmul %167, %168, %cst_130 {dimension_numbers = #tpu.dot_dimension_numbers<[1], [0], [0], [1], [0, 0, 1, 1], [], []>} : vector<6x384xf32>, vector<384x128xf32>, vector<6x128xf32> -> vector<6x128xf32>
    %c0_131 = arith.constant 0 : index
    %c0_132 = arith.constant 0 : index
    %170 = vector.load %arg10[%c0_131, %c0_132] : memref<1x128xf32, #tpu.memory_space<vmem>>, vector<1x128xf32>
    %171 = vector.broadcast %170 : vector<1x128xf32> to vector<6x128xf32>
    %172 = arith.addf %169, %171 : vector<6x128xf32>
    %173 = arith.negf %172 : vector<6x128xf32>
    %174 = math.exp %173 : vector<6x128xf32>
    %cst_133 = arith.constant 1.000000e+00 : f32
    %175 = vector.broadcast %cst_133 : f32 to vector<6x128xf32>
    %176 = arith.addf %175, %174 : vector<6x128xf32>
    %177 = arith.divf %175, %176 : vector<6x128xf32>
    %178 = arith.mulf %172, %177 : vector<6x128xf32>
    %c0_134 = arith.constant 0 : index
    %c0_135 = arith.constant 0 : index
    %179 = vector.load %arg23[%c0_134, %c0_135] : memref<6x128xf32, #tpu.memory_space<vmem>>, vector<6x128xf32>
    tpu.vector_store %arg23[%c0_134, %c0_135], %178 {strides = array<i32>} : memref<6x128xf32, #tpu.memory_space<vmem>>, vector<6x128xf32>,
    %180 = arith.extui %27 : i1 to i32
    %c0_i32_136 = arith.constant 0 : i32
    %181 = arith.cmpi ne, %180, %c0_i32_136 : i32
    scf.if %181 {
      %c1_i32_151 = arith.constant 1 : i32
      %200 = arith.subi %0, %c1_i32_151 : i32
      %201 = tpu.iota {dimensions = array<i32: 0>} : vector<6x1xi32>
      %c1_i32_152 = arith.constant 1 : i32
      %202 = vector.broadcast %c1_i32_152 : i32 to vector<6x1xi32>
      %203 = arith.muli %201, %202 : vector<6x1xi32>
      %204 = vector.broadcast %200 : i32 to vector<6x1xi32>
      %205 = arith.addi %203, %204 : vector<6x1xi32>
      %c0_i32_153 = arith.constant 0 : i32
      %206 = vector.broadcast %c0_i32_153 : i32 to vector<6x1xi32>
      %207 = arith.cmpi sge, %205, %206 : vector<6x1xi32>
      %c4_i32_154 = arith.constant 4 : i32
      %208 = vector.broadcast %c4_i32_154 : i32 to vector<6x1xi32>
      %209 = arith.cmpi slt, %205, %208 : vector<6x1xi32>
      %210 = arith.andi %207, %209 : vector<6x1xi1>
      %c0_155 = arith.constant 0 : index
      %c0_156 = arith.constant 0 : index
      %211 = vector.load %arg23[%c0_155, %c0_156] : memref<6x128xf32, #tpu.memory_space<vmem>>, vector<6x128xf32>
      %cst_157 = arith.constant 0.000000e+00 : f32
      %212 = vector.shape_cast %210 : vector<6x1xi1> to vector<6x1xi1>
      %213 = vector.broadcast %212 : vector<6x1xi1> to vector<6x128xi1>
      %214 = vector.broadcast %cst_157 : f32 to vector<6x128xf32>
      %215 = arith.select %213, %211, %214 : vector<6x128xi1>, vector<6x128xf32>
      %c0_158 = arith.constant 0 : index
      %c0_159 = arith.constant 0 : index
      %216 = vector.load %arg23[%c0_158, %c0_159] : memref<6x128xf32, #tpu.memory_space<vmem>>, vector<6x128xf32>
      tpu.vector_store %arg23[%c0_158, %c0_159], %215 {strides = array<i32>} : memref<6x128xf32, #tpu.memory_space<vmem>>, vector<6x128xf32>,
    } else {
    }
    %c0_137 = arith.constant 0 : index
    %c0_138 = arith.constant 0 : index
    %182 = vector.load %arg23[%c0_137, %c0_138] : memref<6x128xf32, #tpu.memory_space<vmem>>, vector<4x128xf32>
    %c1_139 = arith.constant 1 : index
    %c0_140 = arith.constant 0 : index
    %183 = vector.load %arg23[%c1_139, %c0_140] : memref<6x128xf32, #tpu.memory_space<vmem>>, vector<4x128xf32>
    %c2 = arith.constant 2 : index
    %c0_141 = arith.constant 0 : index
    %184 = vector.load %arg23[%c2, %c0_141] : memref<6x128xf32, #tpu.memory_space<vmem>>, vector<4x128xf32>
    %185 = tpu.concatenate %182, %183, %184 in 1 : vector<4x128xf32>, vector<4x128xf32>, vector<4x128xf32> -> vector<4x384xf32>
    %c0_142 = arith.constant 0 : index
    %c0_143 = arith.constant 0 : index
    %186 = vector.load %arg11[%c0_142, %c0_143] : memref<384x256xf32, #tpu.memory_space<vmem>>, vector<384x256xf32>
    %cst_144 = arith.constant dense<0.000000e+00> : vector<4x256xf32>
    %187 = tpu.matmul %185, %186, %cst_144 {dimension_numbers = #tpu.dot_dimension_numbers<[1], [0], [0], [1], [0, 0, 1, 1], [], []>} : vector<4x384xf32>, vector<384x256xf32>, vector<4x256xf32> -> vector<4x256xf32>
    %c0_145 = arith.constant 0 : index
    %c0_146 = arith.constant 0 : index
    %188 = vector.load %arg12[%c0_145, %c0_146] : memref<1x256xf32, #tpu.memory_space<vmem>>, vector<1x256xf32>
    %189 = vector.broadcast %188 : vector<1x256xf32> to vector<4x256xf32>
    %190 = arith.addf %187, %189 : vector<4x256xf32>
    %191 = arith.negf %190 : vector<4x256xf32>
    %192 = math.exp %191 : vector<4x256xf32>
    %cst_147 = arith.constant 1.000000e+00 : f32
    %193 = vector.broadcast %cst_147 : f32 to vector<4x256xf32>
    %194 = arith.addf %193, %192 : vector<4x256xf32>
    %195 = arith.divf %193, %194 : vector<4x256xf32>
    %196 = arith.mulf %190, %195 : vector<4x256xf32>
    %c0_148 = arith.constant 0 : index
    %c0_149 = arith.constant 0 : index
    %c0_150 = arith.constant 0 : index
    %197 = vector.load %arg13[%c0_148, %c0_149, %c0_150] : memref<1x4x256xf32, #tpu.memory_space<vmem>>, vector<1x4x256xf32>
    %198 = vector.shape_cast %197 : vector<1x4x256xf32> to vector<4x256xf32>
    %199 = vector.shape_cast %196 : vector<4x256xf32> to vector<1x4x256xf32>
    tpu.vector_store %arg13[%c0_148, %c0_149, %c0_150], %199 {strides = array<i32>} : memref<1x4x256xf32, #tpu.memory_space<vmem>>, vector<1x4x256xf32>,
    return
  }
  func.func @transform_1(%arg0: i32, %arg1: i32) -> (i32, i32) {
    %c0_i32 = arith.constant 0 : i32
    %c0_i32_0 = arith.constant 0 : i32
    %c0_i32_1 = arith.constant 0 : i32
    return %c0_i32, %c0_i32_0 : i32, i32
  }
  func.func @transform_2(%arg0: i32, %arg1: i32) -> (i32, i32) {
    %c0_i32 = arith.constant 0 : i32
    %c0_i32_0 = arith.constant 0 : i32
    %c0_i32_1 = arith.constant 0 : i32
    return %c0_i32, %c0_i32_0 : i32, i32
  }
  func.func @transform_3(%arg0: i32, %arg1: i32) -> (i32, i32) {
    %c0_i32 = arith.constant 0 : i32
    %c0_i32_0 = arith.constant 0 : i32
    %c0_i32_1 = arith.constant 0 : i32
    return %c0_i32, %c0_i32_0 : i32, i32
  }
  func.func @transform_4(%arg0: i32, %arg1: i32) -> (i32, i32) {
    %c0_i32 = arith.constant 0 : i32
    %c0_i32_0 = arith.constant 0 : i32
    %c0_i32_1 = arith.constant 0 : i32
    return %c0_i32, %c0_i32_0 : i32, i32
  }
  func.func @transform_5(%arg0: i32, %arg1: i32) -> (i32, i32) {
    %c0_i32 = arith.constant 0 : i32
    %c0_i32_0 = arith.constant 0 : i32
    %c0_i32_1 = arith.constant 0 : i32
    return %c0_i32, %c0_i32_0 : i32, i32
  }
  func.func @transform_6(%arg0: i32, %arg1: i32) -> (i32, i32) {
    %c0_i32 = arith.constant 0 : i32
    %c0_i32_0 = arith.constant 0 : i32
    %c0_i32_1 = arith.constant 0 : i32
    return %c0_i32, %c0_i32_0 : i32, i32
  }
  func.func @transform_7(%arg0: i32, %arg1: i32) -> (i32, i32) {
    %c0_i32 = arith.constant 0 : i32
    %c0_i32_0 = arith.constant 0 : i32
    %c0_i32_1 = arith.constant 0 : i32
    return %c0_i32, %c0_i32_0 : i32, i32
  }
  func.func @transform_8(%arg0: i32, %arg1: i32) -> (i32, i32) {
    %c0_i32 = arith.constant 0 : i32
    %c0_i32_0 = arith.constant 0 : i32
    %c0_i32_1 = arith.constant 0 : i32
    return %c0_i32, %c0_i32_0 : i32, i32
  }
  func.func @transform_9(%arg0: i32, %arg1: i32) -> (i32, i32) {
    %c0_i32 = arith.constant 0 : i32
    %c0_i32_0 = arith.constant 0 : i32
    %c0_i32_1 = arith.constant 0 : i32
    return %c0_i32, %c0_i32_0 : i32, i32
  }
  func.func @transform_10(%arg0: i32, %arg1: i32) -> (i32, i32) {
    %c0_i32 = arith.constant 0 : i32
    %c0_i32_0 = arith.constant 0 : i32
    %c0_i32_1 = arith.constant 0 : i32
    return %c0_i32, %c0_i32_0 : i32, i32
  }
  func.func @transform_11(%arg0: i32, %arg1: i32) -> (i32, i32, i32) {
    %c0_i32 = arith.constant 0 : i32
    %c0_i32_0 = arith.constant 0 : i32
    return %arg0, %arg1, %c0_i32 : i32, i32, i32
  }
}

</mosaic_0001>

<llo_original>
// kernel: melody_extractor_stereo_forward.1
$region0: #{melody_extractor_stereo_forward.1}
  #allocation0 [shape = 'u32[]', space=smem, size = 0x4, offset = 0x4, fixed_abs, tag = 'smem constant byte address 0x4 - core index']
  #allocation1 [shape = 'u32[144,128]{1,0:T(1,128)}', space=vmem, size = 0x12000, scoped, tag = 'internal scratch']
  #allocation2 [shape = 'f32[2,9,128]{2,1,0:T(8,128)}', space=vmem, size = 0x4000, scoped, tag = 'scratch operand']
  #allocation3 [shape = 'f32[8,64]{1,0:T(8,128)}', space=vmem, size = 0x1000, scoped, tag = 'scratch operand']
  #allocation4 [shape = 'f32[8,64]{1,0:T(8,128)}', space=vmem, size = 0x1000, scoped, tag = 'scratch operand']
  #allocation5 [shape = 'f32[8,64]{1,0:T(8,128)}', space=vmem, size = 0x1000, scoped, tag = 'scratch operand']
  #allocation6 [shape = 'f32[8,64]{1,0:T(8,128)}', space=vmem, size = 0x1000, scoped, tag = 'scratch operand']
  #allocation7 [shape = 'f32[8,64]{1,0:T(8,128)}', space=vmem, size = 0x1000, scoped, tag = 'scratch operand']
  #allocation8 [shape = 'f32[7,64]{1,0:T(8,128)}', space=vmem, size = 0x1000, scoped, tag = 'scratch operand']
  #allocation9 [shape = 'f32[7,128]{1,0:T(8,128)}', space=vmem, size = 0x1000, scoped, tag = 'scratch operand']
  #allocation10 [shape = 'f32[6,128]{1,0:T(8,128)}', space=vmem, size = 0x1000, scoped, tag = 'scratch operand']
  #allocation11 [shape = 'f32[6,128]{1,0:T(8,128)}', space=vmem, size = 0x1000, scoped, tag = 'scratch operand']
  #allocation12 [shape = 's32[2]{0}', space=sflag, size = 0x8, scoped, tag = 'scratch operand']
  #allocation15 [shape = 's32[]', space=sflag, size = 0x4, offset = 0, fixed_abs, tag = 'sflag constant byte address 0x0 - dummy sync flag']
  #allocation16 [shape = 's32[]', space=sflag, size = 0x4, offset = 0, fixed_abs, tag = 'sflag constant byte address 0x0 - dummy sync flag']
  %s0 = inlined_call_operand.vmem [shape: f32[2,9,128], index: 0, kind: input, shape index: {}]
  %s1 = inlined_call_operand.vmem [shape: f32[96,64], index: 1, kind: input, shape index: {}]
  %s2 = inlined_call_operand.vmem [shape: f32[1,64], index: 2, kind: input, shape index: {}]
  %s3 = inlined_call_operand.vmem [shape: f32[192,64], index: 3, kind: input, shape index: {}]
  %s4 = inlined_call_operand.vmem [shape: f32[1,64], index: 4, kind: input, shape index: {}]
  %s5 = inlined_call_operand.vmem [shape: f32[192,128], index: 5, kind: input, shape index: {}]
  %s6 = inlined_call_operand.vmem [shape: f32[1,128], index: 6, kind: input, shape index: {}]
  %s7 = inlined_call_operand.vmem [shape: f32[384,128], index: 7, kind: input, shape index: {}]
  %s8 = inlined_call_operand.vmem [shape: f32[1,128], index: 8, kind: input, shape index: {}]
  %s9 = inlined_call_operand.vmem [shape: f32[384,256], index: 9, kind: input, shape index: {}]
  %s10 = inlined_call_operand.vmem [shape: f32[1,256], index: 10, kind: input, shape index: {}]
  %s11 = inlined_call_operand.hbm [shape: f32[2,4,256], index: 11, kind: output, shape index: {}]
  %s12 = sld [smem:[#allocation0]]
  $region167: #{melody_extractor_stereo_forward.1} parent=0
    _
  %s14 = ssub.s32 1, %s12
  %s15 = scalar_select 0, %s14, %s12
  $region1: #{melody_extractor_stereo_forward.1} parent=0
    #allocation13 [shape = 'u8[8192]{0}', space=vmem, size = 0x2000, scoped, tag = 'output window, operand 0']
    #allocation14 [shape = 's32[2]{0}', space=sflag, size = 0x8, scoped, tag = 'scoped memory for melody_extractor_stereo_forward.1']
    %16 = vsyncpa [#allocation14], 0
    %s17 = scalar_lea.sflag [#allocation14], 1
    %18 = vsyncpa %s17, 0
    loop: start=0, step=1, limit=4
    $region2: #{melody_extractor_stereo_forward.1} parent=1 // loop_pre_header
      _
    $region3: #{melody_extractor_stereo_forward.1} parent=1 // loop_header
      %s20 = sphi 0, %s24
      %p21 = scmp.ge.s32.totalorder %s20, 4
      %s27 = sphi 0, %s39
      %s28 = sphi 0, %s35
      %s29 = sphi 0, %s27
      %s30 = sphi 0, %s28
      %s31 = sphi 0, %s29
      %s32 = sphi 0, %s30
      %s40 = sphi 0, %s40
      %s42 = sphi 0, %s40
      %s43 = sphi 0, %s42
      %s57 = sphi 0, %s43
      %s61 = sphi 0, %s61
      %s63 = sphi 0, %s61
      %s64 = sphi 0, %s63
      %s78 = sphi 0, %s64
      %s82 = sphi 0, %s82
      %s84 = sphi 0, %s82
      %s85 = sphi 0, %s84
      %s99 = sphi 0, %s85
      %s103 = sphi 0, %s103
      %s105 = sphi 0, %s103
      %s106 = sphi 0, %s105
      %s120 = sphi 0, %s106
      %s124 = sphi 0, %s124
      %s126 = sphi 0, %s124
      %s127 = sphi 0, %s126
      %s141 = sphi 0, %s127
      %s145 = sphi 0, %s145
      %s147 = sphi 0, %s145
      %s148 = sphi 0, %s147
      %s162 = sphi 0, %s148
      %s166 = sphi 0, %s166
      %s168 = sphi 0, %s166
      %s169 = sphi 0, %s168
      %s183 = sphi 0, %s169
      %s187 = sphi 0, %s187
      %s189 = sphi 0, %s187
      %s190 = sphi 0, %s189
      %s204 = sphi 0, %s190
      %s208 = sphi 0, %s208
      %s210 = sphi 0, %s208
      %s211 = sphi 0, %s210
      %s225 = sphi 0, %s211
      %s229 = sphi 0, %s229
      %s231 = sphi 0, %s229
      %s232 = sphi 0, %s231
      %s246 = sphi 0, %s232
      %s254 = sphi 0, %s256
      %s257 = sphi 0, %s254
      %s258 = sphi 0, %s257
      %s274 = sphi 0, %s258
    $region4: #{melody_extractor_stereo_forward.1} parent=1 // loop_header_branch
      %23 = sbr.rel (%p21) target = $region8
    $region5: #{melody_extractor_stereo_forward.1} parent=1 // loop_body
      %s25 = ssub.s32 %s20, 1
      %s26 = ssub.s32 %s20, 2
      %s33 = sadd.s32 1, %s28
      %p34 = scmp.ge.s32.totalorder %s33, 1
      %s35 = scalar_select %p34, 0, %s33
      %s36 = sadd.s32 1, %s27
      %s37 = scalar_select %p34, %s36, %s27
      %p38 = scmp.ge.s32.totalorder %s37, 2
      %s39 = scalar_select %p38, 0, %s37
      %s41 = sadd.s32 %s40, 1
      %p44 = scmp.eq.s32.totalorder %s20, 1
      %p45 = scmp.ne.s32.totalorder %s40, %s42
      %p46 = scmp.eq.s32.totalorder %s20, 0
      %p47 = por %p45, %p46
      %p48 = scmp.ne.s32.totalorder %s40, %s42
      %p49 = scmp.eq.s32.totalorder %s25, 1
      %p50 = por %p48, %p49
      %p51 = scmp.ne.s32.totalorder %s42, %s43
      %p52 = scmp.eq.s32.totalorder %s25, 0
      %p53 = por %p51, %p52
      %p54 = scmp.ne.s32.totalorder %s42, %s43
      %p55 = scmp.eq.s32.totalorder %s26, 1
      %p56 = por %p54, %p55
      %p58 = scmp.ne.s32.totalorder %s43, %s57
      %p59 = scmp.eq.s32.totalorder %s26, 0
      %p60 = por %p58, %p59
      %s62 = sadd.s32 %s61, 1
      %p65 = scmp.eq.s32.totalorder %s20, 1
      %p66 = scmp.ne.s32.totalorder %s61, %s63
      %p67 = scmp.eq.s32.totalorder %s20, 0
      %p68 = por %p66, %p67
      %p69 = scmp.ne.s32.totalorder %s61, %s63
      %p70 = scmp.eq.s32.totalorder %s25, 1
      %p71 = por %p69, %p70
      %p72 = scmp.ne.s32.totalorder %s63, %s64
      %p73 = scmp.eq.s32.totalorder %s25, 0
      %p74 = por %p72, %p73
      %p75 = scmp.ne.s32.totalorder %s63, %s64
      %p76 = scmp.eq.s32.totalorder %s26, 1
      %p77 = por %p75, %p76
      %p79 = scmp.ne.s32.totalorder %s64, %s78
      %p80 = scmp.eq.s32.totalorder %s26, 0
      %p81 = por %p79, %p80
      %s83 = sadd.s32 %s82, 1
      %p86 = scmp.eq.s32.totalorder %s20, 1
      %p87 = scmp.ne.s32.totalorder %s82, %s84
      %p88 = scmp.eq.s32.totalorder %s20, 0
      %p89 = por %p87, %p88
      %p90 = scmp.ne.s32.totalorder %s82, %s84
      %p91 = scmp.eq.s32.totalorder %s25, 1
      %p92 = por %p90, %p91
      %p93 = scmp.ne.s32.totalorder %s84, %s85
      %p94 = scmp.eq.s32.totalorder %s25, 0
      %p95 = por %p93, %p94
      %p96 = scmp.ne.s32.totalorder %s84, %s85
      %p97 = scmp.eq.s32.totalorder %s26, 1
      %p98 = por %p96, %p97
      %p100 = scmp.ne.s32.totalorder %s85, %s99
      %p101 = scmp.eq.s32.totalorder %s26, 0
      %p102 = por %p100, %p101
      %s104 = sadd.s32 %s103, 1
      %p107 = scmp.eq.s32.totalorder %s20, 1
      %p108 = scmp.ne.s32.totalorder %s103, %s105
      %p109 = scmp.eq.s32.totalorder %s20, 0
      %p110 = por %p108, %p109
      %p111 = scmp.ne.s32.totalorder %s103, %s105
      %p112 = scmp.eq.s32.totalorder %s25, 1
      %p113 = por %p111, %p112
      %p114 = scmp.ne.s32.totalorder %s105, %s106
      %p115 = scmp.eq.s32.totalorder %s25, 0
      %p116 = por %p114, %p115
      %p117 = scmp.ne.s32.totalorder %s105, %s106
      %p118 = scmp.eq.s32.totalorder %s26, 1
      %p119 = por %p117, %p118
      %p121 = scmp.ne.s32.totalorder %s106, %s120
      %p122 = scmp.eq.s32.totalorder %s26, 0
      %p123 = por %p121, %p122
      %s125 = sadd.s32 %s124, 1
      %p128 = scmp.eq.s32.totalorder %s20, 1
      %p129 = scmp.ne.s32.totalorder %s124, %s126
      %p130 = scmp.eq.s32.totalorder %s20, 0
      %p131 = por %p129, %p130
      %p132 = scmp.ne.s32.totalorder %s124, %s126
      %p133 = scmp.eq.s32.totalorder %s25, 1
      %p134 = por %p132, %p133
      %p135 = scmp.ne.s32.totalorder %s126, %s127
      %p136 = scmp.eq.s32.totalorder %s25, 0
      %p137 = por %p135, %p136
      %p138 = scmp.ne.s32.totalorder %s126, %s127
      %p139 = scmp.eq.s32.totalorder %s26, 1
      %p140 = por %p138, %p139
      %p142 = scmp.ne.s32.totalorder %s127, %s141
      %p143 = scmp.eq.s32.totalorder %s26, 0
      %p144 = por %p142, %p143
      %s146 = sadd.s32 %s145, 1
      %p149 = scmp.eq.s32.totalorder %s20, 1
      %p150 = scmp.ne.s32.totalorder %s145, %s147
      %p151 = scmp.eq.s32.totalorder %s20, 0
      %p152 = por %p150, %p151
      %p153 = scmp.ne.s32.totalorder %s145, %s147
      %p154 = scmp.eq.s32.totalorder %s25, 1
      %p155 = por %p153, %p154
      %p156 = scmp.ne.s32.totalorder %s147, %s148
      %p157 = scmp.eq.s32.totalorder %s25, 0
      %p158 = por %p156, %p157
      %p159 = scmp.ne.s32.totalorder %s147, %s148
      %p160 = scmp.eq.s32.totalorder %s26, 1
      %p161 = por %p159, %p160
      %p163 = scmp.ne.s32.totalorder %s148, %s162
      %p164 = scmp.eq.s32.totalorder %s26, 0
      %p165 = por %p163, %p164
      %s167 = sadd.s32 %s166, 1
      %p170 = scmp.eq.s32.totalorder %s20, 1
      %p171 = scmp.ne.s32.totalorder %s166, %s168
      %p172 = scmp.eq.s32.totalorder %s20, 0
      %p173 = por %p171, %p172
      %p174 = scmp.ne.s32.totalorder %s166, %s168
      %p175 = scmp.eq.s32.totalorder %s25, 1
      %p176 = por %p174, %p175
      %p177 = scmp.ne.s32.totalorder %s168, %s169
      %p178 = scmp.eq.s32.totalorder %s25, 0
      %p179 = por %p177, %p178
      %p180 = scmp.ne.s32.totalorder %s168, %s169
      %p181 = scmp.eq.s32.totalorder %s26, 1
      %p182 = por %p180, %p181
      %p184 = scmp.ne.s32.totalorder %s169, %s183
      %p185 = scmp.eq.s32.totalorder %s26, 0
      %p186 = por %p184, %p185
      %s188 = sadd.s32 %s187, 1
      %p191 = scmp.eq.s32.totalorder %s20, 1
      %p192 = scmp.ne.s32.totalorder %s187, %s189
      %p193 = scmp.eq.s32.totalorder %s20, 0
      %p194 = por %p192, %p193
      %p195 = scmp.ne.s32.totalorder %s187, %s189
      %p196 = scmp.eq.s32.totalorder %s25, 1
      %p197 = por %p195, %p196
      %p198 = scmp.ne.s32.totalorder %s189, %s190
      %p199 = scmp.eq.s32.totalorder %s25, 0
      %p200 = por %p198, %p199
      %p201 = scmp.ne.s32.totalorder %s189, %s190
      %p202 = scmp.eq.s32.totalorder %s26, 1
      %p203 = por %p201, %p202
      %p205 = scmp.ne.s32.totalorder %s190, %s204
      %p206 = scmp.eq.s32.totalorder %s26, 0
      %p207 = por %p205, %p206
      %s209 = sadd.s32 %s208, 1
      %p212 = scmp.eq.s32.totalorder %s20, 1
      %p213 = scmp.ne.s32.totalorder %s208, %s210
      %p214 = scmp.eq.s32.totalorder %s20, 0
      %p215 = por %p213, %p214
      %p216 = scmp.ne.s32.totalorder %s208, %s210
      %p217 = scmp.eq.s32.totalorder %s25, 1
      %p218 = por %p216, %p217
      %p219 = scmp.ne.s32.totalorder %s210, %s211
      %p220 = scmp.eq.s32.totalorder %s25, 0
      %p221 = por %p219, %p220
      %p222 = scmp.ne.s32.totalorder %s210, %s211
      %p223 = scmp.eq.s32.totalorder %s26, 1
      %p224 = por %p222, %p223
      %p226 = scmp.ne.s32.totalorder %s211, %s225
      %p227 = scmp.eq.s32.totalorder %s26, 0
      %p228 = por %p226, %p227
      %s230 = sadd.s32 %s229, 1
      %p233 = scmp.eq.s32.totalorder %s20, 1
      %p234 = scmp.ne.s32.totalorder %s229, %s231
      %p235 = scmp.eq.s32.totalorder %s20, 0
      %p236 = por %p234, %p235
      %p237 = scmp.ne.s32.totalorder %s229, %s231
      %p238 = scmp.eq.s32.totalorder %s25, 1
      %p239 = por %p237, %p238
      %p240 = scmp.ne.s32.totalorder %s231, %s232
      %p241 = scmp.eq.s32.totalorder %s25, 0
      %p242 = por %p240, %p241
      %p243 = scmp.ne.s32.totalorder %s231, %s232
      %p244 = scmp.eq.s32.totalorder %s26, 1
      %p245 = por %p243, %p244
      %p247 = scmp.ne.s32.totalorder %s232, %s246
      %p248 = scmp.eq.s32.totalorder %s26, 0
      %p249 = por %p247, %p248
      %s250 = ssub.s32 %s27, %s39
      %s251 = ssub.s32 %s28, %s35
      %s252 = sor.u32 %s250, %s251
      %p253 = scmp.eq.s32.totalorder %s252, 0
      %s255 = sadd.s32 %s254, 1
      %s256 = scalar_select %p253, %s254, %s255
      %p259 = pneg %p253
      %p260 = scmp.eq.s32.totalorder %s20, 1
      %p261 = por %p259, %p260
      %p262 = scmp.ne.s32.totalorder %s254, %s257
      %p263 = scmp.eq.s32.totalorder %s20, 0
      %p264 = por %p262, %p263
      %p265 = scmp.ne.s32.totalorder %s254, %s257
      %p266 = scmp.eq.s32.totalorder %s25, 1
      %p267 = por %p265, %p266
      %p268 = scmp.ne.s32.totalorder %s257, %s258
      %p269 = scmp.eq.s32.totalorder %s25, 0
      %p270 = por %p268, %p269
      %p271 = scmp.ne.s32.totalorder %s257, %s258
      %p272 = scmp.eq.s32.totalorder %s26, 1
      %p273 = por %p271, %p272
      %p275 = scmp.ne.s32.totalorder %s258, %s274
      %p276 = scmp.eq.s32.totalorder %s26, 0
      %p277 = por %p275, %p276
      %p278 = scmp.le.s32.totalorder 1, %s20
      %p279 = scmp.lt.s32.totalorder %s20, 3
      %p280 = pnand %p278, %p279
      %p281 = pneg %p280
      // Predicated region
      $region9: #{melody_extractor_stereo_forward.1} parent=5 // pred_check
        _
      $region10: #{melody_extractor_stereo_forward.1} parent=5 // pred_check_branch
        %283 = sbr.rel (%p280) target = $region12
      $region11: #{melody_extractor_stereo_forward.1} parent=5 // pred_region
        %s284 = ssub.s32 %s20, 1
        // Predicated region
        $region13: #{melody_extractor_stereo_forward.1} parent=11 // pred_check
          %p285 = pneg %p53
        $region14: #{melody_extractor_stereo_forward.1} parent=11 // pred_check_branch
          %287 = sbr.rel (%p285) target = $region16
        $region15: #{melody_extractor_stereo_forward.1} parent=11 // pred_region
          _
        $region16: #{melody_extractor_stereo_forward.1} parent=11 // pred_fallthru
          _
        // Predicated region
        $region17: #{melody_extractor_stereo_forward.1} parent=11 // pred_check
          %p288 = pneg %p74
        $region18: #{melody_extractor_stereo_forward.1} parent=11 // pred_check_branch
          %290 = sbr.rel (%p288) target = $region20
        $region19: #{melody_extractor_stereo_forward.1} parent=11 // pred_region
          _
        $region20: #{melody_extractor_stereo_forward.1} parent=11 // pred_fallthru
          _
        // Predicated region
        $region21: #{melody_extractor_stereo_forward.1} parent=11 // pred_check
          %p291 = pneg %p95
        $region22: #{melody_extractor_stereo_forward.1} parent=11 // pred_check_branch
          %293 = sbr.rel (%p291) target = $region24
        $region23: #{melody_extractor_stereo_forward.1} parent=11 // pred_region
          _
        $region24: #{melody_extractor_stereo_forward.1} parent=11 // pred_fallthru
          _
        // Predicated region
        $region25: #{melody_extractor_stereo_forward.1} parent=11 // pred_check
          %p294 = pneg %p116
        $region26: #{melody_extractor_stereo_forward.1} parent=11 // pred_check_branch
          %296 = sbr.rel (%p294) target = $region28
        $region27: #{melody_extractor_stereo_forward.1} parent=11 // pred_region
          _
        $region28: #{melody_extractor_stereo_forward.1} parent=11 // pred_fallthru
          _
        // Predicated region
        $region29: #{melody_extractor_stereo_forward.1} parent=11 // pred_check
          %p297 = pneg %p137
        $region30: #{melody_extractor_stereo_forward.1} parent=11 // pred_check_branch
          %299 = sbr.rel (%p297) target = $region32
        $region31: #{melody_extractor_stereo_forward.1} parent=11 // pred_region
          _
        $region32: #{melody_extractor_stereo_forward.1} parent=11 // pred_fallthru
          _
        // Predicated region
        $region33: #{melody_extractor_stereo_forward.1} parent=11 // pred_check
          %p300 = pneg %p158
        $region34: #{melody_extractor_stereo_forward.1} parent=11 // pred_check_branch
          %302 = sbr.rel (%p300) target = $region36
        $region35: #{melody_extractor_stereo_forward.1} parent=11 // pred_region
          _
        $region36: #{melody_extractor_stereo_forward.1} parent=11 // pred_fallthru
          _
        // Predicated region
        $region37: #{melody_extractor_stereo_forward.1} parent=11 // pred_check
          %p303 = pneg %p179
        $region38: #{melody_extractor_stereo_forward.1} parent=11 // pred_check_branch
          %305 = sbr.rel (%p303) target = $region40
        $region39: #{melody_extractor_stereo_forward.1} parent=11 // pred_region
          _
        $region40: #{melody_extractor_stereo_forward.1} parent=11 // pred_fallthru
          _
        // Predicated region
        $region41: #{melody_extractor_stereo_forward.1} parent=11 // pred_check
          %p306 = pneg %p200
        $region42: #{melody_extractor_stereo_forward.1} parent=11 // pred_check_branch
          %308 = sbr.rel (%p306) target = $region44
        $region43: #{melody_extractor_stereo_forward.1} parent=11 // pred_region
          _
        $region44: #{melody_extractor_stereo_forward.1} parent=11 // pred_fallthru
          _
        // Predicated region
        $region45: #{melody_extractor_stereo_forward.1} parent=11 // pred_check
          %p309 = pneg %p221
        $region46: #{melody_extractor_stereo_forward.1} parent=11 // pred_check_branch
          %311 = sbr.rel (%p309) target = $region48
        $region47: #{melody_extractor_stereo_forward.1} parent=11 // pred_region
          _
        $region48: #{melody_extractor_stereo_forward.1} parent=11 // pred_fallthru
          _
        // Predicated region
        $region49: #{melody_extractor_stereo_forward.1} parent=11 // pred_check
          %p312 = pneg %p242
        $region50: #{melody_extractor_stereo_forward.1} parent=11 // pred_check_branch
          %314 = sbr.rel (%p312) target = $region52
        $region51: #{melody_extractor_stereo_forward.1} parent=11 // pred_region
          _
        $region52: #{melody_extractor_stereo_forward.1} parent=11 // pred_fallthru
          _
      $region12: #{melody_extractor_stereo_forward.1} parent=5 // pred_fallthru
        _
      %p315 = scmp.lt.s32.totalorder %s20, 2
      // Predicated region
      $region53: #{melody_extractor_stereo_forward.1} parent=5 // pred_check
        %p316 = pneg %p315
      $region54: #{melody_extractor_stereo_forward.1} parent=5 // pred_check_branch
        %318 = sbr.rel (%p316) target = $region56
      $region55: #{melody_extractor_stereo_forward.1} parent=5 // pred_region
        _
      $region56: #{melody_extractor_stereo_forward.1} parent=5 // pred_fallthru
        _
      %p319 = scmp.le.s32.totalorder 1, %s20
      %p320 = scmp.lt.s32.totalorder %s20, 3
      %p321 = pnand %p319, %p320
      %p322 = pneg %p321
      // Predicated region
      $region57: #{melody_extractor_stereo_forward.1} parent=5 // pred_check
        _
      $region58: #{melody_extractor_stereo_forward.1} parent=5 // pred_check_branch
        %324 = sbr.rel (%p321) target = $region60
      $region59: #{melody_extractor_stereo_forward.1} parent=5 // pred_region
        %s325 = ssub.s32 %s20, 1
        %p326 = pneg %p53
        %p327 = pneg %p50
        %p328 = pneg %p74
        %p329 = pneg %p71
        %p330 = pneg %p95
        %p331 = pneg %p92
        %p332 = pneg %p116
        %p333 = pneg %p113
        %p334 = pneg %p137
        %p335 = pneg %p134
        %p336 = pneg %p158
        %p337 = pneg %p155
        %p338 = pneg %p179
        %p339 = pneg %p176
        %p340 = pneg %p200
        %p341 = pneg %p197
        %p342 = pneg %p221
        %p343 = pneg %p218
        %p344 = pneg %p242
        %p345 = pneg %p239
        %p346 = pneg %p270
        %p347 = pneg %p267
        %s348 = sand.u32 %s257, 1
        %s349 = scalar_lea.sflag [#allocation14], %s348
        %s350 = sand.u32 %s257, 1
        %s351 = smul.addr %s350, 8
        %s352 = scalar_lea.vmem [#allocation13], %s351
        %s353 = smul.u32 %s30, 4
        %p354 = scmp.lt.s32.totalorder %s30, 0
        %s355 = ssub.s32 0, %s30
        %s356 = scalar_select %p354, %s355, %s30
        %s357 = sand.u32 %s356, 1
        %s358 = ssub.s32 0, %s357
        %s359 = scalar_select %p354, %s358, %s357
        %p360 = scmp.ne.s32.totalorder %s359, 0
        %p361 = scmp.lt.s32.totalorder %s359, 0
        %p362 = pnand %p361, %p360
        %p363 = pneg %p362
        %s364 = sadd.s32 %s359, 2
        %s365 = scalar_select %p363, %s364, %s359
        %p366 = scmp.eq.s32.totalorder %s30, 0
        // Predicated region
        $region61: #{melody_extractor_stereo_forward.1} parent=59 // pred_check
          %p367 = pneg %p366
        $region62: #{melody_extractor_stereo_forward.1} parent=59 // pred_check_branch
          %369 = sbr.rel (%p367) target = $region64
        $region63: #{melody_extractor_stereo_forward.1} parent=59 // pred_region
          %s370 = smul.u32 %s29, 16
          %s371 = sadd.s32 %s353, %s370
          %s372 = scalar_lea.vmem %s0, %s371
          %s373 = smul.u32 %s365, 16
          %s374 = scalar_lea.vmem [#allocation2], %s373
          %s375 = scalar_lea.sflag [#allocation12], %s365
          %p377 = scmp.lt.u32.totalorder 9, 8
          %p378 = pneg %p377
          // Predicated region
          $region65: #{melody_extractor_stereo_forward.1} parent=63 // pred_check
            _
          $region66: #{melody_extractor_stereo_forward.1} parent=63 // pred_check_branch
            %380 = sbr.rel (%p377) target = $region68
          $region67: #{melody_extractor_stereo_forward.1} parent=63 // pred_region
            %s395 = sand.u32 9, 7
            %p396 = scmp.eq.s32.totalorder %s395, 0
            %p397 = pneg %p396
            // Predicated region
            $region80: #{melody_extractor_stereo_forward.1} parent=67 // pred_check
              _
            $region81: #{melody_extractor_stereo_forward.1} parent=67 // pred_check_branch
              %399 = sbr.rel (%p396) target = $region83
            $region82: #{melody_extractor_stereo_forward.1} parent=67 // pred_region
              %s400 = sand.u32 9, 7
              %s401 = ssub.s32 9, %s400
              %s402 = scalar_lea.vmem %s372, %s401
              %s403 = ssub.s32 9, %s400
              %s404 = scalar_lea.vmem %s374, %s403 [#allocation2]
              loop: start=0, step=1, limit=1
              $region84: #{melody_extractor_stereo_forward.1} parent=82 // loop_pre_header
                _
              $region85: #{melody_extractor_stereo_forward.1} parent=82 // loop_header
                %s406 = sphi 0, %s410
                %p407 = scmp.ge.s32.totalorder %s406, 1
                %s411 = sphi %s372, %s372
                %s412 = sphi %s374, %s374
              $region86: #{melody_extractor_stereo_forward.1} parent=82 // loop_header_branch
                %409 = sbr.rel (%p407) target = $region90
              $region87: #{melody_extractor_stereo_forward.1} parent=82 // loop_body
                %v413 = vld [vmem:[%s411] sm:$0xff]
                %414 = vst [vmem:[%s412] sm:$0xff] %v413
              $region88: #{melody_extractor_stereo_forward.1} parent=82 // loop_footer
                %s410 = sadd.s32 1, %s406
              $region89: #{melody_extractor_stereo_forward.1} parent=82 // loop_footer_branch
                %405 = sbr.rel target = $region85
              $region90: #{melody_extractor_stereo_forward.1} parent=82 // loop_exit
                _
              %s415 = sshllo.u32 0, %s400
              loop: start=0, step=1, limit=1
              $region91: #{melody_extractor_stereo_forward.1} parent=82 // loop_pre_header
                _
              $region92: #{melody_extractor_stereo_forward.1} parent=82 // loop_header
                %s417 = sphi 0, %s421
                %p418 = scmp.ge.s32.totalorder %s417, 1
                %s422 = sphi %s402, %s402
                %s423 = sphi %s404, %s404
              $region93: #{melody_extractor_stereo_forward.1} parent=82 // loop_header_branch
                %420 = sbr.rel (%p418) target = $region97
              $region94: #{melody_extractor_stereo_forward.1} parent=82 // loop_body
                %v424 = vld [vmem:[%s422] sm:%s415]
                %425 = vst [vmem:[%s423] sm:%s415] %v424
              $region95: #{melody_extractor_stereo_forward.1} parent=82 // loop_footer
                %s421 = sadd.s32 1, %s417
              $region96: #{melody_extractor_stereo_forward.1} parent=82 // loop_footer_branch
                %416 = sbr.rel target = $region92
              $region97: #{melody_extractor_stereo_forward.1} parent=82 // loop_exit
                _
            $region83: #{melody_extractor_stereo_forward.1} parent=67 // pred_fallthru
              _
          $region68: #{melody_extractor_stereo_forward.1} parent=63 // pred_fallthru
            _
          // Predicated region
          $region69: #{melody_extractor_stereo_forward.1} parent=63 // pred_check
            %p381 = pneg %p377
          $region70: #{melody_extractor_stereo_forward.1} parent=63 // pred_check_branch
            %383 = sbr.rel (%p381) target = $region72
          $region71: #{melody_extractor_stereo_forward.1} parent=63 // pred_region
            %s384 = sshllo.u32 0, 9
            loop: start=0, step=1, limit=1
            $region73: #{melody_extractor_stereo_forward.1} parent=71 // loop_pre_header
              _
            $region74: #{melody_extractor_stereo_forward.1} parent=71 // loop_header
              %s386 = sphi 0, %s390
              %p387 = scmp.ge.s32.totalorder %s386, 1
              %s391 = sphi %s372, %s372
              %s392 = sphi %s374, %s374
            $region75: #{melody_extractor_stereo_forward.1} parent=71 // loop_header_branch
              %389 = sbr.rel (%p387) target = $region79
            $region76: #{melody_extractor_stereo_forward.1} parent=71 // loop_body
              %v393 = vld [vmem:[%s391] sm:%s384]
              %394 = vst [vmem:[%s392] sm:%s384] %v393
            $region77: #{melody_extractor_stereo_forward.1} parent=71 // loop_footer
              %s390 = sadd.s32 1, %s386
            $region78: #{melody_extractor_stereo_forward.1} parent=71 // loop_footer_branch
              %385 = sbr.rel target = $region74
            $region79: #{melody_extractor_stereo_forward.1} parent=71 // loop_exit
              _
          $region72: #{melody_extractor_stereo_forward.1} parent=63 // pred_fallthru
            _
          // Predicated region
          $region98: #{melody_extractor_stereo_forward.1} parent=63 // pred_check
            _
          $region99: #{melody_extractor_stereo_forward.1} parent=63 // pred_check_branch
            %428 = sbr.rel (0) target = $region101
          $region100: #{melody_extractor_stereo_forward.1} parent=63 // pred_region
            %429 = vsyncadd %s375, 144
          $region101: #{melody_extractor_stereo_forward.1} parent=63 // pred_fallthru
            _
        $region64: #{melody_extractor_stereo_forward.1} parent=59 // pred_fallthru
          _
        %s430 = smul.u32 %s365, 16
        %s431 = scalar_lea.vmem [#allocation2], %s430
        %s432 = scalar_lea.sflag [#allocation12], %s365
        %s433 = smul.u32 9, 1
        %s434 = sshll.u32 %s433, 4
        %435 = dma.done %s432, %s434
        %s436 = sadd.s32 %s30, 1
        %p437 = scmp.lt.s32.totalorder %s436, 1
        // Predicated region
        $region102: #{melody_extractor_stereo_forward.1} parent=59 // pred_check
          %p438 = pneg %p437
        $region103: #{melody_extractor_stereo_forward.1} parent=59 // pred_check_branch
          %440 = sbr.rel (%p438) target = $region105
        $region104: #{melody_extractor_stereo_forward.1} parent=59 // pred_region
          %s441 = ssub.s32 1, %s365
          %s442 = smul.u32 %s436, 4
          %s443 = smul.u32 %s29, 16
          %s444 = sadd.s32 %s442, %s443
          %s445 = scalar_lea.vmem %s0, %s444
          %s446 = smul.u32 %s441, 16
          %s447 = scalar_lea.vmem [#allocation2], %s446
          %s448 = scalar_lea.sflag [#allocation12], %s441
          %p450 = scmp.lt.u32.totalorder 9, 8
          %p451 = pneg %p450
          // Predicated region
          $region106: #{melody_extractor_stereo_forward.1} parent=104 // pred_check
            _
          $region107: #{melody_extractor_stereo_forward.1} parent=104 // pred_check_branch
            %453 = sbr.rel (%p450) target = $region109
          $region108: #{melody_extractor_stereo_forward.1} parent=104 // pred_region
            %s468 = sand.u32 9, 7
            %p469 = scmp.eq.s32.totalorder %s468, 0
            %p470 = pneg %p469
            // Predicated region
            $region121: #{melody_extractor_stereo_forward.1} parent=108 // pred_check
              _
            $region122: #{melody_extractor_stereo_forward.1} parent=108 // pred_check_branch
              %472 = sbr.rel (%p469) target = $region124
            $region123: #{melody_extractor_stereo_forward.1} parent=108 // pred_region
              %s473 = sand.u32 9, 7
              %s474 = ssub.s32 9, %s473
              %s475 = scalar_lea.vmem %s445, %s474
              %s476 = ssub.s32 9, %s473
              %s477 = scalar_lea.vmem %s447, %s476 [#allocation2]
              loop: start=0, step=1, limit=1
              $region125: #{melody_extractor_stereo_forward.1} parent=123 // loop_pre_header
                _
              $region126: #{melody_extractor_stereo_forward.1} parent=123 // loop_header
                %s479 = sphi 0, %s483
                %p480 = scmp.ge.s32.totalorder %s479, 1
                %s484 = sphi %s445, %s445
                %s485 = sphi %s447, %s447
              $region127: #{melody_extractor_stereo_forward.1} parent=123 // loop_header_branch
                %482 = sbr.rel (%p480) target = $region131
              $region128: #{melody_extractor_stereo_forward.1} parent=123 // loop_body
                %v486 = vld [vmem:[%s484] sm:$0xff]
                %487 = vst [vmem:[%s485] sm:$0xff] %v486
              $region129: #{melody_extractor_stereo_forward.1} parent=123 // loop_footer
                %s483 = sadd.s32 1, %s479
              $region130: #{melody_extractor_stereo_forward.1} parent=123 // loop_footer_branch
                %478 = sbr.rel target = $region126
              $region131: #{melody_extractor_stereo_forward.1} parent=123 // loop_exit
                _
              %s488 = sshllo.u32 0, %s473
              loop: start=0, step=1, limit=1
              $region132: #{melody_extractor_stereo_forward.1} parent=123 // loop_pre_header
                _
              $region133: #{melody_extractor_stereo_forward.1} parent=123 // loop_header
                %s490 = sphi 0, %s494
                %p491 = scmp.ge.s32.totalorder %s490, 1
                %s495 = sphi %s475, %s475
                %s496 = sphi %s477, %s477
              $region134: #{melody_extractor_stereo_forward.1} parent=123 // loop_header_branch
                %493 = sbr.rel (%p491) target = $region138
              $region135: #{melody_extractor_stereo_forward.1} parent=123 // loop_body
                %v497 = vld [vmem:[%s495] sm:%s488]
                %498 = vst [vmem:[%s496] sm:%s488] %v497
              $region136: #{melody_extractor_stereo_forward.1} parent=123 // loop_footer
                %s494 = sadd.s32 1, %s490
              $region137: #{melody_extractor_stereo_forward.1} parent=123 // loop_footer_branch
                %489 = sbr.rel target = $region133
              $region138: #{melody_extractor_stereo_forward.1} parent=123 // loop_exit
                _
            $region124: #{melody_extractor_stereo_forward.1} parent=108 // pred_fallthru
              _
          $region109: #{melody_extractor_stereo_forward.1} parent=104 // pred_fallthru
            _
          // Predicated region
          $region110: #{melody_extractor_stereo_forward.1} parent=104 // pred_check
            %p454 = pneg %p450
          $region111: #{melody_extractor_stereo_forward.1} parent=104 // pred_check_branch
            %456 = sbr.rel (%p454) target = $region113
          $region112: #{melody_extractor_stereo_forward.1} parent=104 // pred_region
            %s457 = sshllo.u32 0, 9
            loop: start=0, step=1, limit=1
            $region114: #{melody_extractor_stereo_forward.1} parent=112 // loop_pre_header
              _
            $region115: #{melody_extractor_stereo_forward.1} parent=112 // loop_header
              %s459 = sphi 0, %s463
              %p460 = scmp.ge.s32.totalorder %s459, 1
              %s464 = sphi %s445, %s445
              %s465 = sphi %s447, %s447
            $region116: #{melody_extractor_stereo_forward.1} parent=112 // loop_header_branch
              %462 = sbr.rel (%p460) target = $region120
            $region117: #{melody_extractor_stereo_forward.1} parent=112 // loop_body
              %v466 = vld [vmem:[%s464] sm:%s457]
              %467 = vst [vmem:[%s465] sm:%s457] %v466
            $region118: #{melody_extractor_stereo_forward.1} parent=112 // loop_footer
              %s463 = sadd.s32 1, %s459
            $region119: #{melody_extractor_stereo_forward.1} parent=112 // loop_footer_branch
              %458 = sbr.rel target = $region115
            $region120: #{melody_extractor_stereo_forward.1} parent=112 // loop_exit
              _
          $region113: #{melody_extractor_stereo_forward.1} parent=104 // pred_fallthru
            _
          // Predicated region
          $region139: #{melody_extractor_stereo_forward.1} parent=104 // pred_check
            _
          $region140: #{melody_extractor_stereo_forward.1} parent=104 // pred_check_branch
            %501 = sbr.rel (0) target = $region142
          $region141: #{melody_extractor_stereo_forward.1} parent=104 // pred_region
            %502 = vsyncadd %s448, 144
          $region142: #{melody_extractor_stereo_forward.1} parent=104 // pred_fallthru
            _
        $region105: #{melody_extractor_stereo_forward.1} parent=59 // pred_fallthru
          _
        %p503 = scmp.ge.s32.totalorder %s30, 0
        %p504 = por %p366, %p503
        %v505 = vld [vmem:[%s431] sm:$0xff]
        %v506 = vld [vmem:[%s1] sm:$0xff]
        %v507 = vld [vmem:[%s1 + $0x8] sm:$0xff]
        %v508 = vld [vmem:[%s1 + $0x10] sm:$0xff]
        %v509 = vld [vmem:[%s1 + $0x18] sm:$0xff]
        %v510 = vld [vmem:[%s1 + $0x20] sm:$0xff]
        %v511 = vld [vmem:[%s1 + $0x28] sm:$0xff]
        %v512 = vld [vmem:[%s1 + $0x30] sm:$0xff]
        %v513 = vld [vmem:[%s1 + $0x38] sm:$0xff]
        %v514 = vld [vmem:[%s1 + $0x40] sm:$0xff]
        %v515 = vld [vmem:[%s1 + $0x48] sm:$0xff]
        %v516 = vld [vmem:[%s1 + $0x50] sm:$0xff]
        %v517 = vld [vmem:[%s1 + $0x58] sm:$0xff]
        %v518 = vld [vmem:[%s2] sm:$0x1]
        %v520 = vlaneseq
        %v521 = vshrl.u32 %v520, 7
        %v522 = vsub.s32 0, %v521
        %v523 = vrot.slane %v518, %v522
        %vm525 = vcmask 785408
        %v527 = vsel %vm525, %v505, 0
        %529 = vmatprep.subr.mxu0 0.0
        %530 = vmatpush1.msra.mxu0 %v506
        %531 = vmatprep.subr.mxu0 0.0
        %532 = vmatpush1.msra.mxu0 %v507
        %533 = vmatprep.subr.mxu0 0.0
        %534 = vmatpush1.msra.mxu0 %v508
        %535 = vmatprep.subr.mxu0 0.0
        %536 = vmatpush1.msra.mxu0 %v509
        %537 = vmatprep.subr.mxu0 0.0
        %538 = vmatpush1.msra.mxu0 %v510
        %539 = vmatprep.subr.mxu0 0.0
        %540 = vmatpush1.msra.mxu0 %v511
        %541 = vmatprep.subr.mxu0 0.0
        %542 = vmatpush1.msra.mxu0 %v512
        %543 = vmatprep.subr.mxu0 0.0
        %544 = vmatpush1.msra.mxu0 %v513
        %545 = vmatprep.subr.mxu0 0.0
        %546 = vmatpush1.msra.mxu0 %v514
        %547 = vmatprep.subr.mxu0 0.0
        %548 = vmatpush1.msra.mxu0 %v515
        %549 = vmatprep.subr.mxu0 0.0
        %550 = vmatpush1.msra.mxu0 %v516
        %551 = vmatprep.subr.mxu0 0.0
        %552 = vmatpush1.msra.mxu0 %v517
        %553 = vmatprep.subr.mxu0 0.0
        %554 = vmatpush1.msra.mxu0 0.0
        %555 = vmatprep.subr.mxu0 0.0
        %556 = vmatpush1.msra.mxu0 0.0
        %557 = vmatprep.subr.mxu0 0.0
        %558 = vmatpush1.msra.mxu0 0.0
        %559 = vmatprep.subr.mxu0 0.0
        %560 = vmatpush1.msra.mxu0 0.0
        %561 = vmatprep.subr.mxu0 0.0
        %562 = vmatpush1.msra.mxu0 0.0
        %563 = vmatprep.subr.mxu0 0.0
        %564 = vmatpush1.msra.mxu0 0.0
        %565 = vmatprep.subr.mxu0 0.0
        %566 = vmatpush1.msra.mxu0 0.0
        %567 = vmatprep.subr.mxu0 0.0
        %568 = vmatpush1.msra.mxu0 0.0
        %569 = vmatprep.subr.mxu0 0.0
        %570 = vmatpush1.msra.mxu0 0.0
        %571 = vmatprep.subr.mxu0 0.0
        %572 = vmatpush1.msra.mxu0 0.0
        %573 = vmatprep.subr.mxu0 0.0
        %574 = vmatpush1.msra.mxu0 0.0
        %575 = vmatprep.subr.mxu0 0.0
        %576 = vmatpush1.msra.mxu0 0.0
        %577 = vmatprep.subr.mxu0 0.0
        %578 = vmatpush1.msra.mxu0 0.0
        %579 = vmatprep.subr.mxu0 0.0
        %580 = vmatpush1.msra.mxu0 0.0
        %581 = vmatprep.subr.mxu0 0.0
        %582 = vmatpush1.msra.mxu0 0.0
        %583 = vmatprep.subr.mxu0 0.0
        %584 = vmatpush1.msra.mxu0 0.0
        %585 = vmatprep.subr.mxu0 0.0
        %586 = vmatpush1.msra.mxu0 0.0
        %587 = vmatprep.subr.mxu0 0.0
        %588 = vmatpush1.msra.mxu0 0.0
        %589 = vmatprep.subr.mxu0 0.0
        %590 = vmatpush1.msra.mxu0 0.0
        %591 = vmatprep.subr.mxu0 0.0
        %592 = vmatpush1.msra.mxu0 0.0
        %593 = vmatprep.mubr.f32.mxu0 0.0
        %594 = vmatmul.mubr.f32.gmra.mrb[0].mxu0 %v527
        %v595 = vpop.f32.mrb[0].mxu0
        %v596 = vadd.f32 %v523, %v595
        %v597 = vpop.f32.mrb[0].mxu0
        %598 = vdwg.mxu0
        %v599 = vxor.u32 %v596, 2147483648
        %v600 = vmul.f32 %v599, 1.442695
        %v601 = vpow.pop %v600
        %v602 = vadd.f32 %v601, 1.0
        %v603 = vrcp.pop %v602
        %v604 = vmul.f32 1.0, %v603
        %v605 = vmul.f32 %v596, %v604
        %vm606 = vcmask 523264
        %607 = vst.msk [vmem:[#allocation3] sm:$0xff] %vm606, %v605
        %v608 = vld [vmem:[%s431] sm:$0xff]
        %v609 = vld [vmem:[%s1] sm:$0xff]
        %v610 = vld [vmem:[%s1 + $0x8] sm:$0xff]
        %v611 = vld [vmem:[%s1 + $0x10] sm:$0xff]
        %v612 = vld [vmem:[%s1 + $0x18] sm:$0xff]
        %v613 = vld [vmem:[%s1 + $0x20] sm:$0xff]
        %v614 = vld [vmem:[%s1 + $0x28] sm:$0xff]
        %v615 = vld [vmem:[%s1 + $0x30] sm:$0xff]
        %v616 = vld [vmem:[%s1 + $0x38] sm:$0xff]
        %v617 = vld [vmem:[%s1 + $0x40] sm:$0xff]
        %v618 = vld [vmem:[%s1 + $0x48] sm:$0xff]
        %v619 = vld [vmem:[%s1 + $0x50] sm:$0xff]
        %v620 = vld [vmem:[%s1 + $0x58] sm:$0xff]
        %v621 = vld [vmem:[%s2] sm:$0x1]
        %v623 = vlaneseq
        %v624 = vshrl.u32 %v623, 7
        %v625 = vsub.s32 0, %v624
        %v626 = vrot.slane %v621, %v625
        %629 = vrot.lane.b32.xlu0 %v608, 96
        %v630 = vpop.permute.xlu0 %629
        %v631 = vsel %vm525, %v630, 0
        %633 = vmatprep.subr.mxu0 0.0
        %634 = vmatpush1.msra.mxu0 %v609
        %635 = vmatprep.subr.mxu0 0.0
        %636 = vmatpush1.msra.mxu0 %v610
        %637 = vmatprep.subr.mxu0 0.0
        %638 = vmatpush1.msra.mxu0 %v611
        %639 = vmatprep.subr.mxu0 0.0
        %640 = vmatpush1.msra.mxu0 %v612
        %641 = vmatprep.subr.mxu0 0.0
        %642 = vmatpush1.msra.mxu0 %v613
        %643 = vmatprep.subr.mxu0 0.0
        %644 = vmatpush1.msra.mxu0 %v614
        %645 = vmatprep.subr.mxu0 0.0
        %646 = vmatpush1.msra.mxu0 %v615
        %647 = vmatprep.subr.mxu0 0.0
        %648 = vmatpush1.msra.mxu0 %v616
        %649 = vmatprep.subr.mxu0 0.0
        %650 = vmatpush1.msra.mxu0 %v617
        %651 = vmatprep.subr.mxu0 0.0
        %652 = vmatpush1.msra.mxu0 %v618
        %653 = vmatprep.subr.mxu0 0.0
        %654 = vmatpush1.msra.mxu0 %v619
        %655 = vmatprep.subr.mxu0 0.0
        %656 = vmatpush1.msra.mxu0 %v620
        %657 = vmatprep.subr.mxu0 0.0
        %658 = vmatpush1.msra.mxu0 0.0
        %659 = vmatprep.subr.mxu0 0.0
        %660 = vmatpush1.msra.mxu0 0.0
        %661 = vmatprep.subr.mxu0 0.0
        %662 = vmatpush1.msra.mxu0 0.0
        %663 = vmatprep.subr.mxu0 0.0
        %664 = vmatpush1.msra.mxu0 0.0
        %665 = vmatprep.subr.mxu0 0.0
        %666 = vmatpush1.msra.mxu0 0.0
        %667 = vmatprep.subr.mxu0 0.0
        %668 = vmatpush1.msra.mxu0 0.0
        %669 = vmatprep.subr.mxu0 0.0
        %670 = vmatpush1.msra.mxu0 0.0
        %671 = vmatprep.subr.mxu0 0.0
        %672 = vmatpush1.msra.mxu0 0.0
        %673 = vmatprep.subr.mxu0 0.0
        %674 = vmatpush1.msra.mxu0 0.0
        %675 = vmatprep.subr.mxu0 0.0
        %676 = vmatpush1.msra.mxu0 0.0
        %677 = vmatprep.subr.mxu0 0.0
        %678 = vmatpush1.msra.mxu0 0.0
        %679 = vmatprep.subr.mxu0 0.0
        %680 = vmatpush1.msra.mxu0 0.0
        %681 = vmatprep.subr.mxu0 0.0
        %682 = vmatpush1.msra.mxu0 0.0
        %683 = vmatprep.subr.mxu0 0.0
        %684 = vmatpush1.msra.mxu0 0.0
        %685 = vmatprep.subr.mxu0 0.0
        %686 = vmatpush1.msra.mxu0 0.0
        %687 = vmatprep.subr.mxu0 0.0
        %688 = vmatpush1.msra.mxu0 0.0
        %689 = vmatprep.subr.mxu0 0.0
        %690 = vmatpush1.msra.mxu0 0.0
        %691 = vmatprep.subr.mxu0 0.0
        %692 = vmatpush1.msra.mxu0 0.0
        %693 = vmatprep.subr.mxu0 0.0
        %694 = vmatpush1.msra.mxu0 0.0
        %695 = vmatprep.subr.mxu0 0.0
        %696 = vmatpush1.msra.mxu0 0.0
        %697 = vmatprep.mubr.f32.mxu0 0.0
        %698 = vmatmul.mubr.f32.gmra.mrb[0].mxu0 %v631
        %v699 = vpop.f32.mrb[0].mxu0
        %v700 = vadd.f32 %v626, %v699
        %v701 = vpop.f32.mrb[0].mxu0
        %702 = vdwg.mxu0
        %v703 = vxor.u32 %v700, 2147483648
        %v704 = vmul.f32 %v703, 1.442695
        %v705 = vpow.pop %v704
        %v706 = vadd.f32 %v705, 1.0
        %v707 = vrcp.pop %v706
        %v708 = vmul.f32 1.0, %v707
        %v709 = vmul.f32 %v700, %v708
        %710 = vst.msk [vmem:[#allocation4] sm:$0xff] %vm606, %v709
        %v711 = vld [vmem:[%s431] sm:$0xff]
        %v712 = vld [vmem:[%s431 + $0x1] sm:$0xff]
        %714 = vrot.lane.b32.xlu0 %v711, 64
        %v715 = vpop.permute.xlu0 %714
        %718 = vrot.lane.b32.xlu0 %v712, 64
        %v719 = vpop.permute.xlu0 %718
        %v721 = vsel %vm606, %v715, %v719
        %v722 = vld [vmem:[%s1] sm:$0xff]
        %v723 = vld [vmem:[%s1 + $0x8] sm:$0xff]
        %v724 = vld [vmem:[%s1 + $0x10] sm:$0xff]
        %v725 = vld [vmem:[%s1 + $0x18] sm:$0xff]
        %v726 = vld [vmem:[%s1 + $0x20] sm:$0xff]
        %v727 = vld [vmem:[%s1 + $0x28] sm:$0xff]
        %v728 = vld [vmem:[%s1 + $0x30] sm:$0xff]
        %v729 = vld [vmem:[%s1 + $0x38] sm:$0xff]
        %v730 = vld [vmem:[%s1 + $0x40] sm:$0xff]
        %v731 = vld [vmem:[%s1 + $0x48] sm:$0xff]
        %v732 = vld [vmem:[%s1 + $0x50] sm:$0xff]
        %v733 = vld [vmem:[%s1 + $0x58] sm:$0xff]
        %v734 = vld [vmem:[%s2] sm:$0x1]
        %v736 = vlaneseq
        %v737 = vshrl.u32 %v736, 7
        %v738 = vsub.s32 0, %v737
        %v739 = vrot.slane %v734, %v738
        %v742 = vsel %vm525, %v721, 0
        %744 = vmatprep.subr.mxu0 0.0
        %745 = vmatpush1.msra.mxu0 %v722
        %746 = vmatprep.subr.mxu0 0.0
        %747 = vmatpush1.msra.mxu0 %v723
        %748 = vmatprep.subr.mxu0 0.0
        %749 = vmatpush1.msra.mxu0 %v724
        %750 = vmatprep.subr.mxu0 0.0
        %751 = vmatpush1.msra.mxu0 %v725
        %752 = vmatprep.subr.mxu0 0.0
        %753 = vmatpush1.msra.mxu0 %v726
        %754 = vmatprep.subr.mxu0 0.0
        %755 = vmatpush1.msra.mxu0 %v727
        %756 = vmatprep.subr.mxu0 0.0
        %757 = vmatpush1.msra.mxu0 %v728
        %758 = vmatprep.subr.mxu0 0.0
        %759 = vmatpush1.msra.mxu0 %v729
        %760 = vmatprep.subr.mxu0 0.0
        %761 = vmatpush1.msra.mxu0 %v730
        %762 = vmatprep.subr.mxu0 0.0
        %763 = vmatpush1.msra.mxu0 %v731
        %764 = vmatprep.subr.mxu0 0.0
        %765 = vmatpush1.msra.mxu0 %v732
        %766 = vmatprep.subr.mxu0 0.0
        %767 = vmatpush1.msra.mxu0 %v733
        %768 = vmatprep.subr.mxu0 0.0
        %769 = vmatpush1.msra.mxu0 0.0
        %770 = vmatprep.subr.mxu0 0.0
        %771 = vmatpush1.msra.mxu0 0.0
        %772 = vmatprep.subr.mxu0 0.0
        %773 = vmatpush1.msra.mxu0 0.0
        %774 = vmatprep.subr.mxu0 0.0
        %775 = vmatpush1.msra.mxu0 0.0
        %776 = vmatprep.subr.mxu0 0.0
        %777 = vmatpush1.msra.mxu0 0.0
        %778 = vmatprep.subr.mxu0 0.0
        %779 = vmatpush1.msra.mxu0 0.0
        %780 = vmatprep.subr.mxu0 0.0
        %781 = vmatpush1.msra.mxu0 0.0
        %782 = vmatprep.subr.mxu0 0.0
        %783 = vmatpush1.msra.mxu0 0.0
        %784 = vmatprep.subr.mxu0 0.0
        %785 = vmatpush1.msra.mxu0 0.0
        %786 = vmatprep.subr.mxu0 0.0
        %787 = vmatpush1.msra.mxu0 0.0
        %788 = vmatprep.subr.mxu0 0.0
        %789 = vmatpush1.msra.mxu0 0.0
        %790 = vmatprep.subr.mxu0 0.0
        %791 = vmatpush1.msra.mxu0 0.0
        %792 = vmatprep.subr.mxu0 0.0
        %793 = vmatpush1.msra.mxu0 0.0
        %794 = vmatprep.subr.mxu0 0.0
        %795 = vmatpush1.msra.mxu0 0.0
        %796 = vmatprep.subr.mxu0 0.0
        %797 = vmatpush1.msra.mxu0 0.0
        %798 = vmatprep.subr.mxu0 0.0
        %799 = vmatpush1.msra.mxu0 0.0
        %800 = vmatprep.subr.mxu0 0.0
        %801 = vmatpush1.msra.mxu0 0.0
        %802 = vmatprep.subr.mxu0 0.0
        %803 = vmatpush1.msra.mxu0 0.0
        %804 = vmatprep.subr.mxu0 0.0
        %805 = vmatpush1.msra.mxu0 0.0
        %806 = vmatprep.subr.mxu0 0.0
        %807 = vmatpush1.msra.mxu0 0.0
        %808 = vmatprep.mubr.f32.mxu0 0.0
        %809 = vmatmul.mubr.f32.gmra.mrb[0].mxu0 %v742
        %v810 = vpop.f32.mrb[0].mxu0
        %v811 = vadd.f32 %v739, %v810
        %v812 = vpop.f32.mrb[0].mxu0
        %813 = vdwg.mxu0
        %v814 = vxor.u32 %v811, 2147483648
        %v815 = vmul.f32 %v814, 1.442695
        %v816 = vpow.pop %v815
        %v817 = vadd.f32 %v816, 1.0
        %v818 = vrcp.pop %v817
        %v819 = vmul.f32 1.0, %v818
        %v820 = vmul.f32 %v811, %v819
        %821 = vst.msk [vmem:[#allocation5] sm:$0xff] %vm606, %v820
        %v822 = vld [vmem:[%s431] sm:$0xff]
        %v823 = vld [vmem:[%s431 + $0x1] sm:$0xff]
        %825 = vrot.lane.b32.xlu0 %v822, 32
        %v826 = vpop.permute.xlu0 %825
        %829 = vrot.lane.b32.xlu0 %v823, 32
        %v830 = vpop.permute.xlu0 %829
        %vm832 = vcmask 261120
        %v833 = vsel %vm832, %v826, %v830
        %v834 = vld [vmem:[%s1] sm:$0xff]
        %v835 = vld [vmem:[%s1 + $0x8] sm:$0xff]
        %v836 = vld [vmem:[%s1 + $0x10] sm:$0xff]
        %v837 = vld [vmem:[%s1 + $0x18] sm:$0xff]
        %v838 = vld [vmem:[%s1 + $0x20] sm:$0xff]
        %v839 = vld [vmem:[%s1 + $0x28] sm:$0xff]
        %v840 = vld [vmem:[%s1 + $0x30] sm:$0xff]
        %v841 = vld [vmem:[%s1 + $0x38] sm:$0xff]
        %v842 = vld [vmem:[%s1 + $0x40] sm:$0xff]
        %v843 = vld [vmem:[%s1 + $0x48] sm:$0xff]
        %v844 = vld [vmem:[%s1 + $0x50] sm:$0xff]
        %v845 = vld [vmem:[%s1 + $0x58] sm:$0xff]
        %v846 = vld [vmem:[%s2] sm:$0x1]
        %v848 = vlaneseq
        %v849 = vshrl.u32 %v848, 7
        %v850 = vsub.s32 0, %v849
        %v851 = vrot.slane %v846, %v850
        %v854 = vsel %vm525, %v833, 0
        %856 = vmatprep.subr.mxu0 0.0
        %857 = vmatpush1.msra.mxu0 %v834
        %858 = vmatprep.subr.mxu0 0.0
        %859 = vmatpush1.msra.mxu0 %v835
        %860 = vmatprep.subr.mxu0 0.0
        %861 = vmatpush1.msra.mxu0 %v836
        %862 = vmatprep.subr.mxu0 0.0
        %863 = vmatpush1.msra.mxu0 %v837
        %864 = vmatprep.subr.mxu0 0.0
        %865 = vmatpush1.msra.mxu0 %v838
        %866 = vmatprep.subr.mxu0 0.0
        %867 = vmatpush1.msra.mxu0 %v839
        %868 = vmatprep.subr.mxu0 0.0
        %869 = vmatpush1.msra.mxu0 %v840
        %870 = vmatprep.subr.mxu0 0.0
        %871 = vmatpush1.msra.mxu0 %v841
        %872 = vmatprep.subr.mxu0 0.0
        %873 = vmatpush1.msra.mxu0 %v842
        %874 = vmatprep.subr.mxu0 0.0
        %875 = vmatpush1.msra.mxu0 %v843
        %876 = vmatprep.subr.mxu0 0.0
        %877 = vmatpush1.msra.mxu0 %v844
        %878 = vmatprep.subr.mxu0 0.0
        %879 = vmatpush1.msra.mxu0 %v845
        %880 = vmatprep.subr.mxu0 0.0
        %881 = vmatpush1.msra.mxu0 0.0
        %882 = vmatprep.subr.mxu0 0.0
        %883 = vmatpush1.msra.mxu0 0.0
        %884 = vmatprep.subr.mxu0 0.0
        %885 = vmatpush1.msra.mxu0 0.0
        %886 = vmatprep.subr.mxu0 0.0
        %887 = vmatpush1.msra.mxu0 0.0
        %888 = vmatprep.subr.mxu0 0.0
        %889 = vmatpush1.msra.mxu0 0.0
        %890 = vmatprep.subr.mxu0 0.0
        %891 = vmatpush1.msra.mxu0 0.0
        %892 = vmatprep.subr.mxu0 0.0
        %893 = vmatpush1.msra.mxu0 0.0
        %894 = vmatprep.subr.mxu0 0.0
        %895 = vmatpush1.msra.mxu0 0.0
        %896 = vmatprep.subr.mxu0 0.0
        %897 = vmatpush1.msra.mxu0 0.0
        %898 = vmatprep.subr.mxu0 0.0
        %899 = vmatpush1.msra.mxu0 0.0
        %900 = vmatprep.subr.mxu0 0.0
        %901 = vmatpush1.msra.mxu0 0.0
        %902 = vmatprep.subr.mxu0 0.0
        %903 = vmatpush1.msra.mxu0 0.0
        %904 = vmatprep.subr.mxu0 0.0
        %905 = vmatpush1.msra.mxu0 0.0
        %906 = vmatprep.subr.mxu0 0.0
        %907 = vmatpush1.msra.mxu0 0.0
        %908 = vmatprep.subr.mxu0 0.0
        %909 = vmatpush1.msra.mxu0 0.0
        %910 = vmatprep.subr.mxu0 0.0
        %911 = vmatpush1.msra.mxu0 0.0
        %912 = vmatprep.subr.mxu0 0.0
        %913 = vmatpush1.msra.mxu0 0.0
        %914 = vmatprep.subr.mxu0 0.0
        %915 = vmatpush1.msra.mxu0 0.0
        %916 = vmatprep.subr.mxu0 0.0
        %917 = vmatpush1.msra.mxu0 0.0
        %918 = vmatprep.subr.mxu0 0.0
        %919 = vmatpush1.msra.mxu0 0.0
        %920 = vmatprep.mubr.f32.mxu0 0.0
        %921 = vmatmul.mubr.f32.gmra.mrb[0].mxu0 %v854
        %v922 = vpop.f32.mrb[0].mxu0
        %v923 = vadd.f32 %v851, %v922
        %v924 = vpop.f32.mrb[0].mxu0
        %925 = vdwg.mxu0
        %v926 = vxor.u32 %v923, 2147483648
        %v927 = vmul.f32 %v926, 1.442695
        %v928 = vpow.pop %v927
        %v929 = vadd.f32 %v928, 1.0
        %v930 = vrcp.pop %v929
        %v931 = vmul.f32 1.0, %v930
        %v932 = vmul.f32 %v923, %v931
        %933 = vst.msk [vmem:[#allocation6] sm:$0xff] %vm606, %v932
        %v934 = vld [vmem:[#allocation3] sm:$0xff]
        %v935 = vld [vmem:[#allocation4] sm:$0xff]
        %v936 = vld [vmem:[#allocation5] sm:$0xff]
        %938 = vrot.lane.b32.xlu0 %v935, 64
        %v939 = vpop.permute.xlu0 %938
        %v941 = vsel %vm606, %v934, %v939
        %v942 = vld [vmem:[%s3] sm:$0xff]
        %v943 = vld [vmem:[%s3 + $0x8] sm:$0xff]
        %v944 = vld [vmem:[%s3 + $0x10] sm:$0xff]
        %v945 = vld [vmem:[%s3 + $0x18] sm:$0xff]
        %v946 = vld [vmem:[%s3 + $0x20] sm:$0xff]
        %v947 = vld [vmem:[%s3 + $0x28] sm:$0xff]
        %v948 = vld [vmem:[%s3 + $0x30] sm:$0xff]
        %v949 = vld [vmem:[%s3 + $0x38] sm:$0xff]
        %v950 = vld [vmem:[%s3 + $0x40] sm:$0xff]
        %v951 = vld [vmem:[%s3 + $0x48] sm:$0xff]
        %v952 = vld [vmem:[%s3 + $0x50] sm:$0xff]
        %v953 = vld [vmem:[%s3 + $0x58] sm:$0xff]
        %v954 = vld [vmem:[%s3 + $0x60] sm:$0xff]
        %v955 = vld [vmem:[%s3 + $0x68] sm:$0xff]
        %v956 = vld [vmem:[%s3 + $0x70] sm:$0xff]
        %v957 = vld [vmem:[%s3 + $0x78] sm:$0xff]
        %v958 = vld [vmem:[%s3 + $0x80] sm:$0xff]
        %v959 = vld [vmem:[%s3 + $0x88] sm:$0xff]
        %v960 = vld [vmem:[%s3 + $0x90] sm:$0xff]
        %v961 = vld [vmem:[%s3 + $0x98] sm:$0xff]
        %v962 = vld [vmem:[%s3 + $0xa0] sm:$0xff]
        %v963 = vld [vmem:[%s3 + $0xa8] sm:$0xff]
        %v964 = vld [vmem:[%s3 + $0xb0] sm:$0xff]
        %v965 = vld [vmem:[%s3 + $0xb8] sm:$0xff]
        %v966 = vld [vmem:[%s4] sm:$0x1]
        %v968 = vlaneseq
        %v969 = vshrl.u32 %v968, 7
        %v970 = vsub.s32 0, %v969
        %v971 = vrot.slane %v966, %v970
        %v974 = vsel %vm606, %v936, 0
        %976 = vmatprep.subr.mxu0 0.0
        %977 = vmatpush1.msra.mxu0 %v942
        %978 = vmatprep.subr.mxu0 0.0
        %979 = vmatpush1.msra.mxu0 %v943
        %980 = vmatprep.subr.mxu0 0.0
        %981 = vmatpush1.msra.mxu0 %v944
        %982 = vmatprep.subr.mxu0 0.0
        %983 = vmatpush1.msra.mxu0 %v945
        %984 = vmatprep.subr.mxu0 0.0
        %985 = vmatpush1.msra.mxu0 %v946
        %986 = vmatprep.subr.mxu0 0.0
        %987 = vmatpush1.msra.mxu0 %v947
        %988 = vmatprep.subr.mxu0 0.0
        %989 = vmatpush1.msra.mxu0 %v948
        %990 = vmatprep.subr.mxu0 0.0
        %991 = vmatpush1.msra.mxu0 %v949
        %992 = vmatprep.subr.mxu0 0.0
        %993 = vmatpush1.msra.mxu0 %v950
        %994 = vmatprep.subr.mxu0 0.0
        %995 = vmatpush1.msra.mxu0 %v951
        %996 = vmatprep.subr.mxu0 0.0
        %997 = vmatpush1.msra.mxu0 %v952
        %998 = vmatprep.subr.mxu0 0.0
        %999 = vmatpush1.msra.mxu0 %v953
        %1000 = vmatprep.subr.mxu0 0.0
        %1001 = vmatpush1.msra.mxu0 %v954
        %1002 = vmatprep.subr.mxu0 0.0
        %1003 = vmatpush1.msra.mxu0 %v955
        %1004 = vmatprep.subr.mxu0 0.0
        %1005 = vmatpush1.msra.mxu0 %v956
        %1006 = vmatprep.subr.mxu0 0.0
        %1007 = vmatpush1.msra.mxu0 %v957
        %1008 = vmatprep.subr.mxu0 0.0
        %1009 = vmatpush1.msra.mxu0 %v958
        %1010 = vmatprep.subr.mxu0 0.0
        %1011 = vmatpush1.msra.mxu0 %v959
        %1012 = vmatprep.subr.mxu0 0.0
        %1013 = vmatpush1.msra.mxu0 %v960
        %1014 = vmatprep.subr.mxu0 0.0
        %1015 = vmatpush1.msra.mxu0 %v961
        %1016 = vmatprep.subr.mxu0 0.0
        %1017 = vmatpush1.msra.mxu0 %v962
        %1018 = vmatprep.subr.mxu0 0.0
        %1019 = vmatpush1.msra.mxu0 %v963
        %1020 = vmatprep.subr.mxu0 0.0
        %1021 = vmatpush1.msra.mxu0 %v964
        %1022 = vmatprep.subr.mxu0 0.0
        %1023 = vmatpush1.msra.mxu0 %v965
        %1024 = vmatprep.subr.mxu0 0.0
        %1025 = vmatpush1.msra.mxu0 0.0
        %1026 = vmatprep.subr.mxu0 0.0
        %1027 = vmatpush1.msra.mxu0 0.0
        %1028 = vmatprep.subr.mxu0 0.0
        %1029 = vmatpush1.msra.mxu0 0.0
        %1030 = vmatprep.subr.mxu0 0.0
        %1031 = vmatpush1.msra.mxu0 0.0
        %1032 = vmatprep.subr.mxu0 0.0
        %1033 = vmatpush1.msra.mxu0 0.0
        %1034 = vmatprep.subr.mxu0 0.0
        %1035 = vmatpush1.msra.mxu0 0.0
        %1036 = vmatprep.subr.mxu0 0.0
        %1037 = vmatpush1.msra.mxu0 0.0
        %1038 = vmatprep.subr.mxu0 0.0
        %1039 = vmatpush1.msra.mxu0 0.0
        %1040 = vmatprep.mubr.f32.mxu0 %v974
        %1041 = vmatmul.mubr.f32.gmra.mrb[0].mxu0 %v941
        %v1042 = vpop.f32.mrb[0].mxu0
        %v1043 = vadd.f32 %v971, %v1042
        %v1044 = vpop.f32.mrb[0].mxu0
        %1045 = vdwg.mxu0
        %v1046 = vxor.u32 %v1043, 2147483648
        %v1047 = vmul.f32 %v1046, 1.442695
        %v1048 = vpow.pop %v1047
        %v1049 = vadd.f32 %v1048, 1.0
        %v1050 = vrcp.pop %v1049
        %v1051 = vmul.f32 1.0, %v1050
        %v1052 = vmul.f32 %v1043, %v1051
        %1053 = vst.msk [vmem:[#allocation7] sm:$0xff] %vm606, %v1052
        %v1054 = vld [vmem:[#allocation5] sm:$0x7f]
        %v1055 = vld [vmem:[#allocation6] sm:$0x7f]
        %v1056 = vld [vmem:[#allocation3 + $0x1] sm:$0x7f]
        %1058 = vrot.lane.b32.xlu0 %v1055, 64
        %v1059 = vpop.permute.xlu0 %1058
        %v1061 = vsel %vm606, %v1054, %v1059
        %v1062 = vld [vmem:[%s3] sm:$0xff]
        %v1063 = vld [vmem:[%s3 + $0x8] sm:$0xff]
        %v1064 = vld [vmem:[%s3 + $0x10] sm:$0xff]
        %v1065 = vld [vmem:[%s3 + $0x18] sm:$0xff]
        %v1066 = vld [vmem:[%s3 + $0x20] sm:$0xff]
        %v1067 = vld [vmem:[%s3 + $0x28] sm:$0xff]
        %v1068 = vld [vmem:[%s3 + $0x30] sm:$0xff]
        %v1069 = vld [vmem:[%s3 + $0x38] sm:$0xff]
        %v1070 = vld [vmem:[%s3 + $0x40] sm:$0xff]
        %v1071 = vld [vmem:[%s3 + $0x48] sm:$0xff]
        %v1072 = vld [vmem:[%s3 + $0x50] sm:$0xff]
        %v1073 = vld [vmem:[%s3 + $0x58] sm:$0xff]
        %v1074 = vld [vmem:[%s3 + $0x60] sm:$0xff]
        %v1075 = vld [vmem:[%s3 + $0x68] sm:$0xff]
        %v1076 = vld [vmem:[%s3 + $0x70] sm:$0xff]
        %v1077 = vld [vmem:[%s3 + $0x78] sm:$0xff]
        %v1078 = vld [vmem:[%s3 + $0x80] sm:$0xff]
        %v1079 = vld [vmem:[%s3 + $0x88] sm:$0xff]
        %v1080 = vld [vmem:[%s3 + $0x90] sm:$0xff]
        %v1081 = vld [vmem:[%s3 + $0x98] sm:$0xff]
        %v1082 = vld [vmem:[%s3 + $0xa0] sm:$0xff]
        %v1083 = vld [vmem:[%s3 + $0xa8] sm:$0xff]
        %v1084 = vld [vmem:[%s3 + $0xb0] sm:$0xff]
        %v1085 = vld [vmem:[%s3 + $0xb8] sm:$0xff]
        %v1086 = vld [vmem:[%s4] sm:$0x1]
        %v1088 = vlaneseq
        %v1089 = vshrl.u32 %v1088, 7
        %v1090 = vsub.s32 0, %v1089
        %v1091 = vrot.slane %v1086, %v1090
        %v1094 = vsel %vm606, %v1056, 0
        %1096 = vmatprep.subr.mxu0 0.0
        %1097 = vmatpush1.msra.mxu0 %v1062
        %1098 = vmatprep.subr.mxu0 0.0
        %1099 = vmatpush1.msra.mxu0 %v1063
        %1100 = vmatprep.subr.mxu0 0.0
        %1101 = vmatpush1.msra.mxu0 %v1064
        %1102 = vmatprep.subr.mxu0 0.0
        %1103 = vmatpush1.msra.mxu0 %v1065
        %1104 = vmatprep.subr.mxu0 0.0
        %1105 = vmatpush1.msra.mxu0 %v1066
        %1106 = vmatprep.subr.mxu0 0.0
        %1107 = vmatpush1.msra.mxu0 %v1067
        %1108 = vmatprep.subr.mxu0 0.0
        %1109 = vmatpush1.msra.mxu0 %v1068
        %1110 = vmatprep.subr.mxu0 0.0
        %1111 = vmatpush1.msra.mxu0 %v1069
        %1112 = vmatprep.subr.mxu0 0.0
        %1113 = vmatpush1.msra.mxu0 %v1070
        %1114 = vmatprep.subr.mxu0 0.0
        %1115 = vmatpush1.msra.mxu0 %v1071
        %1116 = vmatprep.subr.mxu0 0.0
        %1117 = vmatpush1.msra.mxu0 %v1072
        %1118 = vmatprep.subr.mxu0 0.0
        %1119 = vmatpush1.msra.mxu0 %v1073
        %1120 = vmatprep.subr.mxu0 0.0
        %1121 = vmatpush1.msra.mxu0 %v1074
        %1122 = vmatprep.subr.mxu0 0.0
        %1123 = vmatpush1.msra.mxu0 %v1075
        %1124 = vmatprep.subr.mxu0 0.0
        %1125 = vmatpush1.msra.mxu0 %v1076
        %1126 = vmatprep.subr.mxu0 0.0
        %1127 = vmatpush1.msra.mxu0 %v1077
        %1128 = vmatprep.subr.mxu0 0.0
        %1129 = vmatpush1.msra.mxu0 %v1078
        %1130 = vmatprep.subr.mxu0 0.0
        %1131 = vmatpush1.msra.mxu0 %v1079
        %1132 = vmatprep.subr.mxu0 0.0
        %1133 = vmatpush1.msra.mxu0 %v1080
        %1134 = vmatprep.subr.mxu0 0.0
        %1135 = vmatpush1.msra.mxu0 %v1081
        %1136 = vmatprep.subr.mxu0 0.0
        %1137 = vmatpush1.msra.mxu0 %v1082
        %1138 = vmatprep.subr.mxu0 0.0
        %1139 = vmatpush1.msra.mxu0 %v1083
        %1140 = vmatprep.subr.mxu0 0.0
        %1141 = vmatpush1.msra.mxu0 %v1084
        %1142 = vmatprep.subr.mxu0 0.0
        %1143 = vmatpush1.msra.mxu0 %v1085
        %1144 = vmatprep.subr.mxu0 0.0
        %1145 = vmatpush1.msra.mxu0 0.0
        %1146 = vmatprep.subr.mxu0 0.0
        %1147 = vmatpush1.msra.mxu0 0.0
        %1148 = vmatprep.subr.mxu0 0.0
        %1149 = vmatpush1.msra.mxu0 0.0
        %1150 = vmatprep.subr.mxu0 0.0
        %1151 = vmatpush1.msra.mxu0 0.0
        %1152 = vmatprep.subr.mxu0 0.0
        %1153 = vmatpush1.msra.mxu0 0.0
        %1154 = vmatprep.subr.mxu0 0.0
        %1155 = vmatpush1.msra.mxu0 0.0
        %1156 = vmatprep.subr.mxu0 0.0
        %1157 = vmatpush1.msra.mxu0 0.0
        %1158 = vmatprep.subr.mxu0 0.0
        %1159 = vmatpush1.msra.mxu0 0.0
        %1160 = vmatprep.mubr.f32.mxu0 %v1094
        %1161 = vmatmul.mubr.f32.gmra.mrb[0].mxu0 %v1061
        %v1162 = vpop.f32.mrb[0].mxu0
        %v1163 = vadd.f32 %v1091, %v1162
        %v1164 = vpop.f32.mrb[0].mxu0
        %1165 = vdwg.mxu0
        %v1166 = vxor.u32 %v1163, 2147483648
        %v1167 = vmul.f32 %v1166, 1.442695
        %v1168 = vpow.pop %v1167
        %v1169 = vadd.f32 %v1168, 1.0
        %v1170 = vrcp.pop %v1169
        %v1171 = vmul.f32 1.0, %v1170
        %v1172 = vmul.f32 %v1163, %v1171
        %vm1173 = vcmask 522240
        %1174 = vst.msk [vmem:[#allocation8] sm:$0x7f] %vm1173, %v1172
        // Predicated region
        $region143: #{melody_extractor_stereo_forward.1} parent=59 // pred_check
          %p1175 = pneg %p504
        $region144: #{melody_extractor_stereo_forward.1} parent=59 // pred_check_branch
          %1177 = sbr.rel (%p1175) target = $region146
        $region145: #{melody_extractor_stereo_forward.1} parent=59 // pred_region
          %s1178 = smul.u32 %s30, 8
          %s1179 = ssub.s32 %s1178, 4
          %v1180 = vlaneseq
          %v1181 = vshrl.u32 %v1180, 7
          %v1182 = vmul.u32 %v1181, 2
          %v1183 = vstv %s1179
          %v1184 = vadd.s32 %v1182, %v1183
          %vm1185 = vcmp.ge.s32.totalorder %v1184, 0
          %vm1186 = vcmp.lt.s32.totalorder %v1184, 7
          %vm1187 = vmand %vm1185, %vm1186
          %v1188 = vld [vmem:[#allocation7] sm:$0xff]
          %v1189 = vsel %vm1187, 1, 0
          %vm1190 = vcmp.eq.s32.totalorder %v1189, 1
          %v1191 = vsel %vm1190, %v1188, 0.0
          %1192 = vst.msk [vmem:[#allocation7] sm:$0xff] %vm606, %v1191
          %s1193 = ssub.s32 %s1178, 3
          %v1194 = vstv %s1193
          %v1195 = vadd.s32 %v1182, %v1194
          %vm1196 = vcmp.ge.s32.totalorder %v1195, 0
          %vm1197 = vcmp.lt.s32.totalorder %v1195, 7
          %vm1198 = vmand %vm1196, %vm1197
          %v1199 = vld [vmem:[#allocation8] sm:$0x7f]
          %v1200 = vsel %vm1198, 1, 0
          %vm1201 = vcmp.eq.s32.totalorder %v1200, 1
          %v1202 = vsel %vm1201, %v1199, 0.0
          %1203 = vst.msk [vmem:[#allocation8] sm:$0x7f] %vm1173, %v1202
        $region146: #{melody_extractor_stereo_forward.1} parent=59 // pred_fallthru
          _
        %v1204 = vld [vmem:[#allocation7] sm:$0x7f]
        %v1205 = vld [vmem:[#allocation8] sm:$0x7f]
        %v1206 = vld [vmem:[#allocation7 + $0x1] sm:$0x7f]
        %1208 = vrot.lane.b32.xlu0 %v1205, 64
        %v1209 = vpop.permute.xlu0 %1208
        %v1211 = vsel %vm606, %v1204, %v1209
        %v1212 = vld [vmem:[%s5] sm:$0xff]
        %v1213 = vld [vmem:[%s5 + $0x8] sm:$0xff]
        %v1214 = vld [vmem:[%s5 + $0x10] sm:$0xff]
        %v1215 = vld [vmem:[%s5 + $0x18] sm:$0xff]
        %v1216 = vld [vmem:[%s5 + $0x20] sm:$0xff]
        %v1217 = vld [vmem:[%s5 + $0x28] sm:$0xff]
        %v1218 = vld [vmem:[%s5 + $0x30] sm:$0xff]
        %v1219 = vld [vmem:[%s5 + $0x38] sm:$0xff]
        %v1220 = vld [vmem:[%s5 + $0x40] sm:$0xff]
        %v1221 = vld [vmem:[%s5 + $0x48] sm:$0xff]
        %v1222 = vld [vmem:[%s5 + $0x50] sm:$0xff]
        %v1223 = vld [vmem:[%s5 + $0x58] sm:$0xff]
        %v1224 = vld [vmem:[%s5 + $0x60] sm:$0xff]
        %v1225 = vld [vmem:[%s5 + $0x68] sm:$0xff]
        %v1226 = vld [vmem:[%s5 + $0x70] sm:$0xff]
        %v1227 = vld [vmem:[%s5 + $0x78] sm:$0xff]
        %v1228 = vld [vmem:[%s5 + $0x80] sm:$0xff]
        %v1229 = vld [vmem:[%s5 + $0x88] sm:$0xff]
        %v1230 = vld [vmem:[%s5 + $0x90] sm:$0xff]
        %v1231 = vld [vmem:[%s5 + $0x98] sm:$0xff]
        %v1232 = vld [vmem:[%s5 + $0xa0] sm:$0xff]
        %v1233 = vld [vmem:[%s5 + $0xa8] sm:$0xff]
        %v1234 = vld [vmem:[%s5 + $0xb0] sm:$0xff]
        %v1235 = vld [vmem:[%s5 + $0xb8] sm:$0xff]
        %v1236 = vld [vmem:[%s6] sm:$0x1]
        %v1238 = vlaneseq
        %v1239 = vshrl.u32 %v1238, 7
        %v1240 = vsub.s32 0, %v1239
        %v1241 = vrot.slane %v1236, %v1240
        %v1244 = vsel %vm606, %v1206, 0
        %1246 = vmatprep.subr.mxu0 0.0
        %1247 = vmatpush1.msra.mxu0 %v1212
        %1248 = vmatprep.subr.mxu0 0.0
        %1249 = vmatpush1.msra.mxu0 %v1213
        %1250 = vmatprep.subr.mxu0 0.0
        %1251 = vmatpush1.msra.mxu0 %v1214
        %1252 = vmatprep.subr.mxu0 0.0
        %1253 = vmatpush1.msra.mxu0 %v1215
        %1254 = vmatprep.subr.mxu0 0.0
        %1255 = vmatpush1.msra.mxu0 %v1216
        %1256 = vmatprep.subr.mxu0 0.0
        %1257 = vmatpush1.msra.mxu0 %v1217
        %1258 = vmatprep.subr.mxu0 0.0
        %1259 = vmatpush1.msra.mxu0 %v1218
        %1260 = vmatprep.subr.mxu0 0.0
        %1261 = vmatpush1.msra.mxu0 %v1219
        %1262 = vmatprep.subr.mxu0 0.0
        %1263 = vmatpush1.msra.mxu0 %v1220
        %1264 = vmatprep.subr.mxu0 0.0
        %1265 = vmatpush1.msra.mxu0 %v1221
        %1266 = vmatprep.subr.mxu0 0.0
        %1267 = vmatpush1.msra.mxu0 %v1222
        %1268 = vmatprep.subr.mxu0 0.0
        %1269 = vmatpush1.msra.mxu0 %v1223
        %1270 = vmatprep.subr.mxu0 0.0
        %1271 = vmatpush1.msra.mxu0 %v1224
        %1272 = vmatprep.subr.mxu0 0.0
        %1273 = vmatpush1.msra.mxu0 %v1225
        %1274 = vmatprep.subr.mxu0 0.0
        %1275 = vmatpush1.msra.mxu0 %v1226
        %1276 = vmatprep.subr.mxu0 0.0
        %1277 = vmatpush1.msra.mxu0 %v1227
        %1278 = vmatprep.subr.mxu0 0.0
        %1279 = vmatpush1.msra.mxu0 %v1228
        %1280 = vmatprep.subr.mxu0 0.0
        %1281 = vmatpush1.msra.mxu0 %v1229
        %1282 = vmatprep.subr.mxu0 0.0
        %1283 = vmatpush1.msra.mxu0 %v1230
        %1284 = vmatprep.subr.mxu0 0.0
        %1285 = vmatpush1.msra.mxu0 %v1231
        %1286 = vmatprep.subr.mxu0 0.0
        %1287 = vmatpush1.msra.mxu0 %v1232
        %1288 = vmatprep.subr.mxu0 0.0
        %1289 = vmatpush1.msra.mxu0 %v1233
        %1290 = vmatprep.subr.mxu0 0.0
        %1291 = vmatpush1.msra.mxu0 %v1234
        %1292 = vmatprep.subr.mxu0 0.0
        %1293 = vmatpush1.msra.mxu0 %v1235
        %1294 = vmatprep.subr.mxu0 0.0
        %1295 = vmatpush1.msra.mxu0 0.0
        %1296 = vmatprep.subr.mxu0 0.0
        %1297 = vmatpush1.msra.mxu0 0.0
        %1298 = vmatprep.subr.mxu0 0.0
        %1299 = vmatpush1.msra.mxu0 0.0
        %1300 = vmatprep.subr.mxu0 0.0
        %1301 = vmatpush1.msra.mxu0 0.0
        %1302 = vmatprep.subr.mxu0 0.0
        %1303 = vmatpush1.msra.mxu0 0.0
        %1304 = vmatprep.subr.mxu0 0.0
        %1305 = vmatpush1.msra.mxu0 0.0
        %1306 = vmatprep.subr.mxu0 0.0
        %1307 = vmatpush1.msra.mxu0 0.0
        %1308 = vmatprep.subr.mxu0 0.0
        %1309 = vmatpush1.msra.mxu0 0.0
        %1310 = vmatprep.mubr.f32.mxu0 %v1244
        %1311 = vmatmul.mubr.f32.gmra.mrb[0].mxu0 %v1211
        %v1312 = vpop.f32.mrb[0].mxu0
        %v1313 = vadd.f32 %v1241, %v1312
        %v1314 = vpop.f32.mrb[0].mxu0
        %1315 = vdwg.mxu0
        %v1316 = vxor.u32 %v1313, 2147483648
        %v1317 = vmul.f32 %v1316, 1.442695
        %v1318 = vpow.pop %v1317
        %v1319 = vadd.f32 %v1318, 1.0
        %v1320 = vrcp.pop %v1319
        %v1321 = vmul.f32 1.0, %v1320
        %v1322 = vmul.f32 %v1313, %v1321
        %1323 = vst [vmem:[#allocation9] sm:$0x7f] %v1322
        %v1324 = vld [vmem:[#allocation8] sm:$0x3f]
        %v1325 = vld [vmem:[#allocation7 + $0x1] sm:$0x3f]
        %v1326 = vld [vmem:[#allocation8 + $0x1] sm:$0x3f]
        %1328 = vrot.lane.b32.xlu0 %v1325, 64
        %v1329 = vpop.permute.xlu0 %1328
        %v1331 = vsel %vm606, %v1324, %v1329
        %v1332 = vld [vmem:[%s5] sm:$0xff]
        %v1333 = vld [vmem:[%s5 + $0x8] sm:$0xff]
        %v1334 = vld [vmem:[%s5 + $0x10] sm:$0xff]
        %v1335 = vld [vmem:[%s5 + $0x18] sm:$0xff]
        %v1336 = vld [vmem:[%s5 + $0x20] sm:$0xff]
        %v1337 = vld [vmem:[%s5 + $0x28] sm:$0xff]
        %v1338 = vld [vmem:[%s5 + $0x30] sm:$0xff]
        %v1339 = vld [vmem:[%s5 + $0x38] sm:$0xff]
        %v1340 = vld [vmem:[%s5 + $0x40] sm:$0xff]
        %v1341 = vld [vmem:[%s5 + $0x48] sm:$0xff]
        %v1342 = vld [vmem:[%s5 + $0x50] sm:$0xff]
        %v1343 = vld [vmem:[%s5 + $0x58] sm:$0xff]
        %v1344 = vld [vmem:[%s5 + $0x60] sm:$0xff]
        %v1345 = vld [vmem:[%s5 + $0x68] sm:$0xff]
        %v1346 = vld [vmem:[%s5 + $0x70] sm:$0xff]
        %v1347 = vld [vmem:[%s5 + $0x78] sm:$0xff]
        %v1348 = vld [vmem:[%s5 + $0x80] sm:$0xff]
        %v1349 = vld [vmem:[%s5 + $0x88] sm:$0xff]
        %v1350 = vld [vmem:[%s5 + $0x90] sm:$0xff]
        %v1351 = vld [vmem:[%s5 + $0x98] sm:$0xff]
        %v1352 = vld [vmem:[%s5 + $0xa0] sm:$0xff]
        %v1353 = vld [vmem:[%s5 + $0xa8] sm:$0xff]
        %v1354 = vld [vmem:[%s5 + $0xb0] sm:$0xff]
        %v1355 = vld [vmem:[%s5 + $0xb8] sm:$0xff]
        %v1356 = vld [vmem:[%s6] sm:$0x1]
        %v1358 = vlaneseq
        %v1359 = vshrl.u32 %v1358, 7
        %v1360 = vsub.s32 0, %v1359
        %v1361 = vrot.slane %v1356, %v1360
        %v1364 = vsel %vm606, %v1326, 0
        %1366 = vmatprep.subr.mxu0 0.0
        %1367 = vmatpush1.msra.mxu0 %v1332
        %1368 = vmatprep.subr.mxu0 0.0
        %1369 = vmatpush1.msra.mxu0 %v1333
        %1370 = vmatprep.subr.mxu0 0.0
        %1371 = vmatpush1.msra.mxu0 %v1334
        %1372 = vmatprep.subr.mxu0 0.0
        %1373 = vmatpush1.msra.mxu0 %v1335
        %1374 = vmatprep.subr.mxu0 0.0
        %1375 = vmatpush1.msra.mxu0 %v1336
        %1376 = vmatprep.subr.mxu0 0.0
        %1377 = vmatpush1.msra.mxu0 %v1337
        %1378 = vmatprep.subr.mxu0 0.0
        %1379 = vmatpush1.msra.mxu0 %v1338
        %1380 = vmatprep.subr.mxu0 0.0
        %1381 = vmatpush1.msra.mxu0 %v1339
        %1382 = vmatprep.subr.mxu0 0.0
        %1383 = vmatpush1.msra.mxu0 %v1340
        %1384 = vmatprep.subr.mxu0 0.0
        %1385 = vmatpush1.msra.mxu0 %v1341
        %1386 = vmatprep.subr.mxu0 0.0
        %1387 = vmatpush1.msra.mxu0 %v1342
        %1388 = vmatprep.subr.mxu0 0.0
        %1389 = vmatpush1.msra.mxu0 %v1343
        %1390 = vmatprep.subr.mxu0 0.0
        %1391 = vmatpush1.msra.mxu0 %v1344
        %1392 = vmatprep.subr.mxu0 0.0
        %1393 = vmatpush1.msra.mxu0 %v1345
        %1394 = vmatprep.subr.mxu0 0.0
        %1395 = vmatpush1.msra.mxu0 %v1346
        %1396 = vmatprep.subr.mxu0 0.0
        %1397 = vmatpush1.msra.mxu0 %v1347
        %1398 = vmatprep.subr.mxu0 0.0
        %1399 = vmatpush1.msra.mxu0 %v1348
        %1400 = vmatprep.subr.mxu0 0.0
        %1401 = vmatpush1.msra.mxu0 %v1349
        %1402 = vmatprep.subr.mxu0 0.0
        %1403 = vmatpush1.msra.mxu0 %v1350
        %1404 = vmatprep.subr.mxu0 0.0
        %1405 = vmatpush1.msra.mxu0 %v1351
        %1406 = vmatprep.subr.mxu0 0.0
        %1407 = vmatpush1.msra.mxu0 %v1352
        %1408 = vmatprep.subr.mxu0 0.0
        %1409 = vmatpush1.msra.mxu0 %v1353
        %1410 = vmatprep.subr.mxu0 0.0
        %1411 = vmatpush1.msra.mxu0 %v1354
        %1412 = vmatprep.subr.mxu0 0.0
        %1413 = vmatpush1.msra.mxu0 %v1355
        %1414 = vmatprep.subr.mxu0 0.0
        %1415 = vmatpush1.msra.mxu0 0.0
        %1416 = vmatprep.subr.mxu0 0.0
        %1417 = vmatpush1.msra.mxu0 0.0
        %1418 = vmatprep.subr.mxu0 0.0
        %1419 = vmatpush1.msra.mxu0 0.0
        %1420 = vmatprep.subr.mxu0 0.0
        %1421 = vmatpush1.msra.mxu0 0.0
        %1422 = vmatprep.subr.mxu0 0.0
        %1423 = vmatpush1.msra.mxu0 0.0
        %1424 = vmatprep.subr.mxu0 0.0
        %1425 = vmatpush1.msra.mxu0 0.0
        %1426 = vmatprep.subr.mxu0 0.0
        %1427 = vmatpush1.msra.mxu0 0.0
        %1428 = vmatprep.subr.mxu0 0.0
        %1429 = vmatpush1.msra.mxu0 0.0
        %1430 = vmatprep.mubr.f32.mxu0 %v1364
        %1431 = vmatmul.mubr.f32.gmra.mrb[0].mxu0 %v1331
        %v1432 = vpop.f32.mrb[0].mxu0
        %v1433 = vadd.f32 %v1361, %v1432
        %v1434 = vpop.f32.mrb[0].mxu0
        %1435 = vdwg.mxu0
        %v1436 = vxor.u32 %v1433, 2147483648
        %v1437 = vmul.f32 %v1436, 1.442695
        %v1438 = vpow.pop %v1437
        %v1439 = vadd.f32 %v1438, 1.0
        %v1440 = vrcp.pop %v1439
        %v1441 = vmul.f32 1.0, %v1440
        %v1442 = vmul.f32 %v1433, %v1441
        %1443 = vst [vmem:[#allocation10] sm:$0x3f] %v1442
        // Predicated region
        $region147: #{melody_extractor_stereo_forward.1} parent=59 // pred_check
          %p1444 = pneg %p504
        $region148: #{melody_extractor_stereo_forward.1} parent=59 // pred_check_branch
          %1446 = sbr.rel (%p1444) target = $region150
        $region149: #{melody_extractor_stereo_forward.1} parent=59 // pred_region
          %s1447 = smul.u32 %s30, 8
          %s1448 = ssub.s32 %s1447, 3
          %v1449 = vlaneseq
          %v1450 = vshrl.u32 %v1449, 7
          %v1451 = vmul.u32 %v1450, 2
          %v1452 = vstv %s1448
          %v1453 = vadd.s32 %v1451, %v1452
          %vm1454 = vcmp.ge.s32.totalorder %v1453, 0
          %vm1455 = vcmp.lt.s32.totalorder %v1453, 7
          %vm1456 = vmand %vm1454, %vm1455
          %v1457 = vld [vmem:[#allocation9] sm:$0x7f]
          %v1458 = vsel %vm1456, 1, 0
          %vm1459 = vcmp.eq.s32.totalorder %v1458, 1
          %v1460 = vsel %vm1459, %v1457, 0.0
          %1461 = vst [vmem:[#allocation9] sm:$0x7f] %v1460
          %s1462 = ssub.s32 %s1447, 2
          %v1463 = vstv %s1462
          %v1464 = vadd.s32 %v1451, %v1463
          %vm1465 = vcmp.ge.s32.totalorder %v1464, 0
          %vm1466 = vcmp.lt.s32.totalorder %v1464, 7
          %vm1467 = vmand %vm1465, %vm1466
          %v1468 = vld [vmem:[#allocation10] sm:$0x3f]
          %v1469 = vsel %vm1467, 1, 0
          %vm1470 = vcmp.eq.s32.totalorder %v1469, 1
          %v1471 = vsel %vm1470, %v1468, 0.0
          %1472 = vst [vmem:[#allocation10] sm:$0x3f] %v1471
        $region150: #{melody_extractor_stereo_forward.1} parent=59 // pred_fallthru
          _
        %v1473 = vld [vmem:[#allocation9] sm:$0x3f]
        %v1474 = vld [vmem:[#allocation10] sm:$0x3f]
        %v1475 = vld [vmem:[#allocation9 + $0x1] sm:$0x3f]
        %v1476 = vld [vmem:[%s7] sm:$0xff]
        %v1477 = vld [vmem:[%s7 + $0x8] sm:$0xff]
        %v1478 = vld [vmem:[%s7 + $0x10] sm:$0xff]
        %v1479 = vld [vmem:[%s7 + $0x18] sm:$0xff]
        %v1480 = vld [vmem:[%s7 + $0x20] sm:$0xff]
        %v1481 = vld [vmem:[%s7 + $0x28] sm:$0xff]
        %v1482 = vld [vmem:[%s7 + $0x30] sm:$0xff]
        %v1483 = vld [vmem:[%s7 + $0x38] sm:$0xff]
        %v1484 = vld [vmem:[%s7 + $0x40] sm:$0xff]
        %v1485 = vld [vmem:[%s7 + $0x48] sm:$0xff]
        %v1486 = vld [vmem:[%s7 + $0x50] sm:$0xff]
        %v1487 = vld [vmem:[%s7 + $0x58] sm:$0xff]
        %v1488 = vld [vmem:[%s7 + $0x60] sm:$0xff]
        %v1489 = vld [vmem:[%s7 + $0x68] sm:$0xff]
        %v1490 = vld [vmem:[%s7 + $0x70] sm:$0xff]
        %v1491 = vld [vmem:[%s7 + $0x78] sm:$0xff]
        %v1492 = vld [vmem:[%s7 + $0x80] sm:$0xff]
        %v1493 = vld [vmem:[%s7 + $0x88] sm:$0xff]
        %v1494 = vld [vmem:[%s7 + $0x90] sm:$0xff]
        %v1495 = vld [vmem:[%s7 + $0x98] sm:$0xff]
        %v1496 = vld [vmem:[%s7 + $0xa0] sm:$0xff]
        %v1497 = vld [vmem:[%s7 + $0xa8] sm:$0xff]
        %v1498 = vld [vmem:[%s7 + $0xb0] sm:$0xff]
        %v1499 = vld [vmem:[%s7 + $0xb8] sm:$0xff]
        %v1500 = vld [vmem:[%s7 + $0xc0] sm:$0xff]
        %v1501 = vld [vmem:[%s7 + $0xc8] sm:$0xff]
        %v1502 = vld [vmem:[%s7 + $0xd0] sm:$0xff]
        %v1503 = vld [vmem:[%s7 + $0xd8] sm:$0xff]
        %v1504 = vld [vmem:[%s7 + $0xe0] sm:$0xff]
        %v1505 = vld [vmem:[%s7 + $0xe8] sm:$0xff]
        %v1506 = vld [vmem:[%s7 + $0xf0] sm:$0xff]
        %v1507 = vld [vmem:[%s7 + $0xf8] sm:$0xff]
        %v1508 = vld [vmem:[%s7 + $0x100] sm:$0xff]
        %v1509 = vld [vmem:[%s7 + $0x108] sm:$0xff]
        %v1510 = vld [vmem:[%s7 + $0x110] sm:$0xff]
        %v1511 = vld [vmem:[%s7 + $0x118] sm:$0xff]
        %v1512 = vld [vmem:[%s7 + $0x120] sm:$0xff]
        %v1513 = vld [vmem:[%s7 + $0x128] sm:$0xff]
        %v1514 = vld [vmem:[%s7 + $0x130] sm:$0xff]
        %v1515 = vld [vmem:[%s7 + $0x138] sm:$0xff]
        %v1516 = vld [vmem:[%s7 + $0x140] sm:$0xff]
        %v1517 = vld [vmem:[%s7 + $0x148] sm:$0xff]
        %v1518 = vld [vmem:[%s7 + $0x150] sm:$0xff]
        %v1519 = vld [vmem:[%s7 + $0x158] sm:$0xff]
        %v1520 = vld [vmem:[%s7 + $0x160] sm:$0xff]
        %v1521 = vld [vmem:[%s7 + $0x168] sm:$0xff]
        %v1522 = vld [vmem:[%s7 + $0x170] sm:$0xff]
        %v1523 = vld [vmem:[%s7 + $0x178] sm:$0xff]
        %v1524 = vld [vmem:[%s8] sm:$0x1]
        %v1526 = vlaneseq
        %v1527 = vshrl.u32 %v1526, 7
        %v1528 = vsub.s32 0, %v1527
        %v1529 = vrot.slane %v1524, %v1528
        %1531 = vmatprep.subr.mxu0 0.0
        %1532 = vmatpush1.msra.mxu0 %v1476
        %1533 = vmatprep.subr.mxu0 0.0
        %1534 = vmatpush1.msra.mxu0 %v1477
        %1535 = vmatprep.subr.mxu0 0.0
        %1536 = vmatpush1.msra.mxu0 %v1478
        %1537 = vmatprep.subr.mxu0 0.0
        %1538 = vmatpush1.msra.mxu0 %v1479
        %1539 = vmatprep.subr.mxu0 0.0
        %1540 = vmatpush1.msra.mxu0 %v1480
        %1541 = vmatprep.subr.mxu0 0.0
        %1542 = vmatpush1.msra.mxu0 %v1481
        %1543 = vmatprep.subr.mxu0 0.0
        %1544 = vmatpush1.msra.mxu0 %v1482
        %1545 = vmatprep.subr.mxu0 0.0
        %1546 = vmatpush1.msra.mxu0 %v1483
        %1547 = vmatprep.subr.mxu0 0.0
        %1548 = vmatpush1.msra.mxu0 %v1484
        %1549 = vmatprep.subr.mxu0 0.0
        %1550 = vmatpush1.msra.mxu0 %v1485
        %1551 = vmatprep.subr.mxu0 0.0
        %1552 = vmatpush1.msra.mxu0 %v1486
        %1553 = vmatprep.subr.mxu0 0.0
        %1554 = vmatpush1.msra.mxu0 %v1487
        %1555 = vmatprep.subr.mxu0 0.0
        %1556 = vmatpush1.msra.mxu0 %v1488
        %1557 = vmatprep.subr.mxu0 0.0
        %1558 = vmatpush1.msra.mxu0 %v1489
        %1559 = vmatprep.subr.mxu0 0.0
        %1560 = vmatpush1.msra.mxu0 %v1490
        %1561 = vmatprep.subr.mxu0 0.0
        %1562 = vmatpush1.msra.mxu0 %v1491
        %1563 = vmatprep.subr.mxu0 0.0
        %1564 = vmatpush1.msra.mxu0 %v1492
        %1565 = vmatprep.subr.mxu0 0.0
        %1566 = vmatpush1.msra.mxu0 %v1493
        %1567 = vmatprep.subr.mxu0 0.0
        %1568 = vmatpush1.msra.mxu0 %v1494
        %1569 = vmatprep.subr.mxu0 0.0
        %1570 = vmatpush1.msra.mxu0 %v1495
        %1571 = vmatprep.subr.mxu0 0.0
        %1572 = vmatpush1.msra.mxu0 %v1496
        %1573 = vmatprep.subr.mxu0 0.0
        %1574 = vmatpush1.msra.mxu0 %v1497
        %1575 = vmatprep.subr.mxu0 0.0
        %1576 = vmatpush1.msra.mxu0 %v1498
        %1577 = vmatprep.subr.mxu0 0.0
        %1578 = vmatpush1.msra.mxu0 %v1499
        %1579 = vmatprep.subr.mxu0 0.0
        %1580 = vmatpush1.msra.mxu0 %v1500
        %1581 = vmatprep.subr.mxu0 0.0
        %1582 = vmatpush1.msra.mxu0 %v1501
        %1583 = vmatprep.subr.mxu0 0.0
        %1584 = vmatpush1.msra.mxu0 %v1502
        %1585 = vmatprep.subr.mxu0 0.0
        %1586 = vmatpush1.msra.mxu0 %v1503
        %1587 = vmatprep.subr.mxu0 0.0
        %1588 = vmatpush1.msra.mxu0 %v1504
        %1589 = vmatprep.subr.mxu0 0.0
        %1590 = vmatpush1.msra.mxu0 %v1505
        %1591 = vmatprep.subr.mxu0 0.0
        %1592 = vmatpush1.msra.mxu0 %v1506
        %1593 = vmatprep.subr.mxu0 0.0
        %1594 = vmatpush1.msra.mxu0 %v1507
        %1595 = vmatprep.mubr.f32.mxu0 %v1474
        %1596 = vmatmul.mubr.f32.gmra.mrb[0].mxu0 %v1473
        %v1597 = vpop.f32.mrb[0].mxu0
        %v1598 = vadd.f32 %v1529, %v1597
        %v1599 = vpop.f32.mrb[0].mxu0
        %1600 = vdwg.mxu0
        %1601 = vmatprep.subr.mxu0 0.0
        %1602 = vmatpush1.msra.mxu0 %v1508
        %1603 = vmatprep.subr.mxu0 0.0
        %1604 = vmatpush1.msra.mxu0 %v1509
        %1605 = vmatprep.subr.mxu0 0.0
        %1606 = vmatpush1.msra.mxu0 %v1510
        %1607 = vmatprep.subr.mxu0 0.0
        %1608 = vmatpush1.msra.mxu0 %v1511
        %1609 = vmatprep.subr.mxu0 0.0
        %1610 = vmatpush1.msra.mxu0 %v1512
        %1611 = vmatprep.subr.mxu0 0.0
        %1612 = vmatpush1.msra.mxu0 %v1513
        %1613 = vmatprep.subr.mxu0 0.0
        %1614 = vmatpush1.msra.mxu0 %v1514
        %1615 = vmatprep.subr.mxu0 0.0
        %1616 = vmatpush1.msra.mxu0 %v1515
        %1617 = vmatprep.subr.mxu0 0.0
        %1618 = vmatpush1.msra.mxu0 %v1516
        %1619 = vmatprep.subr.mxu0 0.0
        %1620 = vmatpush1.msra.mxu0 %v1517
        %1621 = vmatprep.subr.mxu0 0.0
        %1622 = vmatpush1.msra.mxu0 %v1518
        %1623 = vmatprep.subr.mxu0 0.0
        %1624 = vmatpush1.msra.mxu0 %v1519
        %1625 = vmatprep.subr.mxu0 0.0
        %1626 = vmatpush1.msra.mxu0 %v1520
        %1627 = vmatprep.subr.mxu0 0.0
        %1628 = vmatpush1.msra.mxu0 %v1521
        %1629 = vmatprep.subr.mxu0 0.0
        %1630 = vmatpush1.msra.mxu0 %v1522
        %1631 = vmatprep.subr.mxu0 0.0
        %1632 = vmatpush1.msra.mxu0 %v1523
        %1633 = vmatprep.subr.mxu0 0.0
        %1634 = vmatpush1.msra.mxu0 0.0
        %1635 = vmatprep.subr.mxu0 0.0
        %1636 = vmatpush1.msra.mxu0 0.0
        %1637 = vmatprep.subr.mxu0 0.0
        %1638 = vmatpush1.msra.mxu0 0.0
        %1639 = vmatprep.subr.mxu0 0.0
        %1640 = vmatpush1.msra.mxu0 0.0
        %1641 = vmatprep.subr.mxu0 0.0
        %1642 = vmatpush1.msra.mxu0 0.0
        %1643 = vmatprep.subr.mxu0 0.0
        %1644 = vmatpush1.msra.mxu0 0.0
        %1645 = vmatprep.subr.mxu0 0.0
        %1646 = vmatpush1.msra.mxu0 0.0
        %1647 = vmatprep.subr.mxu0 0.0
        %1648 = vmatpush1.msra.mxu0 0.0
        %1649 = vmatprep.subr.mxu0 0.0
        %1650 = vmatpush1.msra.mxu0 0.0
        %1651 = vmatprep.subr.mxu0 0.0
        %1652 = vmatpush1.msra.mxu0 0.0
        %1653 = vmatprep.subr.mxu0 0.0
        %1654 = vmatpush1.msra.mxu0 0.0
        %1655 = vmatprep.subr.mxu0 0.0
        %1656 = vmatpush1.msra.mxu0 0.0
        %1657 = vmatprep.subr.mxu0 0.0
        %1658 = vmatpush1.msra.mxu0 0.0
        %1659 = vmatprep.subr.mxu0 0.0
        %1660 = vmatpush1.msra.mxu0 0.0
        %1661 = vmatprep.subr.mxu0 0.0
        %1662 = vmatpush1.msra.mxu0 0.0
        %1663 = vmatprep.subr.mxu0 0.0
        %1664 = vmatpush1.msra.mxu0 0.0
        %1665 = vmatprep.mubr.f32.mxu0 0.0
        %1666 = vmatmul.mubr.f32.gmra.mrb[0].mxu0 %v1475
        %v1667 = vpop.f32.mrb[0].mxu0
        %v1668 = vadd.f32 %v1598, %v1667
        %v1669 = vpop.f32.mrb[0].mxu0
        %1670 = vdwg.mxu0
        %v1671 = vxor.u32 %v1668, 2147483648
        %v1672 = vmul.f32 %v1671, 1.442695
        %v1673 = vpow.pop %v1672
        %v1674 = vadd.f32 %v1673, 1.0
        %v1675 = vrcp.pop %v1674
        %v1676 = vmul.f32 1.0, %v1675
        %v1677 = vmul.f32 %v1668, %v1676
        %1678 = vst [vmem:[#allocation11] sm:$0x3f] %v1677
        // Predicated region
        $region151: #{melody_extractor_stereo_forward.1} parent=59 // pred_check
          %p1679 = pneg %p504
        $region152: #{melody_extractor_stereo_forward.1} parent=59 // pred_check_branch
          %1681 = sbr.rel (%p1679) target = $region154
        $region153: #{melody_extractor_stereo_forward.1} parent=59 // pred_region
          %s1682 = ssub.s32 %s353, 1
          %v1683 = vlaneseq
          %v1684 = vshrl.u32 %v1683, 7
          %v1685 = vstv %s1682
          %v1686 = vadd.s32 %v1684, %v1685
          %vm1687 = vcmp.ge.s32.totalorder %v1686, 0
          %vm1688 = vcmp.lt.s32.totalorder %v1686, 4
          %vm1689 = vmand %vm1687, %vm1688
          %v1690 = vld [vmem:[#allocation11] sm:$0x3f]
          %v1691 = vsel %vm1689, 1, 0
          %vm1692 = vcmp.eq.s32.totalorder %v1691, 1
          %v1693 = vsel %vm1692, %v1690, 0.0
          %1694 = vst [vmem:[#allocation11] sm:$0x3f] %v1693
        $region154: #{melody_extractor_stereo_forward.1} parent=59 // pred_fallthru
          _
        %v1695 = vld [vmem:[#allocation11] sm:$0xf]
        %v1696 = vld [vmem:[#allocation11 + $0x1] sm:$0xf]
        %v1697 = vld [vmem:[#allocation11 + $0x2] sm:$0xf]
        %v1698 = vld [vmem:[%s9] sm:$0xff]
        %v1699 = vld [vmem:[%s9 + $0x8] sm:$0xff]
        %v1700 = vld [vmem:[%s9 + $0x10] sm:$0xff]
        %v1701 = vld [vmem:[%s9 + $0x18] sm:$0xff]
        %v1702 = vld [vmem:[%s9 + $0x20] sm:$0xff]
        %v1703 = vld [vmem:[%s9 + $0x28] sm:$0xff]
        %v1704 = vld [vmem:[%s9 + $0x30] sm:$0xff]
        %v1705 = vld [vmem:[%s9 + $0x38] sm:$0xff]
        %v1706 = vld [vmem:[%s9 + $0x40] sm:$0xff]
        %v1707 = vld [vmem:[%s9 + $0x48] sm:$0xff]
        %v1708 = vld [vmem:[%s9 + $0x50] sm:$0xff]
        %v1709 = vld [vmem:[%s9 + $0x58] sm:$0xff]
        %v1710 = vld [vmem:[%s9 + $0x60] sm:$0xff]
        %v1711 = vld [vmem:[%s9 + $0x68] sm:$0xff]
        %v1712 = vld [vmem:[%s9 + $0x70] sm:$0xff]
        %v1713 = vld [vmem:[%s9 + $0x78] sm:$0xff]
        %v1714 = vld [vmem:[%s9 + $0x80] sm:$0xff]
        %v1715 = vld [vmem:[%s9 + $0x88] sm:$0xff]
        %v1716 = vld [vmem:[%s9 + $0x90] sm:$0xff]
        %v1717 = vld [vmem:[%s9 + $0x98] sm:$0xff]
        %v1718 = vld [vmem:[%s9 + $0xa0] sm:$0xff]
        %v1719 = vld [vmem:[%s9 + $0xa8] sm:$0xff]
        %v1720 = vld [vmem:[%s9 + $0xb0] sm:$0xff]
        %v1721 = vld [vmem:[%s9 + $0xb8] sm:$0xff]
        %v1722 = vld [vmem:[%s9 + $0xc0] sm:$0xff]
        %v1723 = vld [vmem:[%s9 + $0xc8] sm:$0xff]
        %v1724 = vld [vmem:[%s9 + $0xd0] sm:$0xff]
        %v1725 = vld [vmem:[%s9 + $0xd8] sm:$0xff]
        %v1726 = vld [vmem:[%s9 + $0xe0] sm:$0xff]
        %v1727 = vld [vmem:[%s9 + $0xe8] sm:$0xff]
        %v1728 = vld [vmem:[%s9 + $0xf0] sm:$0xff]
        %v1729 = vld [vmem:[%s9 + $0xf8] sm:$0xff]
        %v1730 = vld [vmem:[%s9 + $0x100] sm:$0xff]
        %v1731 = vld [vmem:[%s9 + $0x108] sm:$0xff]
        %v1732 = vld [vmem:[%s9 + $0x110] sm:$0xff]
        %v1733 = vld [vmem:[%s9 + $0x118] sm:$0xff]
        %v1734 = vld [vmem:[%s9 + $0x120] sm:$0xff]
        %v1735 = vld [vmem:[%s9 + $0x128] sm:$0xff]
        %v1736 = vld [vmem:[%s9 + $0x130] sm:$0xff]
        %v1737 = vld [vmem:[%s9 + $0x138] sm:$0xff]
        %v1738 = vld [vmem:[%s9 + $0x140] sm:$0xff]
        %v1739 = vld [vmem:[%s9 + $0x148] sm:$0xff]
        %v1740 = vld [vmem:[%s9 + $0x150] sm:$0xff]
        %v1741 = vld [vmem:[%s9 + $0x158] sm:$0xff]
        %v1742 = vld [vmem:[%s9 + $0x160] sm:$0xff]
        %v1743 = vld [vmem:[%s9 + $0x168] sm:$0xff]
        %v1744 = vld [vmem:[%s9 + $0x170] sm:$0xff]
        %v1745 = vld [vmem:[%s9 + $0x178] sm:$0xff]
        %v1746 = vld [vmem:[%s9 + $0x180] sm:$0xff]
        %v1747 = vld [vmem:[%s9 + $0x188] sm:$0xff]
        %v1748 = vld [vmem:[%s9 + $0x190] sm:$0xff]
        %v1749 = vld [vmem:[%s9 + $0x198] sm:$0xff]
        %v1750 = vld [vmem:[%s9 + $0x1a0] sm:$0xff]
        %v1751 = vld [vmem:[%s9 + $0x1a8] sm:$0xff]
        %v1752 = vld [vmem:[%s9 + $0x1b0] sm:$0xff]
        %v1753 = vld [vmem:[%s9 + $0x1b8] sm:$0xff]
        %v1754 = vld [vmem:[%s9 + $0x1c0] sm:$0xff]
        %v1755 = vld [vmem:[%s9 + $0x1c8] sm:$0xff]
        %v1756 = vld [vmem:[%s9 + $0x1d0] sm:$0xff]
        %v1757 = vld [vmem:[%s9 + $0x1d8] sm:$0xff]
        %v1758 = vld [vmem:[%s9 + $0x1e0] sm:$0xff]
        %v1759 = vld [vmem:[%s9 + $0x1e8] sm:$0xff]
        %v1760 = vld [vmem:[%s9 + $0x1f0] sm:$0xff]
        %v1761 = vld [vmem:[%s9 + $0x1f8] sm:$0xff]
        %v1762 = vld [vmem:[%s9 + $0x200] sm:$0xff]
        %v1763 = vld [vmem:[%s9 + $0x208] sm:$0xff]
        %v1764 = vld [vmem:[%s9 + $0x210] sm:$0xff]
        %v1765 = vld [vmem:[%s9 + $0x218] sm:$0xff]
        %v1766 = vld [vmem:[%s9 + $0x220] sm:$0xff]
        %v1767 = vld [vmem:[%s9 + $0x228] sm:$0xff]
        %v1768 = vld [vmem:[%s9 + $0x230] sm:$0xff]
        %v1769 = vld [vmem:[%s9 + $0x238] sm:$0xff]
        %v1770 = vld [vmem:[%s9 + $0x240] sm:$0xff]
        %v1771 = vld [vmem:[%s9 + $0x248] sm:$0xff]
        %v1772 = vld [vmem:[%s9 + $0x250] sm:$0xff]
        %v1773 = vld [vmem:[%s9 + $0x258] sm:$0xff]
        %v1774 = vld [vmem:[%s9 + $0x260] sm:$0xff]
        %v1775 = vld [vmem:[%s9 + $0x268] sm:$0xff]
        %v1776 = vld [vmem:[%s9 + $0x270] sm:$0xff]
        %v1777 = vld [vmem:[%s9 + $0x278] sm:$0xff]
        %v1778 = vld [vmem:[%s9 + $0x280] sm:$0xff]
        %v1779 = vld [vmem:[%s9 + $0x288] sm:$0xff]
        %v1780 = vld [vmem:[%s9 + $0x290] sm:$0xff]
        %v1781 = vld [vmem:[%s9 + $0x298] sm:$0xff]
        %v1782 = vld [vmem:[%s9 + $0x2a0] sm:$0xff]
        %v1783 = vld [vmem:[%s9 + $0x2a8] sm:$0xff]
        %v1784 = vld [vmem:[%s9 + $0x2b0] sm:$0xff]
        %v1785 = vld [vmem:[%s9 + $0x2b8] sm:$0xff]
        %v1786 = vld [vmem:[%s9 + $0x2c0] sm:$0xff]
        %v1787 = vld [vmem:[%s9 + $0x2c8] sm:$0xff]
        %v1788 = vld [vmem:[%s9 + $0x2d0] sm:$0xff]
        %v1789 = vld [vmem:[%s9 + $0x2d8] sm:$0xff]
        %v1790 = vld [vmem:[%s9 + $0x2e0] sm:$0xff]
        %v1791 = vld [vmem:[%s9 + $0x2e8] sm:$0xff]
        %v1792 = vld [vmem:[%s9 + $0x2f0] sm:$0xff]
        %v1793 = vld [vmem:[%s9 + $0x2f8] sm:$0xff]
        %v1794 = vld [vmem:[%s10] sm:$0x3]
        %v1796 = vlaneseq
        %v1797 = vshrl.u32 %v1796, 7
        %v1798 = vsub.s32 0, %v1797
        %v1799 = vrot.slane %v1794, %v1798
        %v1800 = vlaneseq
        %v1801 = vshrl.u32 %v1800, 7
        %v1802 = vsub.s32 1, %v1801
        %v1803 = vrot.slane %v1794, %v1802
        %1806 = vmatprep.subr.mxu0 %v1699
        %1807 = vmatpush1.msra.mxu0 %v1698
        %1808 = vmatprep.subr.mxu0 %v1701
        %1809 = vmatpush1.msra.mxu0 %v1700
        %1810 = vmatprep.subr.mxu0 %v1703
        %1811 = vmatpush1.msra.mxu0 %v1702
        %1812 = vmatprep.subr.mxu0 %v1705
        %1813 = vmatpush1.msra.mxu0 %v1704
        %1814 = vmatprep.subr.mxu0 %v1707
        %1815 = vmatpush1.msra.mxu0 %v1706
        %1816 = vmatprep.subr.mxu0 %v1709
        %1817 = vmatpush1.msra.mxu0 %v1708
        %1818 = vmatprep.subr.mxu0 %v1711
        %1819 = vmatpush1.msra.mxu0 %v1710
        %1820 = vmatprep.subr.mxu0 %v1713
        %1821 = vmatpush1.msra.mxu0 %v1712
        %1822 = vmatprep.subr.mxu0 %v1715
        %1823 = vmatpush1.msra.mxu0 %v1714
        %1824 = vmatprep.subr.mxu0 %v1717
        %1825 = vmatpush1.msra.mxu0 %v1716
        %1826 = vmatprep.subr.mxu0 %v1719
        %1827 = vmatpush1.msra.mxu0 %v1718
        %1828 = vmatprep.subr.mxu0 %v1721
        %1829 = vmatpush1.msra.mxu0 %v1720
        %1830 = vmatprep.subr.mxu0 %v1723
        %1831 = vmatpush1.msra.mxu0 %v1722
        %1832 = vmatprep.subr.mxu0 %v1725
        %1833 = vmatpush1.msra.mxu0 %v1724
        %1834 = vmatprep.subr.mxu0 %v1727
        %1835 = vmatpush1.msra.mxu0 %v1726
        %1836 = vmatprep.subr.mxu0 %v1729
        %1837 = vmatpush1.msra.mxu0 %v1728
        %1838 = vmatprep.subr.mxu0 %v1731
        %1839 = vmatpush1.msra.mxu0 %v1730
        %1840 = vmatprep.subr.mxu0 %v1733
        %1841 = vmatpush1.msra.mxu0 %v1732
        %1842 = vmatprep.subr.mxu0 %v1735
        %1843 = vmatpush1.msra.mxu0 %v1734
        %1844 = vmatprep.subr.mxu0 %v1737
        %1845 = vmatpush1.msra.mxu0 %v1736
        %1846 = vmatprep.subr.mxu0 %v1739
        %1847 = vmatpush1.msra.mxu0 %v1738
        %1848 = vmatprep.subr.mxu0 %v1741
        %1849 = vmatpush1.msra.mxu0 %v1740
        %1850 = vmatprep.subr.mxu0 %v1743
        %1851 = vmatpush1.msra.mxu0 %v1742
        %1852 = vmatprep.subr.mxu0 %v1745
        %1853 = vmatpush1.msra.mxu0 %v1744
        %1854 = vmatprep.subr.mxu0 %v1747
        %1855 = vmatpush1.msra.mxu0 %v1746
        %1856 = vmatprep.subr.mxu0 %v1749
        %1857 = vmatpush1.msra.mxu0 %v1748
        %1858 = vmatprep.subr.mxu0 %v1751
        %1859 = vmatpush1.msra.mxu0 %v1750
        %1860 = vmatprep.subr.mxu0 %v1753
        %1861 = vmatpush1.msra.mxu0 %v1752
        %1862 = vmatprep.subr.mxu0 %v1755
        %1863 = vmatpush1.msra.mxu0 %v1754
        %1864 = vmatprep.subr.mxu0 %v1757
        %1865 = vmatpush1.msra.mxu0 %v1756
        %1866 = vmatprep.subr.mxu0 %v1759
        %1867 = vmatpush1.msra.mxu0 %v1758
        %1868 = vmatprep.subr.mxu0 %v1761
        %1869 = vmatpush1.msra.mxu0 %v1760
        %1870 = vmatprep.mubr.f32.mxu0 %v1696
        %1871 = vmatmul.mubr.f32.gmra.mrb[0].mxu0 %v1695
        %v1872 = vpop.f32.mrb[0].mxu0
        %v1873 = vadd.f32 %v1799, %v1872
        %v1874 = vpop.f32.mrb[0].mxu0
        %v1875 = vadd.f32 %v1803, %v1874
        %1876 = vdwg.mxu0
        %1877 = vmatprep.subr.mxu0 %v1763
        %1878 = vmatpush1.msra.mxu0 %v1762
        %1879 = vmatprep.subr.mxu0 %v1765
        %1880 = vmatpush1.msra.mxu0 %v1764
        %1881 = vmatprep.subr.mxu0 %v1767
        %1882 = vmatpush1.msra.mxu0 %v1766
        %1883 = vmatprep.subr.mxu0 %v1769
        %1884 = vmatpush1.msra.mxu0 %v1768
        %1885 = vmatprep.subr.mxu0 %v1771
        %1886 = vmatpush1.msra.mxu0 %v1770
        %1887 = vmatprep.subr.mxu0 %v1773
        %1888 = vmatpush1.msra.mxu0 %v1772
        %1889 = vmatprep.subr.mxu0 %v1775
        %1890 = vmatpush1.msra.mxu0 %v1774
        %1891 = vmatprep.subr.mxu0 %v1777
        %1892 = vmatpush1.msra.mxu0 %v1776
        %1893 = vmatprep.subr.mxu0 %v1779
        %1894 = vmatpush1.msra.mxu0 %v1778
        %1895 = vmatprep.subr.mxu0 %v1781
        %1896 = vmatpush1.msra.mxu0 %v1780
        %1897 = vmatprep.subr.mxu0 %v1783
        %1898 = vmatpush1.msra.mxu0 %v1782
        %1899 = vmatprep.subr.mxu0 %v1785
        %1900 = vmatpush1.msra.mxu0 %v1784
        %1901 = vmatprep.subr.mxu0 %v1787
        %1902 = vmatpush1.msra.mxu0 %v1786
        %1903 = vmatprep.subr.mxu0 %v1789
        %1904 = vmatpush1.msra.mxu0 %v1788
        %1905 = vmatprep.subr.mxu0 %v1791
        %1906 = vmatpush1.msra.mxu0 %v1790
        %1907 = vmatprep.subr.mxu0 %v1793
        %1908 = vmatpush1.msra.mxu0 %v1792
        %1909 = vmatprep.subr.mxu0 0.0
        %1910 = vmatpush1.msra.mxu0 0.0
        %1911 = vmatprep.subr.mxu0 0.0
        %1912 = vmatpush1.msra.mxu0 0.0
        %1913 = vmatprep.subr.mxu0 0.0
        %1914 = vmatpush1.msra.mxu0 0.0
        %1915 = vmatprep.subr.mxu0 0.0
        %1916 = vmatpush1.msra.mxu0 0.0
        %1917 = vmatprep.subr.mxu0 0.0
        %1918 = vmatpush1.msra.mxu0 0.0
        %1919 = vmatprep.subr.mxu0 0.0
        %1920 = vmatpush1.msra.mxu0 0.0
        %1921 = vmatprep.subr.mxu0 0.0
        %1922 = vmatpush1.msra.mxu0 0.0
        %1923 = vmatprep.subr.mxu0 0.0
        %1924 = vmatpush1.msra.mxu0 0.0
        %1925 = vmatprep.subr.mxu0 0.0
        %1926 = vmatpush1.msra.mxu0 0.0
        %1927 = vmatprep.subr.mxu0 0.0
        %1928 = vmatpush1.msra.mxu0 0.0
        %1929 = vmatprep.subr.mxu0 0.0
        %1930 = vmatpush1.msra.mxu0 0.0
        %1931 = vmatprep.subr.mxu0 0.0
        %1932 = vmatpush1.msra.mxu0 0.0
        %1933 = vmatprep.subr.mxu0 0.0
        %1934 = vmatpush1.msra.mxu0 0.0
        %1935 = vmatprep.subr.mxu0 0.0
        %1936 = vmatpush1.msra.mxu0 0.0
        %1937 = vmatprep.subr.mxu0 0.0
        %1938 = vmatpush1.msra.mxu0 0.0
        %1939 = vmatprep.subr.mxu0 0.0
        %1940 = vmatpush1.msra.mxu0 0.0
        %1941 = vmatprep.mubr.f32.mxu0 0.0
        %1942 = vmatmul.mubr.f32.gmra.mrb[0].mxu0 %v1697
        %v1943 = vpop.f32.mrb[0].mxu0
        %v1944 = vadd.f32 %v1873, %v1943
        %v1945 = vpop.f32.mrb[0].mxu0
        %v1946 = vadd.f32 %v1875, %v1945
        %1947 = vdwg.mxu0
        %v1948 = vxor.u32 %v1944, 2147483648
        %v1949 = vxor.u32 %v1946, 2147483648
        %v1950 = vmul.f32 %v1948, 1.442695
        %v1951 = vpow.pop %v1950
        %v1952 = vmul.f32 %v1949, 1.442695
        %v1953 = vpow.pop %v1952
        %v1954 = vadd.f32 %v1951, 1.0
        %v1955 = vadd.f32 %v1953, 1.0
        %v1956 = vrcp.pop %v1954
        %v1957 = vmul.f32 1.0, %v1956
        %v1958 = vrcp.pop %v1955
        %v1959 = vmul.f32 1.0, %v1958
        %v1960 = vmul.f32 %v1944, %v1957
        %v1961 = vmul.f32 %v1946, %v1959
        %v1964 = vcombine.low %v1960, %v1961
        %1966 = vst [vmem:[%s352] sm:$0xff] %v1964
        %s1967 = sand.u32 %s257, 1
        %s1968 = scalar_lea.sflag [#allocation14], %s1967
        %s1969 = sand.u32 %s257, 1
        %s1970 = smul.addr %s1969, 8
        %s1971 = scalar_lea.vmem [#allocation13], %s1970
        // Predicated region
        $region155: #{melody_extractor_stereo_forward.1} parent=59 // pred_check
          %p1972 = pneg %p267
        $region156: #{melody_extractor_stereo_forward.1} parent=59 // pred_check_branch
          %1974 = sbr.rel (%p1972) target = $region158
        $region157: #{melody_extractor_stereo_forward.1} parent=59 // pred_region
          %s1976 = ssub.s32 128, 128
          %1977 = vsyncadd %s1968, %s1976
          %s1978 = smul.addr %s30, 2
          %s1979 = smul.addr %s29, 2
          %s1980 = sadd.s32 %s1978, %s1979
          %s1981 = smul.addr %s1980, 64
          %s1982 = scalar_lea.hbm %s11, %s1981
          %s1984 = sshll.u32 %s1971, 4
          %s1985 = int_to_ptr.vmem [resolvable:$true] %s1984
          %1987 = dma.vmem_to_hbm [thread:$0]  %s1985, 128, %s1982, %s1968
        $region158: #{melody_extractor_stereo_forward.1} parent=59 // pred_fallthru
          _
      $region60: #{melody_extractor_stereo_forward.1} parent=5 // pred_fallthru
        _
      %p1988 = scmp.le.s32.totalorder 2, %s20
      // Predicated region
      $region159: #{melody_extractor_stereo_forward.1} parent=5 // pred_check
        %p1989 = pneg %p1988
      $region160: #{melody_extractor_stereo_forward.1} parent=5 // pred_check_branch
        %1991 = sbr.rel (%p1989) target = $region162
      $region161: #{melody_extractor_stereo_forward.1} parent=5 // pred_region
        %s1992 = ssub.s32 %s20, 2
        // Predicated region
        $region163: #{melody_extractor_stereo_forward.1} parent=161 // pred_check
          %p1993 = pneg %p273
        $region164: #{melody_extractor_stereo_forward.1} parent=161 // pred_check_branch
          %1995 = sbr.rel (%p1993) target = $region166
        $region165: #{melody_extractor_stereo_forward.1} parent=161 // pred_region
          %s1996 = sand.u32 %s258, 1
          %s1997 = scalar_lea.sflag [#allocation14], %s1996
          %s1998 = sand.u32 %s258, 1
          %s1999 = smul.addr %s1998, 8
          %s2000 = scalar_lea.vmem [#allocation13], %s1999
          %2001 = dma.done %s1997, 128
        $region166: #{melody_extractor_stereo_forward.1} parent=161 // pred_fallthru
          _
      $region162: #{melody_extractor_stereo_forward.1} parent=5 // pred_fallthru
        _
    $region6: #{melody_extractor_stereo_forward.1} parent=1 // loop_footer
      %s24 = sadd.s32 1, %s20
    $region7: #{melody_extractor_stereo_forward.1} parent=1 // loop_footer_branch
      %19 = sbr.rel target = $region3
    $region8: #{melody_extractor_stereo_forward.1} parent=1 // loop_exit
      _
    %2002 = vsyncpa [#allocation14], 1
    %s2003 = scalar_lea.sflag [#allocation14], 1
    %2004 = vsyncpa %s2003, 1
  %2005 = vsyncmov [#allocation12]
  %s2006 = vpop.sfrf %2005
  %p2007 = scmp.eq.s32.totalorder %s2006, 0
  %p2008 = pneg %p2007
  %2010 = shalt.err (%p2008)
  %s2011 = scalar_lea.sflag [#allocation12], 1
  %2012 = vsyncmov %s2011
  %s2013 = vpop.sfrf %2012
  %p2014 = scmp.eq.s32.totalorder %s2013, 0
  %p2015 = pneg %p2014
  %2017 = shalt.err (%p2015)

</llo_original>
